<compile_context>
chip_gen: v7x
topology: tpu7x:2x2x1
jax: 0.10.0
libtpu: 0.0.40
codegen_flags: <defaults>
</compile_context>

<pallas_src>
import jax
import jax.numpy as jnp
from jax.experimental import pallas as pl
from jax.experimental.pallas import tpu as pltpu

# ---------------- module hyper-parameters (small, synthetic) ----------------
IN_CHANNELS = 4
MID_CHANNELS = 32
FEATURE_STRIDE = 16
ANCHOR_SCALES = (8.0, 16.0, 32.0)
ANCHOR_RATIOS = (0.5, 1.0, 2.0)
NUM_ANCHORS = len(ANCHOR_SCALES) * len(ANCHOR_RATIOS)   # 9

HEAD_LANES = 128          # fused (reg|cls) head output padded to 128 lanes

# proposal-layer knobs (scaled down for the small example)
PRE_NMS_TOP_N = 128
POST_NMS_TOP_N = 32
MIN_SIZE = 16.0


# ------------------------------ Pallas kernel -------------------------------
def _make_rpn_kernel(s1, hw, cmid):
    """Builds the per-image kernel body (static spatial sizes closed over).

    xd_ref   : (3, (s0+2)*s1, Cin) bf16  dx-shifted copies, pixel-row flattened
    wconv_ref: (9, Cin, Cmid)      bf16  3x3 conv weights, tap-major (dy*3+dx)
    bconv_ref: (1, Cmid)           f32
    whead_ref: (Cmid, 128)         bf16  [w_reg | w_cls | zero pad] fused heads
    bhead_ref: (1, 128)            f32
    out_ref  : (s0*s1, 128)        bf16  lane-dense fused head output
    """

    def kernel(xd_ref, wconv_ref, bconv_ref, whead_ref, bhead_ref, out_ref):
        # 3x3 conv = 9 shifted-view matmuls accumulated in f32.
        # The dy shift is a static row slice (offsets 0, s1, 2*s1); the dx
        # shift was pre-materialized along the leading dim of xd.
        acc = jnp.zeros((hw, cmid), jnp.float32)
        for dy in range(3):
            for dx in range(3):
                xv = xd_ref[dx, dy * s1:dy * s1 + hw, :]          # (hw, Cin)
                acc = acc + jnp.dot(xv, wconv_ref[dy * 3 + dx],
                                    preferred_element_type=jnp.float32)
        hidden = jnp.maximum(acc + bconv_ref[...], 0.0)           # f32 bias+ReLU
        # fused reg+cls heads, one lane-dense (hw, 128) store in bf16
        out = (jnp.dot(hidden.astype(jnp.bfloat16), whead_ref[...],
                       preferred_element_type=jnp.float32)
               + bhead_ref[...])
        out_ref[...] = out.astype(out_ref.dtype)

    return kernel


def rpn_heads_pallas(x_nchw, params):
    """ReLU(Conv3x3) + the two 1x1 heads in a single Pallas kernel.

    Returns rpn_locs (n, H*W, A*4) and rpn_scores (n, H*W, A*2) in the
    channel-last ordering identical to PyTorch's permute(0,2,3,1).
    """
    n, cin, s0, s1 = x_nchw.shape
    hw = s0 * s1
    phw = (s0 + 2) * s1
    a2 = NUM_ANCHORS * 2
    a4 = NUM_ANCHORS * 4
    cmid = MID_CHANNELS
    assert a4 + a2 <= HEAD_LANES

    # --- glue: NHWC + spatial zero pad (no 9x im2col slab) -------------------
    x_nhwc = jnp.transpose(x_nchw, (0, 2, 3, 1))
    xpad = jnp.pad(x_nhwc, ((0, 0), (1, 1), (1, 1), (0, 0)))
    # three dx-shifted copies flattened to pixel rows; dy handled in-kernel.
    xd = jnp.stack(
        [xpad[:, :, dx:dx + s1, :].reshape(n, phw, cin) for dx in range(3)],
        axis=1).astype(jnp.bfloat16)                 # (n, 3, (s0+2)*s1, cin)

    # --- glue: weights (bf16 for the matmuls, f32 biases) --------------------
    w_conv = params["w_conv"].astype(jnp.bfloat16)   # (9, cin, cmid)
    b_conv = params["b_conv"]                        # (1, cmid) f32
    w_head = jnp.concatenate([params["w_reg"], params["w_cls"]], axis=1)
    w_head = jnp.pad(w_head, ((0, 0), (0, HEAD_LANES - (a4 + a2))))
    w_head = w_head.astype(jnp.bfloat16)             # (cmid, 128)
    b_head = jnp.concatenate([params["b_reg"], params["b_cls"]], axis=1)
    b_head = jnp.pad(b_head, ((0, 0), (0, HEAD_LANES - (a4 + a2))))  # f32

    kernel = _make_rpn_kernel(s1, hw, cmid)

    flops = 2 * n * hw * (9 * cin * cmid + cmid * HEAD_LANES)
    bytes_accessed = (2 * n * 3 * phw * cin                      # bf16 inputs
                      + 2 * (9 * cin * cmid + cmid * HEAD_LANES) # bf16 weights
                      + 4 * (cmid + HEAD_LANES)                  # f32 biases
                      + 2 * n * hw * HEAD_LANES)                 # bf16 output

    out = pl.pallas_call(
        kernel,
        out_shape=jax.ShapeDtypeStruct((n, hw, HEAD_LANES), jnp.bfloat16),
        grid=(n,),
        in_specs=[
            pl.BlockSpec((None, 3, phw, cin), lambda b: (b, 0, 0, 0)),
            pl.BlockSpec((9, cin, cmid), lambda b: (0, 0, 0)),
            pl.BlockSpec((1, cmid), lambda b: (0, 0)),
            pl.BlockSpec((cmid, HEAD_LANES), lambda b: (0, 0)),
            pl.BlockSpec((1, HEAD_LANES), lambda b: (0, 0)),
        ],
        out_specs=pl.BlockSpec((None, hw, HEAD_LANES), lambda b: (b, 0, 0)),
        compiler_params=pltpu.CompilerParams(
            dimension_semantics=("parallel",),
            vmem_limit_bytes=48 * 1024 * 1024),
        cost_estimate=pl.CostEstimate(
            flops=flops, transcendentals=0, bytes_accessed=bytes_accessed),
    )(xd, w_conv, b_conv, w_head, b_head)

    out = out.astype(jnp.float32)
    locs = out[:, :, :a4]
    scores = out[:, :, a4:a4 + a2]
    return locs, scores


# ------------------------------ JAX glue code --------------------------------
def generate_base_anchors(scales=ANCHOR_SCALES, ratios=ANCHOR_RATIOS,
                          base_size=FEATURE_STRIDE):
    """Standard (y1, x1, y2, x2) base anchors centered on one feature cell."""
    py = base_size / 2.0
    px = base_size / 2.0
    anchors = []
    for r in ratios:
        for s in scales:
            h = base_size * s * jnp.sqrt(r)
            w = base_size * s * jnp.sqrt(1.0 / r)
            anchors.append(jnp.stack([py - h / 2.0, px - w / 2.0,
                                      py + h / 2.0, px + w / 2.0]))
    return jnp.stack(anchors, axis=0)  # (A, 4)


def enumerate_shifted_anchor(base_anchors, base_size, width, height):
    """Shift base anchors over the feature grid (order matches permute/view)."""
    shift_i = jnp.arange(width, dtype=jnp.float32) * base_size
    shift_j = jnp.arange(height, dtype=jnp.float32) * base_size
    si, sj = jnp.meshgrid(shift_i, shift_j, indexing="ij")
    shifts = jnp.stack([si.ravel(), sj.ravel(), si.ravel(), sj.ravel()],
                       axis=1)  # (W*H, 4)
    anchors = base_anchors[None, :, :] + shifts[:, None, :]
    return anchors.reshape(-1, 4)  # (W*H*A, 4)


def loc2bbox(anchors, locs):
    """Decode (dy, dx, dh, dw) deltas against (y1, x1, y2, x2) anchors."""
    h = anchors[:, 2] - anchors[:, 0]
    w = anchors[:, 3] - anchors[:, 1]
    cy = anchors[:, 0] + 0.5 * h
    cx = anchors[:, 1] + 0.5 * w
    dy, dx, dh, dw = locs[:, 0], locs[:, 1], locs[:, 2], locs[:, 3]
    ncy = dy * h + cy
    ncx = dx * w + cx
    nh = jnp.exp(dh) * h
    nw = jnp.exp(dw) * w
    return jnp.stack([ncy - 0.5 * nh, ncx - 0.5 * nw,
                      ncy + 0.5 * nh, ncx + 0.5 * nw], axis=1)


def proposal_layer(locs0, scores0, anchors, img_size, scale=1.0):
    """ProposalCreator: decode, clip, min-size filter, score-ranked top-k.

    # TODO(synk): the NMS step of ProposalCreator has no clean Pallas/JAX
    # equivalent here; rois are the score-ranked top POST_NMS_TOP_N proposals.
    """
    boxes = loc2bbox(anchors, locs0)
    boxes = jnp.stack([
        jnp.clip(boxes[:, 0], 0.0, img_size[0]),
        jnp.clip(boxes[:, 1], 0.0, img_size[1]),
        jnp.clip(boxes[:, 2], 0.0, img_size[0]),
        jnp.clip(boxes[:, 3], 0.0, img_size[1]),
    ], axis=1)
    fg = jax.nn.softmax(scores0, axis=-1)[:, 1]
    hs = boxes[:, 2] - boxes[:, 0]
    ws = boxes[:, 3] - boxes[:, 1]
    min_size = MIN_SIZE * scale
    keep = (hs >= min_size) & (ws >= min_size)
    fg = jnp.where(keep, fg, -jnp.inf)
    k = min(PRE_NMS_TOP_N, POST_NMS_TOP_N, boxes.shape[0])
    _, idx = jax.lax.top_k(fg, k)
    return boxes[idx]


def init_params(key):
    """normal_init(mean=0, stddev=0.01) on weights, zero bias (synthetic)."""
    k1, k2, k3 = jax.random.split(key, 3)
    a2 = NUM_ANCHORS * 2
    a4 = NUM_ANCHORS * 4
    return {
        # 3x3 conv weights stored tap-major: (9, Cin, Cmid), tap index dy*3+dx
        "w_conv": 0.01 * jax.random.normal(
            k1, (9, IN_CHANNELS, MID_CHANNELS), jnp.float32),
        "b_conv": jnp.zeros((1, MID_CHANNELS), jnp.float32),
        "w_cls": 0.01 * jax.random.normal(
            k2, (MID_CHANNELS, a2), jnp.float32),
        "b_cls": jnp.zeros((1, a2), jnp.float32),
        "w_reg": 0.01 * jax.random.normal(
            k3, (MID_CHANNELS, a4), jnp.float32),
        "b_reg": jnp.zeros((1, a4), jnp.float32),
    }


def rpn_forward(base_feature_map, img_size, params):
    """Mirrors RPN.forward: returns (rpn_locs, rpn_scores, anchors, rois)."""
    n, _, w, h = base_feature_map.shape
    anchors = enumerate_shifted_anchor(
        generate_base_anchors(), base_size=FEATURE_STRIDE, width=w, height=h)

    locs, scores = rpn_heads_pallas(base_feature_map, params)  # Pallas hot path
    rpn_locs = locs.reshape(n, -1, 4)          # (n, w*h*A, 4)
    rpn_scores = scores.reshape(n, w, h, NUM_ANCHORS, 2).reshape(n, -1, 2)

    rois = proposal_layer(rpn_locs[0], rpn_scores[0], anchors, img_size)
    return rpn_locs, rpn_scores, anchors, rois


# ------------------------- pure-JAX reference check --------------------------
def _heads_ref(x_nchw, params):
    n, cin, s0, s1 = x_nchw.shape
    x = jnp.transpose(x_nchw, (0, 2, 3, 1))
    xpad = jnp.pad(x, ((0, 0), (1, 1), (1, 1), (0, 0)))
    acc = jnp.zeros((n, s0, s1, MID_CHANNELS), jnp.float32)
    t = 0
    for dy in range(3):
        for dx in range(3):
            acc = acc + jnp.einsum("nhwc,cm->nhwm",
                                   xpad[:, dy:dy + s0, dx:dx + s1, :],
                                   params["w_conv"][t])
            t += 1
    hidden = jnp.maximum(acc + params["b_conv"][0], 0.0)
    locs = jnp.einsum("nhwm,mo->nhwo", hidden, params["w_reg"]) + params["b_reg"][0]
    scores = jnp.einsum("nhwm,mo->nhwo", hidden, params["w_cls"]) + params["b_cls"][0]
    return locs.reshape(n, -1, 4), scores.reshape(n, -1, 2)


if __name__ == "__main__":
    key = jax.random.PRNGKey(0)
    kx, kp = jax.random.split(key)

    n, c, s0, s1 = 2, IN_CHANNELS, 16, 16
    base_feature_map = jax.random.normal(kx, (n, c, s0, s1), jnp.float32)
    img_size = (s0 * FEATURE_STRIDE, s1 * FEATURE_STRIDE)
    params = init_params(kp)

    rpn_locs, rpn_scores, anchors, rois = rpn_forward(
        base_feature_map, img_size, params)
    jax.block_until_ready((rpn_locs, rpn_scores, anchors, rois))

    # shape / correctness checks against a pure-JAX f32 reference of the heads
    assert rpn_locs.shape == (n, s0 * s1 * NUM_ANCHORS, 4)
    assert rpn_scores.shape == (n, s0 * s1 * NUM_ANCHORS, 2)
    assert anchors.shape == (s0 * s1 * NUM_ANCHORS, 4)
    assert rois.shape == (POST_NMS_TOP_N, 4)
    ref_locs, ref_scores = _heads_ref(base_feature_map, params)
    # bf16 inputs/weights/output with f32 accumulation -> loosened tolerance
    assert jnp.allclose(rpn_locs, ref_locs, atol=3e-3, rtol=3e-2)
    assert jnp.allclose(rpn_scores, ref_scores, atol=3e-3, rtol=3e-2)

    print("KERNEL_OK")
</pallas_src>

<mosaic_0001>
module attributes {stable_mosaic.version = 11 : i64} {
  func.func @kernel(%arg0: i32, %arg1: memref<1x3x288x4xbf16, #tpu.memory_space<vmem>>, %arg2: memref<9x4x32xbf16, #tpu.memory_space<vmem>>, %arg3: memref<1x32xf32, #tpu.memory_space<vmem>>, %arg4: memref<32x128xbf16, #tpu.memory_space<vmem>>, %arg5: memref<1x128xf32, #tpu.memory_space<vmem>>, %arg6: memref<1x256x128xbf16, #tpu.memory_space<vmem>>) attributes {dimension_semantics = [#tpu.dimension_semantics<parallel>], iteration_bounds = array<i64: 2>, scalar_prefetch = 0 : i64, scratch_operands = 0 : i64, tpu.core_type = #tpu.core_type<tc>, window_params = [{transform_indices = @transform_0, window_bounds = array<i64: 1, 3, 288, 4>}, {pipeline_mode = #tpu.pipeline_mode<synchronous>, transform_indices = @transform_1, window_bounds = array<i64: 9, 4, 32>}, {pipeline_mode = #tpu.pipeline_mode<synchronous>, transform_indices = @transform_2, window_bounds = array<i64: 1, 32>}, {pipeline_mode = #tpu.pipeline_mode<synchronous>, transform_indices = @transform_3, window_bounds = array<i64: 32, 128>}, {pipeline_mode = #tpu.pipeline_mode<synchronous>, transform_indices = @transform_4, window_bounds = array<i64: 1, 128>}, {transform_indices = @transform_5, window_bounds = array<i64: 1, 256, 128>}]} {
    %cst = arith.constant 0.000000e+00 : f32
    %0 = vector.broadcast %cst : f32 to vector<256x32xf32>
    %c0 = arith.constant 0 : index
    %c0_0 = arith.constant 0 : index
    %c0_1 = arith.constant 0 : index
    %c0_2 = arith.constant 0 : index
    %1 = vector.load %arg1[%c0, %c0_0, %c0_1, %c0_2] : memref<1x3x288x4xbf16, #tpu.memory_space<vmem>>, vector<1x1x256x4xbf16>
    %2 = vector.shape_cast %1 : vector<1x1x256x4xbf16> to vector<256x4xbf16>
    %c0_3 = arith.constant 0 : index
    %c0_4 = arith.constant 0 : index
    %c0_5 = arith.constant 0 : index
    %3 = vector.load %arg2[%c0_3, %c0_4, %c0_5] : memref<9x4x32xbf16, #tpu.memory_space<vmem>>, vector<1x4x32xbf16>
    %4 = vector.shape_cast %3 : vector<1x4x32xbf16> to vector<4x32xbf16>
    %cst_6 = arith.constant dense<0.000000e+00> : vector<256x32xf32>
    %5 = tpu.matmul %2, %4, %cst_6 {dimension_numbers = #tpu.dot_dimension_numbers<[1], [0], [0], [1], [0, 0, 1, 1], [], []>} : vector<256x4xbf16>, vector<4x32xbf16>, vector<256x32xf32> -> vector<256x32xf32>
    %6 = arith.addf %0, %5 : vector<256x32xf32>
    %c0_7 = arith.constant 0 : index
    %c1 = arith.constant 1 : index
    %c0_8 = arith.constant 0 : index
    %c0_9 = arith.constant 0 : index
    %7 = vector.load %arg1[%c0_7, %c1, %c0_8, %c0_9] : memref<1x3x288x4xbf16, #tpu.memory_space<vmem>>, vector<1x1x256x4xbf16>
    %8 = vector.shape_cast %7 : vector<1x1x256x4xbf16> to vector<256x4xbf16>
    %c1_10 = arith.constant 1 : index
    %c0_11 = arith.constant 0 : index
    %c0_12 = arith.constant 0 : index
    %9 = vector.load %arg2[%c1_10, %c0_11, %c0_12] : memref<9x4x32xbf16, #tpu.memory_space<vmem>>, vector<1x4x32xbf16>
    %10 = vector.shape_cast %9 : vector<1x4x32xbf16> to vector<4x32xbf16>
    %cst_13 = arith.constant dense<0.000000e+00> : vector<256x32xf32>
    %11 = tpu.matmul %8, %10, %cst_13 {dimension_numbers = #tpu.dot_dimension_numbers<[1], [0], [0], [1], [0, 0, 1, 1], [], []>} : vector<256x4xbf16>, vector<4x32xbf16>, vector<256x32xf32> -> vector<256x32xf32>
    %12 = arith.addf %6, %11 : vector<256x32xf32>
    %c0_14 = arith.constant 0 : index
    %c2 = arith.constant 2 : index
    %c0_15 = arith.constant 0 : index
    %c0_16 = arith.constant 0 : index
    %13 = vector.load %arg1[%c0_14, %c2, %c0_15, %c0_16] : memref<1x3x288x4xbf16, #tpu.memory_space<vmem>>, vector<1x1x256x4xbf16>
    %14 = vector.shape_cast %13 : vector<1x1x256x4xbf16> to vector<256x4xbf16>
    %c2_17 = arith.constant 2 : index
    %c0_18 = arith.constant 0 : index
    %c0_19 = arith.constant 0 : index
    %15 = vector.load %arg2[%c2_17, %c0_18, %c0_19] : memref<9x4x32xbf16, #tpu.memory_space<vmem>>, vector<1x4x32xbf16>
    %16 = vector.shape_cast %15 : vector<1x4x32xbf16> to vector<4x32xbf16>
    %cst_20 = arith.constant dense<0.000000e+00> : vector<256x32xf32>
    %17 = tpu.matmul %14, %16, %cst_20 {dimension_numbers = #tpu.dot_dimension_numbers<[1], [0], [0], [1], [0, 0, 1, 1], [], []>} : vector<256x4xbf16>, vector<4x32xbf16>, vector<256x32xf32> -> vector<256x32xf32>
    %18 = arith.addf %12, %17 : vector<256x32xf32>
    %c0_21 = arith.constant 0 : index
    %c0_22 = arith.constant 0 : index
    %c16 = arith.constant 16 : index
    %c0_23 = arith.constant 0 : index
    %19 = vector.load %arg1[%c0_21, %c0_22, %c16, %c0_23] : memref<1x3x288x4xbf16, #tpu.memory_space<vmem>>, vector<1x1x256x4xbf16>
    %20 = vector.shape_cast %19 : vector<1x1x256x4xbf16> to vector<256x4xbf16>
    %c3 = arith.constant 3 : index
    %c0_24 = arith.constant 0 : index
    %c0_25 = arith.constant 0 : index
    %21 = vector.load %arg2[%c3, %c0_24, %c0_25] : memref<9x4x32xbf16, #tpu.memory_space<vmem>>, vector<1x4x32xbf16>
    %22 = vector.shape_cast %21 : vector<1x4x32xbf16> to vector<4x32xbf16>
    %cst_26 = arith.constant dense<0.000000e+00> : vector<256x32xf32>
    %23 = tpu.matmul %20, %22, %cst_26 {dimension_numbers = #tpu.dot_dimension_numbers<[1], [0], [0], [1], [0, 0, 1, 1], [], []>} : vector<256x4xbf16>, vector<4x32xbf16>, vector<256x32xf32> -> vector<256x32xf32>
    %24 = arith.addf %18, %23 : vector<256x32xf32>
    %c0_27 = arith.constant 0 : index
    %c1_28 = arith.constant 1 : index
    %c16_29 = arith.constant 16 : index
    %c0_30 = arith.constant 0 : index
    %25 = vector.load %arg1[%c0_27, %c1_28, %c16_29, %c0_30] : memref<1x3x288x4xbf16, #tpu.memory_space<vmem>>, vector<1x1x256x4xbf16>
    %26 = vector.shape_cast %25 : vector<1x1x256x4xbf16> to vector<256x4xbf16>
    %c4 = arith.constant 4 : index
    %c0_31 = arith.constant 0 : index
    %c0_32 = arith.constant 0 : index
    %27 = vector.load %arg2[%c4, %c0_31, %c0_32] : memref<9x4x32xbf16, #tpu.memory_space<vmem>>, vector<1x4x32xbf16>
    %28 = vector.shape_cast %27 : vector<1x4x32xbf16> to vector<4x32xbf16>
    %cst_33 = arith.constant dense<0.000000e+00> : vector<256x32xf32>
    %29 = tpu.matmul %26, %28, %cst_33 {dimension_numbers = #tpu.dot_dimension_numbers<[1], [0], [0], [1], [0, 0, 1, 1], [], []>} : vector<256x4xbf16>, vector<4x32xbf16>, vector<256x32xf32> -> vector<256x32xf32>
    %30 = arith.addf %24, %29 : vector<256x32xf32>
    %c0_34 = arith.constant 0 : index
    %c2_35 = arith.constant 2 : index
    %c16_36 = arith.constant 16 : index
    %c0_37 = arith.constant 0 : index
    %31 = vector.load %arg1[%c0_34, %c2_35, %c16_36, %c0_37] : memref<1x3x288x4xbf16, #tpu.memory_space<vmem>>, vector<1x1x256x4xbf16>
    %32 = vector.shape_cast %31 : vector<1x1x256x4xbf16> to vector<256x4xbf16>
    %c5 = arith.constant 5 : index
    %c0_38 = arith.constant 0 : index
    %c0_39 = arith.constant 0 : index
    %33 = vector.load %arg2[%c5, %c0_38, %c0_39] : memref<9x4x32xbf16, #tpu.memory_space<vmem>>, vector<1x4x32xbf16>
    %34 = vector.shape_cast %33 : vector<1x4x32xbf16> to vector<4x32xbf16>
    %cst_40 = arith.constant dense<0.000000e+00> : vector<256x32xf32>
    %35 = tpu.matmul %32, %34, %cst_40 {dimension_numbers = #tpu.dot_dimension_numbers<[1], [0], [0], [1], [0, 0, 1, 1], [], []>} : vector<256x4xbf16>, vector<4x32xbf16>, vector<256x32xf32> -> vector<256x32xf32>
    %36 = arith.addf %30, %35 : vector<256x32xf32>
    %c0_41 = arith.constant 0 : index
    %c0_42 = arith.constant 0 : index
    %c32 = arith.constant 32 : index
    %c0_43 = arith.constant 0 : index
    %37 = vector.load %arg1[%c0_41, %c0_42, %c32, %c0_43] : memref<1x3x288x4xbf16, #tpu.memory_space<vmem>>, vector<1x1x256x4xbf16>
    %38 = vector.shape_cast %37 : vector<1x1x256x4xbf16> to vector<256x4xbf16>
    %c6 = arith.constant 6 : index
    %c0_44 = arith.constant 0 : index
    %c0_45 = arith.constant 0 : index
    %39 = vector.load %arg2[%c6, %c0_44, %c0_45] : memref<9x4x32xbf16, #tpu.memory_space<vmem>>, vector<1x4x32xbf16>
    %40 = vector.shape_cast %39 : vector<1x4x32xbf16> to vector<4x32xbf16>
    %cst_46 = arith.constant dense<0.000000e+00> : vector<256x32xf32>
    %41 = tpu.matmul %38, %40, %cst_46 {dimension_numbers = #tpu.dot_dimension_numbers<[1], [0], [0], [1], [0, 0, 1, 1], [], []>} : vector<256x4xbf16>, vector<4x32xbf16>, vector<256x32xf32> -> vector<256x32xf32>
    %42 = arith.addf %36, %41 : vector<256x32xf32>
    %c0_47 = arith.constant 0 : index
    %c1_48 = arith.constant 1 : index
    %c32_49 = arith.constant 32 : index
    %c0_50 = arith.constant 0 : index
    %43 = vector.load %arg1[%c0_47, %c1_48, %c32_49, %c0_50] : memref<1x3x288x4xbf16, #tpu.memory_space<vmem>>, vector<1x1x256x4xbf16>
    %44 = vector.shape_cast %43 : vector<1x1x256x4xbf16> to vector<256x4xbf16>
    %c7 = arith.constant 7 : index
    %c0_51 = arith.constant 0 : index
    %c0_52 = arith.constant 0 : index
    %45 = vector.load %arg2[%c7, %c0_51, %c0_52] : memref<9x4x32xbf16, #tpu.memory_space<vmem>>, vector<1x4x32xbf16>
    %46 = vector.shape_cast %45 : vector<1x4x32xbf16> to vector<4x32xbf16>
    %cst_53 = arith.constant dense<0.000000e+00> : vector<256x32xf32>
    %47 = tpu.matmul %44, %46, %cst_53 {dimension_numbers = #tpu.dot_dimension_numbers<[1], [0], [0], [1], [0, 0, 1, 1], [], []>} : vector<256x4xbf16>, vector<4x32xbf16>, vector<256x32xf32> -> vector<256x32xf32>
    %48 = arith.addf %42, %47 : vector<256x32xf32>
    %c0_54 = arith.constant 0 : index
    %c2_55 = arith.constant 2 : index
    %c32_56 = arith.constant 32 : index
    %c0_57 = arith.constant 0 : index
    %49 = vector.load %arg1[%c0_54, %c2_55, %c32_56, %c0_57] : memref<1x3x288x4xbf16, #tpu.memory_space<vmem>>, vector<1x1x256x4xbf16>
    %50 = vector.shape_cast %49 : vector<1x1x256x4xbf16> to vector<256x4xbf16>
    %c8 = arith.constant 8 : index
    %c0_58 = arith.constant 0 : index
    %c0_59 = arith.constant 0 : index
    %51 = vector.load %arg2[%c8, %c0_58, %c0_59] : memref<9x4x32xbf16, #tpu.memory_space<vmem>>, vector<1x4x32xbf16>
    %52 = vector.shape_cast %51 : vector<1x4x32xbf16> to vector<4x32xbf16>
    %cst_60 = arith.constant dense<0.000000e+00> : vector<256x32xf32>
    %53 = tpu.matmul %50, %52, %cst_60 {dimension_numbers = #tpu.dot_dimension_numbers<[1], [0], [0], [1], [0, 0, 1, 1], [], []>} : vector<256x4xbf16>, vector<4x32xbf16>, vector<256x32xf32> -> vector<256x32xf32>
    %54 = arith.addf %48, %53 : vector<256x32xf32>
    %c0_61 = arith.constant 0 : index
    %c0_62 = arith.constant 0 : index
    %55 = vector.load %arg3[%c0_61, %c0_62] : memref<1x32xf32, #tpu.memory_space<vmem>>, vector<1x32xf32>
    %56 = vector.broadcast %55 : vector<1x32xf32> to vector<256x32xf32>
    %57 = arith.addf %54, %56 : vector<256x32xf32>
    %cst_63 = arith.constant 0.000000e+00 : f32
    %58 = vector.broadcast %cst_63 : f32 to vector<256x32xf32>
    %59 = arith.maximumf %57, %58 : vector<256x32xf32>
    %60 = arith.truncf %59 : vector<256x32xf32> to vector<256x32xbf16>
    %c0_64 = arith.constant 0 : index
    %c0_65 = arith.constant 0 : index
    %61 = vector.load %arg4[%c0_64, %c0_65] : memref<32x128xbf16, #tpu.memory_space<vmem>>, vector<32x128xbf16>
    %cst_66 = arith.constant dense<0.000000e+00> : vector<256x128xf32>
    %62 = tpu.matmul %60, %61, %cst_66 {dimension_numbers = #tpu.dot_dimension_numbers<[1], [0], [0], [1], [0, 0, 1, 1], [], []>} : vector<256x32xbf16>, vector<32x128xbf16>, vector<256x128xf32> -> vector<256x128xf32>
    %c0_67 = arith.constant 0 : index
    %c0_68 = arith.constant 0 : index
    %63 = vector.load %arg5[%c0_67, %c0_68] : memref<1x128xf32, #tpu.memory_space<vmem>>, vector<1x128xf32>
    %64 = vector.broadcast %63 : vector<1x128xf32> to vector<256x128xf32>
    %65 = arith.addf %62, %64 : vector<256x128xf32>
    %66 = arith.truncf %65 : vector<256x128xf32> to vector<256x128xbf16>
    %c0_69 = arith.constant 0 : index
    %c0_70 = arith.constant 0 : index
    %c0_71 = arith.constant 0 : index
    %67 = vector.load %arg6[%c0_69, %c0_70, %c0_71] : memref<1x256x128xbf16, #tpu.memory_space<vmem>>, vector<1x256x128xbf16>
    %68 = vector.shape_cast %67 : vector<1x256x128xbf16> to vector<256x128xbf16>
    %69 = vector.shape_cast %66 : vector<256x128xbf16> to vector<1x256x128xbf16>
    tpu.vector_store %arg6[%c0_69, %c0_70, %c0_71], %69 {strides = array<i32>} : memref<1x256x128xbf16, #tpu.memory_space<vmem>>, vector<1x256x128xbf16>,
    return
  }
  func.func @transform_0(%arg0: i32) -> (i32, i32, i32, i32) {
    %c0_i32 = arith.constant 0 : i32
    %c0_i32_0 = arith.constant 0 : i32
    %c0_i32_1 = arith.constant 0 : i32
    %c0_i32_2 = arith.constant 0 : i32
    return %arg0, %c0_i32, %c0_i32_0, %c0_i32_1 : i32, i32, i32, i32
  }
  func.func @transform_1(%arg0: i32) -> (i32, i32, i32) {
    %c0_i32 = arith.constant 0 : i32
    %c0_i32_0 = arith.constant 0 : i32
    %c0_i32_1 = arith.constant 0 : i32
    %c0_i32_2 = arith.constant 0 : i32
    return %c0_i32, %c0_i32_0, %c0_i32_1 : i32, i32, i32
  }
  func.func @transform_2(%arg0: i32) -> (i32, i32) {
    %c0_i32 = arith.constant 0 : i32
    %c0_i32_0 = arith.constant 0 : i32
    %c0_i32_1 = arith.constant 0 : i32
    return %c0_i32, %c0_i32_0 : i32, i32
  }
  func.func @transform_3(%arg0: i32) -> (i32, i32) {
    %c0_i32 = arith.constant 0 : i32
    %c0_i32_0 = arith.constant 0 : i32
    %c0_i32_1 = arith.constant 0 : i32
    return %c0_i32, %c0_i32_0 : i32, i32
  }
  func.func @transform_4(%arg0: i32) -> (i32, i32) {
    %c0_i32 = arith.constant 0 : i32
    %c0_i32_0 = arith.constant 0 : i32
    %c0_i32_1 = arith.constant 0 : i32
    return %c0_i32, %c0_i32_0 : i32, i32
  }
  func.func @transform_5(%arg0: i32) -> (i32, i32, i32) {
    %c0_i32 = arith.constant 0 : i32
    %c0_i32_0 = arith.constant 0 : i32
    %c0_i32_1 = arith.constant 0 : i32
    return %arg0, %c0_i32, %c0_i32_0 : i32, i32, i32
  }
}

</mosaic_0001>

<llo_original>
// kernel: tpu_custom_call.1
$region0: #{tpu_custom_call.1}
  #allocation0 [shape = 'u32[]', space=smem, size = 0x4, offset = 0x4, fixed_abs, tag = 'smem constant byte address 0x4 - core index']
  #allocation1 [shape = 'u32[144,128]{1,0:T(1,128)}', space=vmem, size = 0x12000, scoped, tag = 'internal scratch']
  %s0 = inlined_call_operand.vmem [shape: bf16[2,3,288,4], index: 0, kind: input, shape index: {}]
  %s1 = inlined_call_operand.vmem [shape: bf16[9,4,32], index: 1, kind: input, shape index: {}]
  %s2 = inlined_call_operand.vmem [shape: f32[1,32], index: 2, kind: input, shape index: {}]
  %s3 = inlined_call_operand.vmem [shape: bf16[32,128], index: 3, kind: input, shape index: {}]
  %s4 = inlined_call_operand.vmem [shape: f32[1,128], index: 4, kind: input, shape index: {}]
  %s5 = inlined_call_operand.hbm [shape: bf16[2,256,128], index: 5, kind: output, shape index: {}]
  %s6 = sld [smem:[#allocation0]]
  $region53: #{tpu_custom_call.1} parent=0
    _
  %s8 = ssub.s32 1, %s6
  %s9 = scalar_select 0, %s8, %s6
  $region1: #{tpu_custom_call.1} parent=0
    #allocation2 [shape = 'u8[131072]{0}', space=vmem, size = 0x20000, scoped, tag = 'output window, operand 0']
    #allocation3 [shape = 's32[2]{0}', space=sflag, size = 0x8, scoped, tag = 'scoped memory for tpu_custom_call.1']
    %10 = vsyncpa [#allocation3], 0
    %s11 = scalar_lea.sflag [#allocation3], 1
    %12 = vsyncpa %s11, 0
    loop: start=0, step=1, limit=4
    $region2: #{tpu_custom_call.1} parent=1 // loop_pre_header
      _
    $region3: #{tpu_custom_call.1} parent=1 // loop_header
      %s14 = sphi 0, %s18
      %p15 = scmp.ge.s32.totalorder %s14, 4
      %s24 = sphi 0, %s26
      %s27 = sphi 0, %s24
      %s28 = sphi 0, %s27
      %s44 = sphi 0, %s28
      %s48 = sphi 0, %s48
      %s50 = sphi 0, %s48
      %s51 = sphi 0, %s50
      %s65 = sphi 0, %s51
      %s69 = sphi 0, %s69
      %s71 = sphi 0, %s69
      %s72 = sphi 0, %s71
      %s86 = sphi 0, %s72
      %s90 = sphi 0, %s90
      %s92 = sphi 0, %s90
      %s93 = sphi 0, %s92
      %s107 = sphi 0, %s93
      %s111 = sphi 0, %s111
      %s113 = sphi 0, %s111
      %s114 = sphi 0, %s113
      %s128 = sphi 0, %s114
      %s134 = sphi 0, %s136
      %s137 = sphi 0, %s134
      %s138 = sphi 0, %s137
      %s154 = sphi 0, %s138
    $region4: #{tpu_custom_call.1} parent=1 // loop_header_branch
      %17 = sbr.rel (%p15) target = $region8
    $region5: #{tpu_custom_call.1} parent=1 // loop_body
      %s19 = ssub.s32 %s14, 1
      %s20 = ssub.s32 %s14, 2
      %s21 = sadd.s32 %s14, 1
      %s22 = ssub.s32 %s14, %s21
      %p23 = scmp.eq.s32.totalorder %s22, 0
      %s25 = sadd.s32 %s24, 1
      %s26 = scalar_select %p23, %s24, %s25
      %p29 = pneg %p23
      %p30 = scmp.eq.s32.totalorder %s14, 1
      %p31 = por %p29, %p30
      %p32 = scmp.ne.s32.totalorder %s24, %s27
      %p33 = scmp.eq.s32.totalorder %s14, 0
      %p34 = por %p32, %p33
      %p35 = scmp.ne.s32.totalorder %s24, %s27
      %p36 = scmp.eq.s32.totalorder %s19, 1
      %p37 = por %p35, %p36
      %p38 = scmp.ne.s32.totalorder %s27, %s28
      %p39 = scmp.eq.s32.totalorder %s19, 0
      %p40 = por %p38, %p39
      %p41 = scmp.ne.s32.totalorder %s27, %s28
      %p42 = scmp.eq.s32.totalorder %s20, 1
      %p43 = por %p41, %p42
      %p45 = scmp.ne.s32.totalorder %s28, %s44
      %p46 = scmp.eq.s32.totalorder %s20, 0
      %p47 = por %p45, %p46
      %s49 = sadd.s32 %s48, 1
      %p52 = scmp.eq.s32.totalorder %s14, 1
      %p53 = scmp.ne.s32.totalorder %s48, %s50
      %p54 = scmp.eq.s32.totalorder %s14, 0
      %p55 = por %p53, %p54
      %p56 = scmp.ne.s32.totalorder %s48, %s50
      %p57 = scmp.eq.s32.totalorder %s19, 1
      %p58 = por %p56, %p57
      %p59 = scmp.ne.s32.totalorder %s50, %s51
      %p60 = scmp.eq.s32.totalorder %s19, 0
      %p61 = por %p59, %p60
      %p62 = scmp.ne.s32.totalorder %s50, %s51
      %p63 = scmp.eq.s32.totalorder %s20, 1
      %p64 = por %p62, %p63
      %p66 = scmp.ne.s32.totalorder %s51, %s65
      %p67 = scmp.eq.s32.totalorder %s20, 0
      %p68 = por %p66, %p67
      %s70 = sadd.s32 %s69, 1
      %p73 = scmp.eq.s32.totalorder %s14, 1
      %p74 = scmp.ne.s32.totalorder %s69, %s71
      %p75 = scmp.eq.s32.totalorder %s14, 0
      %p76 = por %p74, %p75
      %p77 = scmp.ne.s32.totalorder %s69, %s71
      %p78 = scmp.eq.s32.totalorder %s19, 1
      %p79 = por %p77, %p78
      %p80 = scmp.ne.s32.totalorder %s71, %s72
      %p81 = scmp.eq.s32.totalorder %s19, 0
      %p82 = por %p80, %p81
      %p83 = scmp.ne.s32.totalorder %s71, %s72
      %p84 = scmp.eq.s32.totalorder %s20, 1
      %p85 = por %p83, %p84
      %p87 = scmp.ne.s32.totalorder %s72, %s86
      %p88 = scmp.eq.s32.totalorder %s20, 0
      %p89 = por %p87, %p88
      %s91 = sadd.s32 %s90, 1
      %p94 = scmp.eq.s32.totalorder %s14, 1
      %p95 = scmp.ne.s32.totalorder %s90, %s92
      %p96 = scmp.eq.s32.totalorder %s14, 0
      %p97 = por %p95, %p96
      %p98 = scmp.ne.s32.totalorder %s90, %s92
      %p99 = scmp.eq.s32.totalorder %s19, 1
      %p100 = por %p98, %p99
      %p101 = scmp.ne.s32.totalorder %s92, %s93
      %p102 = scmp.eq.s32.totalorder %s19, 0
      %p103 = por %p101, %p102
      %p104 = scmp.ne.s32.totalorder %s92, %s93
      %p105 = scmp.eq.s32.totalorder %s20, 1
      %p106 = por %p104, %p105
      %p108 = scmp.ne.s32.totalorder %s93, %s107
      %p109 = scmp.eq.s32.totalorder %s20, 0
      %p110 = por %p108, %p109
      %s112 = sadd.s32 %s111, 1
      %p115 = scmp.eq.s32.totalorder %s14, 1
      %p116 = scmp.ne.s32.totalorder %s111, %s113
      %p117 = scmp.eq.s32.totalorder %s14, 0
      %p118 = por %p116, %p117
      %p119 = scmp.ne.s32.totalorder %s111, %s113
      %p120 = scmp.eq.s32.totalorder %s19, 1
      %p121 = por %p119, %p120
      %p122 = scmp.ne.s32.totalorder %s113, %s114
      %p123 = scmp.eq.s32.totalorder %s19, 0
      %p124 = por %p122, %p123
      %p125 = scmp.ne.s32.totalorder %s113, %s114
      %p126 = scmp.eq.s32.totalorder %s20, 1
      %p127 = por %p125, %p126
      %p129 = scmp.ne.s32.totalorder %s114, %s128
      %p130 = scmp.eq.s32.totalorder %s20, 0
      %p131 = por %p129, %p130
      %s132 = ssub.s32 %s14, %s21
      %p133 = scmp.eq.s32.totalorder %s132, 0
      %s135 = sadd.s32 %s134, 1
      %s136 = scalar_select %p133, %s134, %s135
      %p139 = pneg %p133
      %p140 = scmp.eq.s32.totalorder %s14, 1
      %p141 = por %p139, %p140
      %p142 = scmp.ne.s32.totalorder %s134, %s137
      %p143 = scmp.eq.s32.totalorder %s14, 0
      %p144 = por %p142, %p143
      %p145 = scmp.ne.s32.totalorder %s134, %s137
      %p146 = scmp.eq.s32.totalorder %s19, 1
      %p147 = por %p145, %p146
      %p148 = scmp.ne.s32.totalorder %s137, %s138
      %p149 = scmp.eq.s32.totalorder %s19, 0
      %p150 = por %p148, %p149
      %p151 = scmp.ne.s32.totalorder %s137, %s138
      %p152 = scmp.eq.s32.totalorder %s20, 1
      %p153 = por %p151, %p152
      %p155 = scmp.ne.s32.totalorder %s138, %s154
      %p156 = scmp.eq.s32.totalorder %s20, 0
      %p157 = por %p155, %p156
      %p158 = scmp.le.s32.totalorder 1, %s14
      %p159 = scmp.lt.s32.totalorder %s14, 3
      %p160 = pnand %p158, %p159
      %p161 = pneg %p160
      // Predicated region
      $region9: #{tpu_custom_call.1} parent=5 // pred_check
        _
      $region10: #{tpu_custom_call.1} parent=5 // pred_check_branch
        %163 = sbr.rel (%p160) target = $region12
      $region11: #{tpu_custom_call.1} parent=5 // pred_region
        %s164 = ssub.s32 %s14, 1
        // Predicated region
        $region13: #{tpu_custom_call.1} parent=11 // pred_check
          %p165 = pneg %p61
        $region14: #{tpu_custom_call.1} parent=11 // pred_check_branch
          %167 = sbr.rel (%p165) target = $region16
        $region15: #{tpu_custom_call.1} parent=11 // pred_region
          _
        $region16: #{tpu_custom_call.1} parent=11 // pred_fallthru
          _
        // Predicated region
        $region17: #{tpu_custom_call.1} parent=11 // pred_check
          %p168 = pneg %p82
        $region18: #{tpu_custom_call.1} parent=11 // pred_check_branch
          %170 = sbr.rel (%p168) target = $region20
        $region19: #{tpu_custom_call.1} parent=11 // pred_region
          _
        $region20: #{tpu_custom_call.1} parent=11 // pred_fallthru
          _
        // Predicated region
        $region21: #{tpu_custom_call.1} parent=11 // pred_check
          %p171 = pneg %p103
        $region22: #{tpu_custom_call.1} parent=11 // pred_check_branch
          %173 = sbr.rel (%p171) target = $region24
        $region23: #{tpu_custom_call.1} parent=11 // pred_region
          _
        $region24: #{tpu_custom_call.1} parent=11 // pred_fallthru
          _
        // Predicated region
        $region25: #{tpu_custom_call.1} parent=11 // pred_check
          %p174 = pneg %p124
        $region26: #{tpu_custom_call.1} parent=11 // pred_check_branch
          %176 = sbr.rel (%p174) target = $region28
        $region27: #{tpu_custom_call.1} parent=11 // pred_region
          _
        $region28: #{tpu_custom_call.1} parent=11 // pred_fallthru
          _
      $region12: #{tpu_custom_call.1} parent=5 // pred_fallthru
        _
      %p177 = scmp.lt.s32.totalorder %s14, 2
      // Predicated region
      $region29: #{tpu_custom_call.1} parent=5 // pred_check
        %p178 = pneg %p177
      $region30: #{tpu_custom_call.1} parent=5 // pred_check_branch
        %180 = sbr.rel (%p178) target = $region32
      $region31: #{tpu_custom_call.1} parent=5 // pred_region
        // Predicated region
        $region33: #{tpu_custom_call.1} parent=31 // pred_check
          %p181 = pneg %p34
        $region34: #{tpu_custom_call.1} parent=31 // pred_check_branch
          %183 = sbr.rel (%p181) target = $region36
        $region35: #{tpu_custom_call.1} parent=31 // pred_region
          %p184 = scmp.lt.s32.totalorder %s14, 1
          %s185 = scalar_select %p184, %s14, 1
          %s186 = smul.addr %s185, 108
          %s187 = smul.addr %s186, 4
          %s188 = scalar_lea.vmem %s0, %s187
        $region36: #{tpu_custom_call.1} parent=31 // pred_fallthru
          _
      $region32: #{tpu_custom_call.1} parent=5 // pred_fallthru
        _
      %p189 = scmp.le.s32.totalorder 1, %s14
      %p190 = scmp.lt.s32.totalorder %s14, 3
      %p191 = pnand %p189, %p190
      %p192 = pneg %p191
      // Predicated region
      $region37: #{tpu_custom_call.1} parent=5 // pred_check
        _
      $region38: #{tpu_custom_call.1} parent=5 // pred_check_branch
        %194 = sbr.rel (%p191) target = $region40
      $region39: #{tpu_custom_call.1} parent=5 // pred_region
        %s195 = ssub.s32 %s14, 1
        %p196 = scmp.lt.s32.totalorder %s19, 1
        %s197 = scalar_select %p196, %s19, 1
        %s198 = smul.addr %s197, 108
        %s199 = smul.addr %s198, 4
        %s200 = scalar_lea.vmem %s0, %s199
        %p201 = pneg %p40
        %p202 = pneg %p37
        %p203 = pneg %p61
        %p204 = pneg %p58
        %p205 = pneg %p82
        %p206 = pneg %p79
        %p207 = pneg %p103
        %p208 = pneg %p100
        %p209 = pneg %p124
        %p210 = pneg %p121
        %p211 = pneg %p150
        %p212 = pneg %p147
        %s213 = sand.u32 %s137, 1
        %s214 = scalar_lea.sflag [#allocation3], %s213
        %s215 = sand.u32 %s137, 1
        %s216 = smul.addr %s215, 128
        %s217 = scalar_lea.vmem [#allocation2], %s216
        %p218 = scmp.lt.s32.totalorder %s19, 1
        %s219 = scalar_select %p218, %s19, 1
        %s220 = smul.addr %s219, 108
        %s221 = smul.addr %s220, 4
        %s222 = scalar_lea.vmem %s0, %s221
        %v224 = vld [vmem:[%s222] sm:$0xf]
        %v225 = vld [vmem:[%s222 + $0x4] sm:$0xf]
        %v226 = vld [vmem:[%s222 + $0x8] sm:$0xf]
        %v227 = vld [vmem:[%s222 + $0xc] sm:$0xf]
        %v228 = vld [vmem:[%s222 + $0x10] sm:$0xf]
        %v229 = vld [vmem:[%s222 + $0x14] sm:$0xf]
        %v230 = vld [vmem:[%s222 + $0x18] sm:$0xf]
        %v231 = vld [vmem:[%s222 + $0x1c] sm:$0xf]
        %v232 = vld [vmem:[%s222 + $0x20] sm:$0xf]
        %v233 = vld [vmem:[%s222 + $0x24] sm:$0xf]
        %v234 = vld [vmem:[%s222 + $0x28] sm:$0xf]
        %v235 = vld [vmem:[%s222 + $0x2c] sm:$0xf]
        %v236 = vld [vmem:[%s222 + $0x30] sm:$0xf]
        %v237 = vld [vmem:[%s222 + $0x34] sm:$0xf]
        %v238 = vld [vmem:[%s222 + $0x38] sm:$0xf]
        %v239 = vld [vmem:[%s222 + $0x3c] sm:$0xf]
        %v240 = vld [vmem:[%s222 + $0x40] sm:$0xf]
        %v241 = vld [vmem:[%s222 + $0x44] sm:$0xf]
        %v242 = vld [vmem:[%s222 + $0x48] sm:$0xf]
        %v243 = vld [vmem:[%s222 + $0x4c] sm:$0xf]
        %v244 = vld [vmem:[%s222 + $0x50] sm:$0xf]
        %v245 = vld [vmem:[%s222 + $0x54] sm:$0xf]
        %v246 = vld [vmem:[%s222 + $0x58] sm:$0xf]
        %v247 = vld [vmem:[%s222 + $0x5c] sm:$0xf]
        %v248 = vld [vmem:[%s222 + $0x60] sm:$0xf]
        %v249 = vld [vmem:[%s222 + $0x64] sm:$0xf]
        %v250 = vld [vmem:[%s222 + $0x68] sm:$0xf]
        %v251 = vld [vmem:[%s222 + $0x6c] sm:$0xf]
        %v252 = vld [vmem:[%s222 + $0x70] sm:$0xf]
        %v253 = vld [vmem:[%s222 + $0x74] sm:$0xf]
        %v254 = vld [vmem:[%s222 + $0x78] sm:$0xf]
        %v255 = vld [vmem:[%s222 + $0x7c] sm:$0xf]
        %v256 = vld [vmem:[%s1] sm:$0x3]
        %s257 = scalar_lea.vmem %s222, 144
        %v258 = vld [vmem:[%s257] sm:$0xf]
        %v259 = vld [vmem:[%s257 + $0x4] sm:$0xf]
        %v260 = vld [vmem:[%s257 + $0x8] sm:$0xf]
        %v261 = vld [vmem:[%s257 + $0xc] sm:$0xf]
        %v262 = vld [vmem:[%s257 + $0x10] sm:$0xf]
        %v263 = vld [vmem:[%s257 + $0x14] sm:$0xf]
        %v264 = vld [vmem:[%s257 + $0x18] sm:$0xf]
        %v265 = vld [vmem:[%s257 + $0x1c] sm:$0xf]
        %v266 = vld [vmem:[%s257 + $0x20] sm:$0xf]
        %v267 = vld [vmem:[%s257 + $0x24] sm:$0xf]
        %v268 = vld [vmem:[%s257 + $0x28] sm:$0xf]
        %v269 = vld [vmem:[%s257 + $0x2c] sm:$0xf]
        %v270 = vld [vmem:[%s257 + $0x30] sm:$0xf]
        %v271 = vld [vmem:[%s257 + $0x34] sm:$0xf]
        %v272 = vld [vmem:[%s257 + $0x38] sm:$0xf]
        %v273 = vld [vmem:[%s257 + $0x3c] sm:$0xf]
        %v274 = vld [vmem:[%s257 + $0x40] sm:$0xf]
        %v275 = vld [vmem:[%s257 + $0x44] sm:$0xf]
        %v276 = vld [vmem:[%s257 + $0x48] sm:$0xf]
        %v277 = vld [vmem:[%s257 + $0x4c] sm:$0xf]
        %v278 = vld [vmem:[%s257 + $0x50] sm:$0xf]
        %v279 = vld [vmem:[%s257 + $0x54] sm:$0xf]
        %v280 = vld [vmem:[%s257 + $0x58] sm:$0xf]
        %v281 = vld [vmem:[%s257 + $0x5c] sm:$0xf]
        %v282 = vld [vmem:[%s257 + $0x60] sm:$0xf]
        %v283 = vld [vmem:[%s257 + $0x64] sm:$0xf]
        %v284 = vld [vmem:[%s257 + $0x68] sm:$0xf]
        %v285 = vld [vmem:[%s257 + $0x6c] sm:$0xf]
        %v286 = vld [vmem:[%s257 + $0x70] sm:$0xf]
        %v287 = vld [vmem:[%s257 + $0x74] sm:$0xf]
        %v288 = vld [vmem:[%s257 + $0x78] sm:$0xf]
        %v289 = vld [vmem:[%s257 + $0x7c] sm:$0xf]
        %s290 = scalar_lea.vmem %s1, 2
        %v291 = vld [vmem:[%s290] sm:$0x3]
        %v324 = vunpack.c.l.b16 %v258
        %v325 = vunpack.c.l.b16 %v259
        %v326 = vunpack.c.l.b16 %v260
        %v327 = vunpack.c.l.b16 %v261
        %v328 = vunpack.c.l.b16 %v262
        %v329 = vunpack.c.l.b16 %v263
        %v330 = vunpack.c.l.b16 %v264
        %v331 = vunpack.c.l.b16 %v265
        %v332 = vunpack.c.l.b16 %v266
        %v333 = vunpack.c.l.b16 %v267
        %v334 = vunpack.c.l.b16 %v268
        %v335 = vunpack.c.l.b16 %v269
        %v336 = vunpack.c.l.b16 %v270
        %v337 = vunpack.c.l.b16 %v271
        %v338 = vunpack.c.l.b16 %v272
        %v339 = vunpack.c.l.b16 %v273
        %v340 = vunpack.c.l.b16 %v274
        %v341 = vunpack.c.l.b16 %v275
        %v342 = vunpack.c.l.b16 %v276
        %v343 = vunpack.c.l.b16 %v277
        %v344 = vunpack.c.l.b16 %v278
        %v345 = vunpack.c.l.b16 %v279
        %v346 = vunpack.c.l.b16 %v280
        %v347 = vunpack.c.l.b16 %v281
        %v348 = vunpack.c.l.b16 %v282
        %v349 = vunpack.c.l.b16 %v283
        %v350 = vunpack.c.l.b16 %v284
        %v351 = vunpack.c.l.b16 %v285
        %v352 = vunpack.c.l.b16 %v286
        %v353 = vunpack.c.l.b16 %v287
        %v354 = vunpack.c.l.b16 %v288
        %v355 = vunpack.c.l.b16 %v289
        %v356 = vpack.c.b16 %v325, %v324
        %v357 = vpack.c.b16 %v327, %v326
        %v358 = vpack.c.b16 %v329, %v328
        %v359 = vpack.c.b16 %v331, %v330
        %v360 = vpack.c.b16 %v333, %v332
        %v361 = vpack.c.b16 %v335, %v334
        %v362 = vpack.c.b16 %v337, %v336
        %v363 = vpack.c.b16 %v339, %v338
        %v364 = vpack.c.b16 %v341, %v340
        %v365 = vpack.c.b16 %v343, %v342
        %v366 = vpack.c.b16 %v345, %v344
        %v367 = vpack.c.b16 %v347, %v346
        %v368 = vpack.c.b16 %v349, %v348
        %v369 = vpack.c.b16 %v351, %v350
        %v370 = vpack.c.b16 %v353, %v352
        %v371 = vpack.c.b16 %v355, %v354
        %vm372 = vcmask 31744
        %v374 = vsel %vm372, %v356, 0
        %v377 = vsel %vm372, %v357, 0
        %v380 = vsel %vm372, %v358, 0
        %v383 = vsel %vm372, %v359, 0
        %v386 = vsel %vm372, %v360, 0
        %v389 = vsel %vm372, %v361, 0
        %v392 = vsel %vm372, %v362, 0
        %v395 = vsel %vm372, %v363, 0
        %v398 = vsel %vm372, %v364, 0
        %v401 = vsel %vm372, %v365, 0
        %v404 = vsel %vm372, %v366, 0
        %v407 = vsel %vm372, %v367, 0
        %v410 = vsel %vm372, %v368, 0
        %v413 = vsel %vm372, %v369, 0
        %v416 = vsel %vm372, %v370, 0
        %v419 = vsel %vm372, %v371, 0
        %vm421 = vcmask 1041408
        %v423 = vsel %vm421, %v291, 0
        %425 = vmatprep.subr.bf16.mxu0 0
        %426 = vmatpush1.bf16.msra.mxu0 %v423
        %427 = vmatprep.subr.bf16.mxu0 0
        %428 = vmatpush1.bf16.msra.mxu0 0
        %429 = vmatprep.subr.bf16.mxu0 0
        %430 = vmatpush1.bf16.msra.mxu0 0
        %431 = vmatprep.subr.bf16.mxu0 0
        %432 = vmatpush1.bf16.msra.mxu0 0
        %433 = vmatprep.subr.bf16.mxu0 0
        %434 = vmatpush1.bf16.msra.mxu0 0
        %435 = vmatprep.subr.bf16.mxu0 0
        %436 = vmatpush1.bf16.msra.mxu0 0
        %437 = vmatprep.subr.bf16.mxu0 0
        %438 = vmatpush1.bf16.msra.mxu0 0
        %439 = vmatprep.subr.bf16.mxu0 0
        %440 = vmatpush1.bf16.msra.mxu0 0
        %441 = vmatprep.subr.bf16.mxu0 0
        %442 = vmatpush1.bf16.msra.mxu0 0
        %443 = vmatprep.subr.bf16.mxu0 0
        %444 = vmatpush1.bf16.msra.mxu0 0
        %445 = vmatprep.subr.bf16.mxu0 0
        %446 = vmatpush1.bf16.msra.mxu0 0
        %447 = vmatprep.subr.bf16.mxu0 0
        %448 = vmatpush1.bf16.msra.mxu0 0
        %449 = vmatprep.subr.bf16.mxu0 0
        %450 = vmatpush1.bf16.msra.mxu0 0
        %451 = vmatprep.subr.bf16.mxu0 0
        %452 = vmatpush1.bf16.msra.mxu0 0
        %453 = vmatprep.subr.bf16.mxu0 0
        %454 = vmatpush1.bf16.msra.mxu0 0
        %455 = vmatprep.subr.bf16.mxu0 0
        %456 = vmatpush1.bf16.msra.mxu0 0
        %457 = vmatprep.mubr.bf16.mxu0 0
        %458 = vmatmul.mubr.bf16.gmra.mrb[0].mxu0 %v374
        %v459 = vpop.f32.mrb[0].mxu0
        %v460 = vadd.f32 0.0, %v459
        %v461 = vpop.f32.mrb[0].mxu0
        %v462 = vpop.f32.mrb[0].mxu0
        %v463 = vadd.f32 0.0, %v462
        %v464 = vpop.f32.mrb[0].mxu0
        %465 = vmatprep.mubr.bf16.mxu0 0
        %466 = vmatmul.mubr.bf16.gmra.mrb[0].mxu0 %v377
        %v467 = vpop.f32.mrb[0].mxu0
        %v468 = vadd.f32 0.0, %v467
        %v469 = vpop.f32.mrb[0].mxu0
        %v470 = vpop.f32.mrb[0].mxu0
        %v471 = vadd.f32 0.0, %v470
        %v472 = vpop.f32.mrb[0].mxu0
        %473 = vmatprep.mubr.bf16.mxu0 0
        %474 = vmatmul.mubr.bf16.gmra.mrb[0].mxu0 %v380
        %v475 = vpop.f32.mrb[0].mxu0
        %v476 = vadd.f32 0.0, %v475
        %v477 = vpop.f32.mrb[0].mxu0
        %v478 = vpop.f32.mrb[0].mxu0
        %v479 = vadd.f32 0.0, %v478
        %v480 = vpop.f32.mrb[0].mxu0
        %481 = vmatprep.mubr.bf16.mxu0 0
        %482 = vmatmul.mubr.bf16.gmra.mrb[0].mxu0 %v383
        %v483 = vpop.f32.mrb[0].mxu0
        %v484 = vadd.f32 0.0, %v483
        %v485 = vpop.f32.mrb[0].mxu0
        %v486 = vpop.f32.mrb[0].mxu0
        %v487 = vadd.f32 0.0, %v486
        %v488 = vpop.f32.mrb[0].mxu0
        %489 = vmatprep.mubr.bf16.mxu0 0
        %490 = vmatmul.mubr.bf16.gmra.mrb[0].mxu0 %v386
        %v491 = vpop.f32.mrb[0].mxu0
        %v492 = vadd.f32 0.0, %v491
        %v493 = vpop.f32.mrb[0].mxu0
        %v494 = vpop.f32.mrb[0].mxu0
        %v495 = vadd.f32 0.0, %v494
        %v496 = vpop.f32.mrb[0].mxu0
        %497 = vmatprep.mubr.bf16.mxu0 0
        %498 = vmatmul.mubr.bf16.gmra.mrb[0].mxu0 %v389
        %v499 = vpop.f32.mrb[0].mxu0
        %v500 = vadd.f32 0.0, %v499
        %v501 = vpop.f32.mrb[0].mxu0
        %v502 = vpop.f32.mrb[0].mxu0
        %v503 = vadd.f32 0.0, %v502
        %v504 = vpop.f32.mrb[0].mxu0
        %505 = vmatprep.mubr.bf16.mxu0 0
        %506 = vmatmul.mubr.bf16.gmra.mrb[0].mxu0 %v392
        %v507 = vpop.f32.mrb[0].mxu0
        %v508 = vadd.f32 0.0, %v507
        %v509 = vpop.f32.mrb[0].mxu0
        %v510 = vpop.f32.mrb[0].mxu0
        %v511 = vadd.f32 0.0, %v510
        %v512 = vpop.f32.mrb[0].mxu0
        %513 = vmatprep.mubr.bf16.mxu0 0
        %514 = vmatmul.mubr.bf16.gmra.mrb[0].mxu0 %v395
        %v515 = vpop.f32.mrb[0].mxu0
        %v516 = vadd.f32 0.0, %v515
        %v517 = vpop.f32.mrb[0].mxu0
        %v518 = vpop.f32.mrb[0].mxu0
        %v519 = vadd.f32 0.0, %v518
        %v520 = vpop.f32.mrb[0].mxu0
        %521 = vmatprep.mubr.bf16.mxu0 0
        %522 = vmatmul.mubr.bf16.gmra.mrb[0].mxu0 %v398
        %v523 = vpop.f32.mrb[0].mxu0
        %v524 = vadd.f32 0.0, %v523
        %v525 = vpop.f32.mrb[0].mxu0
        %v526 = vpop.f32.mrb[0].mxu0
        %v527 = vadd.f32 0.0, %v526
        %v528 = vpop.f32.mrb[0].mxu0
        %529 = vmatprep.mubr.bf16.mxu0 0
        %530 = vmatmul.mubr.bf16.gmra.mrb[0].mxu0 %v401
        %v531 = vpop.f32.mrb[0].mxu0
        %v532 = vadd.f32 0.0, %v531
        %v533 = vpop.f32.mrb[0].mxu0
        %v534 = vpop.f32.mrb[0].mxu0
        %v535 = vadd.f32 0.0, %v534
        %v536 = vpop.f32.mrb[0].mxu0
        %537 = vmatprep.mubr.bf16.mxu0 0
        %538 = vmatmul.mubr.bf16.gmra.mrb[0].mxu0 %v404
        %v539 = vpop.f32.mrb[0].mxu0
        %v540 = vadd.f32 0.0, %v539
        %v541 = vpop.f32.mrb[0].mxu0
        %v542 = vpop.f32.mrb[0].mxu0
        %v543 = vadd.f32 0.0, %v542
        %v544 = vpop.f32.mrb[0].mxu0
        %545 = vmatprep.mubr.bf16.mxu0 0
        %546 = vmatmul.mubr.bf16.gmra.mrb[0].mxu0 %v407
        %v547 = vpop.f32.mrb[0].mxu0
        %v548 = vadd.f32 0.0, %v547
        %v549 = vpop.f32.mrb[0].mxu0
        %v550 = vpop.f32.mrb[0].mxu0
        %v551 = vadd.f32 0.0, %v550
        %v552 = vpop.f32.mrb[0].mxu0
        %553 = vmatprep.mubr.bf16.mxu0 0
        %554 = vmatmul.mubr.bf16.gmra.mrb[0].mxu0 %v410
        %v555 = vpop.f32.mrb[0].mxu0
        %v556 = vadd.f32 0.0, %v555
        %v557 = vpop.f32.mrb[0].mxu0
        %v558 = vpop.f32.mrb[0].mxu0
        %v559 = vadd.f32 0.0, %v558
        %v560 = vpop.f32.mrb[0].mxu0
        %561 = vmatprep.mubr.bf16.mxu0 0
        %562 = vmatmul.mubr.bf16.gmra.mrb[0].mxu0 %v413
        %v563 = vpop.f32.mrb[0].mxu0
        %v564 = vadd.f32 0.0, %v563
        %v565 = vpop.f32.mrb[0].mxu0
        %v566 = vpop.f32.mrb[0].mxu0
        %v567 = vadd.f32 0.0, %v566
        %v568 = vpop.f32.mrb[0].mxu0
        %569 = vmatprep.mubr.bf16.mxu0 0
        %570 = vmatmul.mubr.bf16.gmra.mrb[0].mxu0 %v416
        %v571 = vpop.f32.mrb[0].mxu0
        %v572 = vadd.f32 0.0, %v571
        %v573 = vpop.f32.mrb[0].mxu0
        %v574 = vpop.f32.mrb[0].mxu0
        %v575 = vadd.f32 0.0, %v574
        %v576 = vpop.f32.mrb[0].mxu0
        %577 = vmatprep.mubr.bf16.mxu0 0
        %578 = vmatmul.mubr.bf16.gmra.mrb[0].mxu0 %v419
        %v579 = vpop.f32.mrb[0].mxu0
        %v580 = vadd.f32 0.0, %v579
        %v581 = vpop.f32.mrb[0].mxu0
        %v582 = vpop.f32.mrb[0].mxu0
        %v583 = vadd.f32 0.0, %v582
        %v584 = vpop.f32.mrb[0].mxu0
        %585 = vdwg.mxu0
        %v618 = vunpack.c.l.b16 %v224
        %v619 = vunpack.c.l.b16 %v225
        %v620 = vunpack.c.l.b16 %v226
        %v621 = vunpack.c.l.b16 %v227
        %v622 = vunpack.c.l.b16 %v228
        %v623 = vunpack.c.l.b16 %v229
        %v624 = vunpack.c.l.b16 %v230
        %v625 = vunpack.c.l.b16 %v231
        %v626 = vunpack.c.l.b16 %v232
        %v627 = vunpack.c.l.b16 %v233
        %v628 = vunpack.c.l.b16 %v234
        %v629 = vunpack.c.l.b16 %v235
        %v630 = vunpack.c.l.b16 %v236
        %v631 = vunpack.c.l.b16 %v237
        %v632 = vunpack.c.l.b16 %v238
        %v633 = vunpack.c.l.b16 %v239
        %v634 = vunpack.c.l.b16 %v240
        %v635 = vunpack.c.l.b16 %v241
        %v636 = vunpack.c.l.b16 %v242
        %v637 = vunpack.c.l.b16 %v243
        %v638 = vunpack.c.l.b16 %v244
        %v639 = vunpack.c.l.b16 %v245
        %v640 = vunpack.c.l.b16 %v246
        %v641 = vunpack.c.l.b16 %v247
        %v642 = vunpack.c.l.b16 %v248
        %v643 = vunpack.c.l.b16 %v249
        %v644 = vunpack.c.l.b16 %v250
        %v645 = vunpack.c.l.b16 %v251
        %v646 = vunpack.c.l.b16 %v252
        %v647 = vunpack.c.l.b16 %v253
        %v648 = vunpack.c.l.b16 %v254
        %v649 = vunpack.c.l.b16 %v255
        %v650 = vpack.c.b16 %v619, %v618
        %v651 = vpack.c.b16 %v621, %v620
        %v652 = vpack.c.b16 %v623, %v622
        %v653 = vpack.c.b16 %v625, %v624
        %v654 = vpack.c.b16 %v627, %v626
        %v655 = vpack.c.b16 %v629, %v628
        %v656 = vpack.c.b16 %v631, %v630
        %v657 = vpack.c.b16 %v633, %v632
        %v658 = vpack.c.b16 %v635, %v634
        %v659 = vpack.c.b16 %v637, %v636
        %v660 = vpack.c.b16 %v639, %v638
        %v661 = vpack.c.b16 %v641, %v640
        %v662 = vpack.c.b16 %v643, %v642
        %v663 = vpack.c.b16 %v645, %v644
        %v664 = vpack.c.b16 %v647, %v646
        %v665 = vpack.c.b16 %v649, %v648
        %v667 = vsel %vm372, %v650, 0
        %v670 = vsel %vm372, %v651, 0
        %v673 = vsel %vm372, %v652, 0
        %v676 = vsel %vm372, %v653, 0
        %v679 = vsel %vm372, %v654, 0
        %v682 = vsel %vm372, %v655, 0
        %v685 = vsel %vm372, %v656, 0
        %v688 = vsel %vm372, %v657, 0
        %v691 = vsel %vm372, %v658, 0
        %v694 = vsel %vm372, %v659, 0
        %v697 = vsel %vm372, %v660, 0
        %v700 = vsel %vm372, %v661, 0
        %v703 = vsel %vm372, %v662, 0
        %v706 = vsel %vm372, %v663, 0
        %v709 = vsel %vm372, %v664, 0
        %v712 = vsel %vm372, %v665, 0
        %v715 = vsel %vm421, %v256, 0
        %717 = vmatprep.subr.bf16.mxu0 0
        %718 = vmatpush1.bf16.msra.mxu0 %v715
        %719 = vmatprep.subr.bf16.mxu0 0
        %720 = vmatpush1.bf16.msra.mxu0 0
        %721 = vmatprep.subr.bf16.mxu0 0
        %722 = vmatpush1.bf16.msra.mxu0 0
        %723 = vmatprep.subr.bf16.mxu0 0
        %724 = vmatpush1.bf16.msra.mxu0 0
        %725 = vmatprep.subr.bf16.mxu0 0
        %726 = vmatpush1.bf16.msra.mxu0 0
        %727 = vmatprep.subr.bf16.mxu0 0
        %728 = vmatpush1.bf16.msra.mxu0 0
        %729 = vmatprep.subr.bf16.mxu0 0
        %730 = vmatpush1.bf16.msra.mxu0 0
        %731 = vmatprep.subr.bf16.mxu0 0
        %732 = vmatpush1.bf16.msra.mxu0 0
        %733 = vmatprep.subr.bf16.mxu0 0
        %734 = vmatpush1.bf16.msra.mxu0 0
        %735 = vmatprep.subr.bf16.mxu0 0
        %736 = vmatpush1.bf16.msra.mxu0 0
        %737 = vmatprep.subr.bf16.mxu0 0
        %738 = vmatpush1.bf16.msra.mxu0 0
        %739 = vmatprep.subr.bf16.mxu0 0
        %740 = vmatpush1.bf16.msra.mxu0 0
        %741 = vmatprep.subr.bf16.mxu0 0
        %742 = vmatpush1.bf16.msra.mxu0 0
        %743 = vmatprep.subr.bf16.mxu0 0
        %744 = vmatpush1.bf16.msra.mxu0 0
        %745 = vmatprep.subr.bf16.mxu0 0
        %746 = vmatpush1.bf16.msra.mxu0 0
        %747 = vmatprep.subr.bf16.mxu0 0
        %748 = vmatpush1.bf16.msra.mxu0 0
        %749 = vmatprep.mubr.bf16.mxu0 0
        %750 = vmatmul.mubr.bf16.gmra.mrb[0].mxu0 %v667
        %v751 = vpop.f32.mrb[0].mxu0
        %v752 = vadd.f32 %v460, %v751
        %v753 = vpop.f32.mrb[0].mxu0
        %v754 = vpop.f32.mrb[0].mxu0
        %v755 = vadd.f32 %v463, %v754
        %v756 = vpop.f32.mrb[0].mxu0
        %757 = vmatprep.mubr.bf16.mxu0 0
        %758 = vmatmul.mubr.bf16.gmra.mrb[0].mxu0 %v670
        %v759 = vpop.f32.mrb[0].mxu0
        %v760 = vadd.f32 %v468, %v759
        %v761 = vpop.f32.mrb[0].mxu0
        %v762 = vpop.f32.mrb[0].mxu0
        %v763 = vadd.f32 %v471, %v762
        %v764 = vpop.f32.mrb[0].mxu0
        %765 = vmatprep.mubr.bf16.mxu0 0
        %766 = vmatmul.mubr.bf16.gmra.mrb[0].mxu0 %v673
        %v767 = vpop.f32.mrb[0].mxu0
        %v768 = vadd.f32 %v476, %v767
        %v769 = vpop.f32.mrb[0].mxu0
        %v770 = vpop.f32.mrb[0].mxu0
        %v771 = vadd.f32 %v479, %v770
        %v772 = vpop.f32.mrb[0].mxu0
        %773 = vmatprep.mubr.bf16.mxu0 0
        %774 = vmatmul.mubr.bf16.gmra.mrb[0].mxu0 %v676
        %v775 = vpop.f32.mrb[0].mxu0
        %v776 = vadd.f32 %v484, %v775
        %v777 = vpop.f32.mrb[0].mxu0
        %v778 = vpop.f32.mrb[0].mxu0
        %v779 = vadd.f32 %v487, %v778
        %v780 = vpop.f32.mrb[0].mxu0
        %781 = vmatprep.mubr.bf16.mxu0 0
        %782 = vmatmul.mubr.bf16.gmra.mrb[0].mxu0 %v679
        %v783 = vpop.f32.mrb[0].mxu0
        %v784 = vadd.f32 %v492, %v783
        %v785 = vpop.f32.mrb[0].mxu0
        %v786 = vpop.f32.mrb[0].mxu0
        %v787 = vadd.f32 %v495, %v786
        %v788 = vpop.f32.mrb[0].mxu0
        %789 = vmatprep.mubr.bf16.mxu0 0
        %790 = vmatmul.mubr.bf16.gmra.mrb[0].mxu0 %v682
        %v791 = vpop.f32.mrb[0].mxu0
        %v792 = vadd.f32 %v500, %v791
        %v793 = vpop.f32.mrb[0].mxu0
        %v794 = vpop.f32.mrb[0].mxu0
        %v795 = vadd.f32 %v503, %v794
        %v796 = vpop.f32.mrb[0].mxu0
        %797 = vmatprep.mubr.bf16.mxu0 0
        %798 = vmatmul.mubr.bf16.gmra.mrb[0].mxu0 %v685
        %v799 = vpop.f32.mrb[0].mxu0
        %v800 = vadd.f32 %v508, %v799
        %v801 = vpop.f32.mrb[0].mxu0
        %v802 = vpop.f32.mrb[0].mxu0
        %v803 = vadd.f32 %v511, %v802
        %v804 = vpop.f32.mrb[0].mxu0
        %805 = vmatprep.mubr.bf16.mxu0 0
        %806 = vmatmul.mubr.bf16.gmra.mrb[0].mxu0 %v688
        %v807 = vpop.f32.mrb[0].mxu0
        %v808 = vadd.f32 %v516, %v807
        %v809 = vpop.f32.mrb[0].mxu0
        %v810 = vpop.f32.mrb[0].mxu0
        %v811 = vadd.f32 %v519, %v810
        %v812 = vpop.f32.mrb[0].mxu0
        %813 = vmatprep.mubr.bf16.mxu0 0
        %814 = vmatmul.mubr.bf16.gmra.mrb[0].mxu0 %v691
        %v815 = vpop.f32.mrb[0].mxu0
        %v816 = vadd.f32 %v524, %v815
        %v817 = vpop.f32.mrb[0].mxu0
        %v818 = vpop.f32.mrb[0].mxu0
        %v819 = vadd.f32 %v527, %v818
        %v820 = vpop.f32.mrb[0].mxu0
        %821 = vmatprep.mubr.bf16.mxu0 0
        %822 = vmatmul.mubr.bf16.gmra.mrb[0].mxu0 %v694
        %v823 = vpop.f32.mrb[0].mxu0
        %v824 = vadd.f32 %v532, %v823
        %v825 = vpop.f32.mrb[0].mxu0
        %v826 = vpop.f32.mrb[0].mxu0
        %v827 = vadd.f32 %v535, %v826
        %v828 = vpop.f32.mrb[0].mxu0
        %829 = vmatprep.mubr.bf16.mxu0 0
        %830 = vmatmul.mubr.bf16.gmra.mrb[0].mxu0 %v697
        %v831 = vpop.f32.mrb[0].mxu0
        %v832 = vadd.f32 %v540, %v831
        %v833 = vpop.f32.mrb[0].mxu0
        %v834 = vpop.f32.mrb[0].mxu0
        %v835 = vadd.f32 %v543, %v834
        %v836 = vpop.f32.mrb[0].mxu0
        %837 = vmatprep.mubr.bf16.mxu0 0
        %838 = vmatmul.mubr.bf16.gmra.mrb[0].mxu0 %v700
        %v839 = vpop.f32.mrb[0].mxu0
        %v840 = vadd.f32 %v548, %v839
        %v841 = vpop.f32.mrb[0].mxu0
        %v842 = vpop.f32.mrb[0].mxu0
        %v843 = vadd.f32 %v551, %v842
        %v844 = vpop.f32.mrb[0].mxu0
        %845 = vmatprep.mubr.bf16.mxu0 0
        %846 = vmatmul.mubr.bf16.gmra.mrb[0].mxu0 %v703
        %v847 = vpop.f32.mrb[0].mxu0
        %v848 = vadd.f32 %v556, %v847
        %v849 = vpop.f32.mrb[0].mxu0
        %v850 = vpop.f32.mrb[0].mxu0
        %v851 = vadd.f32 %v559, %v850
        %v852 = vpop.f32.mrb[0].mxu0
        %853 = vmatprep.mubr.bf16.mxu0 0
        %854 = vmatmul.mubr.bf16.gmra.mrb[0].mxu0 %v706
        %v855 = vpop.f32.mrb[0].mxu0
        %v856 = vadd.f32 %v564, %v855
        %v857 = vpop.f32.mrb[0].mxu0
        %v858 = vpop.f32.mrb[0].mxu0
        %v859 = vadd.f32 %v567, %v858
        %v860 = vpop.f32.mrb[0].mxu0
        %861 = vmatprep.mubr.bf16.mxu0 0
        %862 = vmatmul.mubr.bf16.gmra.mrb[0].mxu0 %v709
        %v863 = vpop.f32.mrb[0].mxu0
        %v864 = vadd.f32 %v572, %v863
        %v865 = vpop.f32.mrb[0].mxu0
        %v866 = vpop.f32.mrb[0].mxu0
        %v867 = vadd.f32 %v575, %v866
        %v868 = vpop.f32.mrb[0].mxu0
        %869 = vmatprep.mubr.bf16.mxu0 0
        %870 = vmatmul.mubr.bf16.gmra.mrb[0].mxu0 %v712
        %v871 = vpop.f32.mrb[0].mxu0
        %v872 = vadd.f32 %v580, %v871
        %v873 = vpop.f32.mrb[0].mxu0
        %v874 = vpop.f32.mrb[0].mxu0
        %v875 = vadd.f32 %v583, %v874
        %v876 = vpop.f32.mrb[0].mxu0
        %877 = vdwg.mxu0
        %s878 = scalar_lea.vmem %s222, 288
        %v879 = vld [vmem:[%s878] sm:$0xf]
        %v880 = vld [vmem:[%s878 + $0x4] sm:$0xf]
        %v881 = vld [vmem:[%s878 + $0x8] sm:$0xf]
        %v882 = vld [vmem:[%s878 + $0xc] sm:$0xf]
        %v883 = vld [vmem:[%s878 + $0x10] sm:$0xf]
        %v884 = vld [vmem:[%s878 + $0x14] sm:$0xf]
        %v885 = vld [vmem:[%s878 + $0x18] sm:$0xf]
        %v886 = vld [vmem:[%s878 + $0x1c] sm:$0xf]
        %v887 = vld [vmem:[%s878 + $0x20] sm:$0xf]
        %v888 = vld [vmem:[%s878 + $0x24] sm:$0xf]
        %v889 = vld [vmem:[%s878 + $0x28] sm:$0xf]
        %v890 = vld [vmem:[%s878 + $0x2c] sm:$0xf]
        %v891 = vld [vmem:[%s878 + $0x30] sm:$0xf]
        %v892 = vld [vmem:[%s878 + $0x34] sm:$0xf]
        %v893 = vld [vmem:[%s878 + $0x38] sm:$0xf]
        %v894 = vld [vmem:[%s878 + $0x3c] sm:$0xf]
        %v895 = vld [vmem:[%s878 + $0x40] sm:$0xf]
        %v896 = vld [vmem:[%s878 + $0x44] sm:$0xf]
        %v897 = vld [vmem:[%s878 + $0x48] sm:$0xf]
        %v898 = vld [vmem:[%s878 + $0x4c] sm:$0xf]
        %v899 = vld [vmem:[%s878 + $0x50] sm:$0xf]
        %v900 = vld [vmem:[%s878 + $0x54] sm:$0xf]
        %v901 = vld [vmem:[%s878 + $0x58] sm:$0xf]
        %v902 = vld [vmem:[%s878 + $0x5c] sm:$0xf]
        %v903 = vld [vmem:[%s878 + $0x60] sm:$0xf]
        %v904 = vld [vmem:[%s878 + $0x64] sm:$0xf]
        %v905 = vld [vmem:[%s878 + $0x68] sm:$0xf]
        %v906 = vld [vmem:[%s878 + $0x6c] sm:$0xf]
        %v907 = vld [vmem:[%s878 + $0x70] sm:$0xf]
        %v908 = vld [vmem:[%s878 + $0x74] sm:$0xf]
        %v909 = vld [vmem:[%s878 + $0x78] sm:$0xf]
        %v910 = vld [vmem:[%s878 + $0x7c] sm:$0xf]
        %s911 = scalar_lea.vmem %s1, 4
        %v912 = vld [vmem:[%s911] sm:$0x3]
        %v945 = vunpack.c.l.b16 %v879
        %v946 = vunpack.c.l.b16 %v880
        %v947 = vunpack.c.l.b16 %v881
        %v948 = vunpack.c.l.b16 %v882
        %v949 = vunpack.c.l.b16 %v883
        %v950 = vunpack.c.l.b16 %v884
        %v951 = vunpack.c.l.b16 %v885
        %v952 = vunpack.c.l.b16 %v886
        %v953 = vunpack.c.l.b16 %v887
        %v954 = vunpack.c.l.b16 %v888
        %v955 = vunpack.c.l.b16 %v889
        %v956 = vunpack.c.l.b16 %v890
        %v957 = vunpack.c.l.b16 %v891
        %v958 = vunpack.c.l.b16 %v892
        %v959 = vunpack.c.l.b16 %v893
        %v960 = vunpack.c.l.b16 %v894
        %v961 = vunpack.c.l.b16 %v895
        %v962 = vunpack.c.l.b16 %v896
        %v963 = vunpack.c.l.b16 %v897
        %v964 = vunpack.c.l.b16 %v898
        %v965 = vunpack.c.l.b16 %v899
        %v966 = vunpack.c.l.b16 %v900
        %v967 = vunpack.c.l.b16 %v901
        %v968 = vunpack.c.l.b16 %v902
        %v969 = vunpack.c.l.b16 %v903
        %v970 = vunpack.c.l.b16 %v904
        %v971 = vunpack.c.l.b16 %v905
        %v972 = vunpack.c.l.b16 %v906
        %v973 = vunpack.c.l.b16 %v907
        %v974 = vunpack.c.l.b16 %v908
        %v975 = vunpack.c.l.b16 %v909
        %v976 = vunpack.c.l.b16 %v910
        %v977 = vpack.c.b16 %v946, %v945
        %v978 = vpack.c.b16 %v948, %v947
        %v979 = vpack.c.b16 %v950, %v949
        %v980 = vpack.c.b16 %v952, %v951
        %v981 = vpack.c.b16 %v954, %v953
        %v982 = vpack.c.b16 %v956, %v955
        %v983 = vpack.c.b16 %v958, %v957
        %v984 = vpack.c.b16 %v960, %v959
        %v985 = vpack.c.b16 %v962, %v961
        %v986 = vpack.c.b16 %v964, %v963
        %v987 = vpack.c.b16 %v966, %v965
        %v988 = vpack.c.b16 %v968, %v967
        %v989 = vpack.c.b16 %v970, %v969
        %v990 = vpack.c.b16 %v972, %v971
        %v991 = vpack.c.b16 %v974, %v973
        %v992 = vpack.c.b16 %v976, %v975
        %v994 = vsel %vm372, %v977, 0
        %v997 = vsel %vm372, %v978, 0
        %v1000 = vsel %vm372, %v979, 0
        %v1003 = vsel %vm372, %v980, 0
        %v1006 = vsel %vm372, %v981, 0
        %v1009 = vsel %vm372, %v982, 0
        %v1012 = vsel %vm372, %v983, 0
        %v1015 = vsel %vm372, %v984, 0
        %v1018 = vsel %vm372, %v985, 0
        %v1021 = vsel %vm372, %v986, 0
        %v1024 = vsel %vm372, %v987, 0
        %v1027 = vsel %vm372, %v988, 0
        %v1030 = vsel %vm372, %v989, 0
        %v1033 = vsel %vm372, %v990, 0
        %v1036 = vsel %vm372, %v991, 0
        %v1039 = vsel %vm372, %v992, 0
        %v1042 = vsel %vm421, %v912, 0
        %1044 = vmatprep.subr.bf16.mxu0 0
        %1045 = vmatpush1.bf16.msra.mxu0 %v1042
        %1046 = vmatprep.subr.bf16.mxu0 0
        %1047 = vmatpush1.bf16.msra.mxu0 0
        %1048 = vmatprep.subr.bf16.mxu0 0
        %1049 = vmatpush1.bf16.msra.mxu0 0
        %1050 = vmatprep.subr.bf16.mxu0 0
        %1051 = vmatpush1.bf16.msra.mxu0 0
        %1052 = vmatprep.subr.bf16.mxu0 0
        %1053 = vmatpush1.bf16.msra.mxu0 0
        %1054 = vmatprep.subr.bf16.mxu0 0
        %1055 = vmatpush1.bf16.msra.mxu0 0
        %1056 = vmatprep.subr.bf16.mxu0 0
        %1057 = vmatpush1.bf16.msra.mxu0 0
        %1058 = vmatprep.subr.bf16.mxu0 0
        %1059 = vmatpush1.bf16.msra.mxu0 0
        %1060 = vmatprep.subr.bf16.mxu0 0
        %1061 = vmatpush1.bf16.msra.mxu0 0
        %1062 = vmatprep.subr.bf16.mxu0 0
        %1063 = vmatpush1.bf16.msra.mxu0 0
        %1064 = vmatprep.subr.bf16.mxu0 0
        %1065 = vmatpush1.bf16.msra.mxu0 0
        %1066 = vmatprep.subr.bf16.mxu0 0
        %1067 = vmatpush1.bf16.msra.mxu0 0
        %1068 = vmatprep.subr.bf16.mxu0 0
        %1069 = vmatpush1.bf16.msra.mxu0 0
        %1070 = vmatprep.subr.bf16.mxu0 0
        %1071 = vmatpush1.bf16.msra.mxu0 0
        %1072 = vmatprep.subr.bf16.mxu0 0
        %1073 = vmatpush1.bf16.msra.mxu0 0
        %1074 = vmatprep.subr.bf16.mxu0 0
        %1075 = vmatpush1.bf16.msra.mxu0 0
        %1076 = vmatprep.mubr.bf16.mxu0 0
        %1077 = vmatmul.mubr.bf16.gmra.mrb[0].mxu0 %v994
        %v1078 = vpop.f32.mrb[0].mxu0
        %v1079 = vadd.f32 0.0, %v1078
        %v1080 = vpop.f32.mrb[0].mxu0
        %v1081 = vpop.f32.mrb[0].mxu0
        %v1082 = vadd.f32 0.0, %v1081
        %v1083 = vpop.f32.mrb[0].mxu0
        %1084 = vmatprep.mubr.bf16.mxu0 0
        %1085 = vmatmul.mubr.bf16.gmra.mrb[0].mxu0 %v997
        %v1086 = vpop.f32.mrb[0].mxu0
        %v1087 = vadd.f32 0.0, %v1086
        %v1088 = vpop.f32.mrb[0].mxu0
        %v1089 = vpop.f32.mrb[0].mxu0
        %v1090 = vadd.f32 0.0, %v1089
        %v1091 = vpop.f32.mrb[0].mxu0
        %1092 = vmatprep.mubr.bf16.mxu0 0
        %1093 = vmatmul.mubr.bf16.gmra.mrb[0].mxu0 %v1000
        %v1094 = vpop.f32.mrb[0].mxu0
        %v1095 = vadd.f32 0.0, %v1094
        %v1096 = vpop.f32.mrb[0].mxu0
        %v1097 = vpop.f32.mrb[0].mxu0
        %v1098 = vadd.f32 0.0, %v1097
        %v1099 = vpop.f32.mrb[0].mxu0
        %1100 = vmatprep.mubr.bf16.mxu0 0
        %1101 = vmatmul.mubr.bf16.gmra.mrb[0].mxu0 %v1003
        %v1102 = vpop.f32.mrb[0].mxu0
        %v1103 = vadd.f32 0.0, %v1102
        %v1104 = vpop.f32.mrb[0].mxu0
        %v1105 = vpop.f32.mrb[0].mxu0
        %v1106 = vadd.f32 0.0, %v1105
        %v1107 = vpop.f32.mrb[0].mxu0
        %1108 = vmatprep.mubr.bf16.mxu0 0
        %1109 = vmatmul.mubr.bf16.gmra.mrb[0].mxu0 %v1006
        %v1110 = vpop.f32.mrb[0].mxu0
        %v1111 = vadd.f32 0.0, %v1110
        %v1112 = vpop.f32.mrb[0].mxu0
        %v1113 = vpop.f32.mrb[0].mxu0
        %v1114 = vadd.f32 0.0, %v1113
        %v1115 = vpop.f32.mrb[0].mxu0
        %1116 = vmatprep.mubr.bf16.mxu0 0
        %1117 = vmatmul.mubr.bf16.gmra.mrb[0].mxu0 %v1009
        %v1118 = vpop.f32.mrb[0].mxu0
        %v1119 = vadd.f32 0.0, %v1118
        %v1120 = vpop.f32.mrb[0].mxu0
        %v1121 = vpop.f32.mrb[0].mxu0
        %v1122 = vadd.f32 0.0, %v1121
        %v1123 = vpop.f32.mrb[0].mxu0
        %1124 = vmatprep.mubr.bf16.mxu0 0
        %1125 = vmatmul.mubr.bf16.gmra.mrb[0].mxu0 %v1012
        %v1126 = vpop.f32.mrb[0].mxu0
        %v1127 = vadd.f32 0.0, %v1126
        %v1128 = vpop.f32.mrb[0].mxu0
        %v1129 = vpop.f32.mrb[0].mxu0
        %v1130 = vadd.f32 0.0, %v1129
        %v1131 = vpop.f32.mrb[0].mxu0
        %1132 = vmatprep.mubr.bf16.mxu0 0
        %1133 = vmatmul.mubr.bf16.gmra.mrb[0].mxu0 %v1015
        %v1134 = vpop.f32.mrb[0].mxu0
        %v1135 = vadd.f32 0.0, %v1134
        %v1136 = vpop.f32.mrb[0].mxu0
        %v1137 = vpop.f32.mrb[0].mxu0
        %v1138 = vadd.f32 0.0, %v1137
        %v1139 = vpop.f32.mrb[0].mxu0
        %1140 = vmatprep.mubr.bf16.mxu0 0
        %1141 = vmatmul.mubr.bf16.gmra.mrb[0].mxu0 %v1018
        %v1142 = vpop.f32.mrb[0].mxu0
        %v1143 = vadd.f32 0.0, %v1142
        %v1144 = vpop.f32.mrb[0].mxu0
        %v1145 = vpop.f32.mrb[0].mxu0
        %v1146 = vadd.f32 0.0, %v1145
        %v1147 = vpop.f32.mrb[0].mxu0
        %1148 = vmatprep.mubr.bf16.mxu0 0
        %1149 = vmatmul.mubr.bf16.gmra.mrb[0].mxu0 %v1021
        %v1150 = vpop.f32.mrb[0].mxu0
        %v1151 = vadd.f32 0.0, %v1150
        %v1152 = vpop.f32.mrb[0].mxu0
        %v1153 = vpop.f32.mrb[0].mxu0
        %v1154 = vadd.f32 0.0, %v1153
        %v1155 = vpop.f32.mrb[0].mxu0
        %1156 = vmatprep.mubr.bf16.mxu0 0
        %1157 = vmatmul.mubr.bf16.gmra.mrb[0].mxu0 %v1024
        %v1158 = vpop.f32.mrb[0].mxu0
        %v1159 = vadd.f32 0.0, %v1158
        %v1160 = vpop.f32.mrb[0].mxu0
        %v1161 = vpop.f32.mrb[0].mxu0
        %v1162 = vadd.f32 0.0, %v1161
        %v1163 = vpop.f32.mrb[0].mxu0
        %1164 = vmatprep.mubr.bf16.mxu0 0
        %1165 = vmatmul.mubr.bf16.gmra.mrb[0].mxu0 %v1027
        %v1166 = vpop.f32.mrb[0].mxu0
        %v1167 = vadd.f32 0.0, %v1166
        %v1168 = vpop.f32.mrb[0].mxu0
        %v1169 = vpop.f32.mrb[0].mxu0
        %v1170 = vadd.f32 0.0, %v1169
        %v1171 = vpop.f32.mrb[0].mxu0
        %1172 = vmatprep.mubr.bf16.mxu0 0
        %1173 = vmatmul.mubr.bf16.gmra.mrb[0].mxu0 %v1030
        %v1174 = vpop.f32.mrb[0].mxu0
        %v1175 = vadd.f32 0.0, %v1174
        %v1176 = vpop.f32.mrb[0].mxu0
        %v1177 = vpop.f32.mrb[0].mxu0
        %v1178 = vadd.f32 0.0, %v1177
        %v1179 = vpop.f32.mrb[0].mxu0
        %1180 = vmatprep.mubr.bf16.mxu0 0
        %1181 = vmatmul.mubr.bf16.gmra.mrb[0].mxu0 %v1033
        %v1182 = vpop.f32.mrb[0].mxu0
        %v1183 = vadd.f32 0.0, %v1182
        %v1184 = vpop.f32.mrb[0].mxu0
        %v1185 = vpop.f32.mrb[0].mxu0
        %v1186 = vadd.f32 0.0, %v1185
        %v1187 = vpop.f32.mrb[0].mxu0
        %1188 = vmatprep.mubr.bf16.mxu0 0
        %1189 = vmatmul.mubr.bf16.gmra.mrb[0].mxu0 %v1036
        %v1190 = vpop.f32.mrb[0].mxu0
        %v1191 = vadd.f32 0.0, %v1190
        %v1192 = vpop.f32.mrb[0].mxu0
        %v1193 = vpop.f32.mrb[0].mxu0
        %v1194 = vadd.f32 0.0, %v1193
        %v1195 = vpop.f32.mrb[0].mxu0
        %1196 = vmatprep.mubr.bf16.mxu0 0
        %1197 = vmatmul.mubr.bf16.gmra.mrb[0].mxu0 %v1039
        %v1198 = vpop.f32.mrb[0].mxu0
        %v1199 = vadd.f32 0.0, %v1198
        %v1200 = vpop.f32.mrb[0].mxu0
        %v1201 = vpop.f32.mrb[0].mxu0
        %v1202 = vadd.f32 0.0, %v1201
        %v1203 = vpop.f32.mrb[0].mxu0
        %1204 = vdwg.mxu0
        %v1205 = vadd.f32 %v752, %v1079
        %v1206 = vadd.f32 %v755, %v1082
        %v1207 = vadd.f32 %v760, %v1087
        %v1208 = vadd.f32 %v763, %v1090
        %v1209 = vadd.f32 %v768, %v1095
        %v1210 = vadd.f32 %v771, %v1098
        %v1211 = vadd.f32 %v776, %v1103
        %v1212 = vadd.f32 %v779, %v1106
        %v1213 = vadd.f32 %v784, %v1111
        %v1214 = vadd.f32 %v787, %v1114
        %v1215 = vadd.f32 %v792, %v1119
        %v1216 = vadd.f32 %v795, %v1122
        %v1217 = vadd.f32 %v800, %v1127
        %v1218 = vadd.f32 %v803, %v1130
        %v1219 = vadd.f32 %v808, %v1135
        %v1220 = vadd.f32 %v811, %v1138
        %v1221 = vadd.f32 %v816, %v1143
        %v1222 = vadd.f32 %v819, %v1146
        %v1223 = vadd.f32 %v824, %v1151
        %v1224 = vadd.f32 %v827, %v1154
        %v1225 = vadd.f32 %v832, %v1159
        %v1226 = vadd.f32 %v835, %v1162
        %v1227 = vadd.f32 %v840, %v1167
        %v1228 = vadd.f32 %v843, %v1170
        %v1229 = vadd.f32 %v848, %v1175
        %v1230 = vadd.f32 %v851, %v1178
        %v1231 = vadd.f32 %v856, %v1183
        %v1232 = vadd.f32 %v859, %v1186
        %v1233 = vadd.f32 %v864, %v1191
        %v1234 = vadd.f32 %v867, %v1194
        %v1235 = vadd.f32 %v872, %v1199
        %v1236 = vadd.f32 %v875, %v1202
        %v1237 = vld [vmem:[%s222 + $0x8] sm:$0xf]
        %v1238 = vld [vmem:[%s222 + $0xc] sm:$0xf]
        %v1239 = vld [vmem:[%s222 + $0x10] sm:$0xf]
        %v1240 = vld [vmem:[%s222 + $0x14] sm:$0xf]
        %v1241 = vld [vmem:[%s222 + $0x18] sm:$0xf]
        %v1242 = vld [vmem:[%s222 + $0x1c] sm:$0xf]
        %v1243 = vld [vmem:[%s222 + $0x20] sm:$0xf]
        %v1244 = vld [vmem:[%s222 + $0x24] sm:$0xf]
        %v1245 = vld [vmem:[%s222 + $0x28] sm:$0xf]
        %v1246 = vld [vmem:[%s222 + $0x2c] sm:$0xf]
        %v1247 = vld [vmem:[%s222 + $0x30] sm:$0xf]
        %v1248 = vld [vmem:[%s222 + $0x34] sm:$0xf]
        %v1249 = vld [vmem:[%s222 + $0x38] sm:$0xf]
        %v1250 = vld [vmem:[%s222 + $0x3c] sm:$0xf]
        %v1251 = vld [vmem:[%s222 + $0x40] sm:$0xf]
        %v1252 = vld [vmem:[%s222 + $0x44] sm:$0xf]
        %v1253 = vld [vmem:[%s222 + $0x48] sm:$0xf]
        %v1254 = vld [vmem:[%s222 + $0x4c] sm:$0xf]
        %v1255 = vld [vmem:[%s222 + $0x50] sm:$0xf]
        %v1256 = vld [vmem:[%s222 + $0x54] sm:$0xf]
        %v1257 = vld [vmem:[%s222 + $0x58] sm:$0xf]
        %v1258 = vld [vmem:[%s222 + $0x5c] sm:$0xf]
        %v1259 = vld [vmem:[%s222 + $0x60] sm:$0xf]
        %v1260 = vld [vmem:[%s222 + $0x64] sm:$0xf]
        %v1261 = vld [vmem:[%s222 + $0x68] sm:$0xf]
        %v1262 = vld [vmem:[%s222 + $0x6c] sm:$0xf]
        %v1263 = vld [vmem:[%s222 + $0x70] sm:$0xf]
        %v1264 = vld [vmem:[%s222 + $0x74] sm:$0xf]
        %v1265 = vld [vmem:[%s222 + $0x78] sm:$0xf]
        %v1266 = vld [vmem:[%s222 + $0x7c] sm:$0xf]
        %v1267 = vld [vmem:[%s222 + $0x80] sm:$0xf]
        %v1268 = vld [vmem:[%s222 + $0x84] sm:$0xf]
        %s1269 = scalar_lea.vmem %s1, 6
        %v1270 = vld [vmem:[%s1269] sm:$0x3]
        %v1303 = vunpack.c.l.b16 %v1237
        %v1304 = vunpack.c.l.b16 %v1238
        %v1305 = vunpack.c.l.b16 %v1239
        %v1306 = vunpack.c.l.b16 %v1240
        %v1307 = vunpack.c.l.b16 %v1241
        %v1308 = vunpack.c.l.b16 %v1242
        %v1309 = vunpack.c.l.b16 %v1243
        %v1310 = vunpack.c.l.b16 %v1244
        %v1311 = vunpack.c.l.b16 %v1245
        %v1312 = vunpack.c.l.b16 %v1246
        %v1313 = vunpack.c.l.b16 %v1247
        %v1314 = vunpack.c.l.b16 %v1248
        %v1315 = vunpack.c.l.b16 %v1249
        %v1316 = vunpack.c.l.b16 %v1250
        %v1317 = vunpack.c.l.b16 %v1251
        %v1318 = vunpack.c.l.b16 %v1252
        %v1319 = vunpack.c.l.b16 %v1253
        %v1320 = vunpack.c.l.b16 %v1254
        %v1321 = vunpack.c.l.b16 %v1255
        %v1322 = vunpack.c.l.b16 %v1256
        %v1323 = vunpack.c.l.b16 %v1257
        %v1324 = vunpack.c.l.b16 %v1258
        %v1325 = vunpack.c.l.b16 %v1259
        %v1326 = vunpack.c.l.b16 %v1260
        %v1327 = vunpack.c.l.b16 %v1261
        %v1328 = vunpack.c.l.b16 %v1262
        %v1329 = vunpack.c.l.b16 %v1263
        %v1330 = vunpack.c.l.b16 %v1264
        %v1331 = vunpack.c.l.b16 %v1265
        %v1332 = vunpack.c.l.b16 %v1266
        %v1333 = vunpack.c.l.b16 %v1267
        %v1334 = vunpack.c.l.b16 %v1268
        %v1335 = vpack.c.b16 %v1304, %v1303
        %v1336 = vpack.c.b16 %v1306, %v1305
        %v1337 = vpack.c.b16 %v1308, %v1307
        %v1338 = vpack.c.b16 %v1310, %v1309
        %v1339 = vpack.c.b16 %v1312, %v1311
        %v1340 = vpack.c.b16 %v1314, %v1313
        %v1341 = vpack.c.b16 %v1316, %v1315
        %v1342 = vpack.c.b16 %v1318, %v1317
        %v1343 = vpack.c.b16 %v1320, %v1319
        %v1344 = vpack.c.b16 %v1322, %v1321
        %v1345 = vpack.c.b16 %v1324, %v1323
        %v1346 = vpack.c.b16 %v1326, %v1325
        %v1347 = vpack.c.b16 %v1328, %v1327
        %v1348 = vpack.c.b16 %v1330, %v1329
        %v1349 = vpack.c.b16 %v1332, %v1331
        %v1350 = vpack.c.b16 %v1334, %v1333
        %v1352 = vsel %vm372, %v1335, 0
        %v1355 = vsel %vm372, %v1336, 0
        %v1358 = vsel %vm372, %v1337, 0
        %v1361 = vsel %vm372, %v1338, 0
        %v1364 = vsel %vm372, %v1339, 0
        %v1367 = vsel %vm372, %v1340, 0
        %v1370 = vsel %vm372, %v1341, 0
        %v1373 = vsel %vm372, %v1342, 0
        %v1376 = vsel %vm372, %v1343, 0
        %v1379 = vsel %vm372, %v1344, 0
        %v1382 = vsel %vm372, %v1345, 0
        %v1385 = vsel %vm372, %v1346, 0
        %v1388 = vsel %vm372, %v1347, 0
        %v1391 = vsel %vm372, %v1348, 0
        %v1394 = vsel %vm372, %v1349, 0
        %v1397 = vsel %vm372, %v1350, 0
        %v1400 = vsel %vm421, %v1270, 0
        %1402 = vmatprep.subr.bf16.mxu0 0
        %1403 = vmatpush1.bf16.msra.mxu0 %v1400
        %1404 = vmatprep.subr.bf16.mxu0 0
        %1405 = vmatpush1.bf16.msra.mxu0 0
        %1406 = vmatprep.subr.bf16.mxu0 0
        %1407 = vmatpush1.bf16.msra.mxu0 0
        %1408 = vmatprep.subr.bf16.mxu0 0
        %1409 = vmatpush1.bf16.msra.mxu0 0
        %1410 = vmatprep.subr.bf16.mxu0 0
        %1411 = vmatpush1.bf16.msra.mxu0 0
        %1412 = vmatprep.subr.bf16.mxu0 0
        %1413 = vmatpush1.bf16.msra.mxu0 0
        %1414 = vmatprep.subr.bf16.mxu0 0
        %1415 = vmatpush1.bf16.msra.mxu0 0
        %1416 = vmatprep.subr.bf16.mxu0 0
        %1417 = vmatpush1.bf16.msra.mxu0 0
        %1418 = vmatprep.subr.bf16.mxu0 0
        %1419 = vmatpush1.bf16.msra.mxu0 0
        %1420 = vmatprep.subr.bf16.mxu0 0
        %1421 = vmatpush1.bf16.msra.mxu0 0
        %1422 = vmatprep.subr.bf16.mxu0 0
        %1423 = vmatpush1.bf16.msra.mxu0 0
        %1424 = vmatprep.subr.bf16.mxu0 0
        %1425 = vmatpush1.bf16.msra.mxu0 0
        %1426 = vmatprep.subr.bf16.mxu0 0
        %1427 = vmatpush1.bf16.msra.mxu0 0
        %1428 = vmatprep.subr.bf16.mxu0 0
        %1429 = vmatpush1.bf16.msra.mxu0 0
        %1430 = vmatprep.subr.bf16.mxu0 0
        %1431 = vmatpush1.bf16.msra.mxu0 0
        %1432 = vmatprep.subr.bf16.mxu0 0
        %1433 = vmatpush1.bf16.msra.mxu0 0
        %1434 = vmatprep.mubr.bf16.mxu0 0
        %1435 = vmatmul.mubr.bf16.gmra.mrb[0].mxu0 %v1352
        %v1436 = vpop.f32.mrb[0].mxu0
        %v1437 = vadd.f32 0.0, %v1436
        %v1438 = vpop.f32.mrb[0].mxu0
        %v1439 = vpop.f32.mrb[0].mxu0
        %v1440 = vadd.f32 0.0, %v1439
        %v1441 = vpop.f32.mrb[0].mxu0
        %1442 = vmatprep.mubr.bf16.mxu0 0
        %1443 = vmatmul.mubr.bf16.gmra.mrb[0].mxu0 %v1355
        %v1444 = vpop.f32.mrb[0].mxu0
        %v1445 = vadd.f32 0.0, %v1444
        %v1446 = vpop.f32.mrb[0].mxu0
        %v1447 = vpop.f32.mrb[0].mxu0
        %v1448 = vadd.f32 0.0, %v1447
        %v1449 = vpop.f32.mrb[0].mxu0
        %1450 = vmatprep.mubr.bf16.mxu0 0
        %1451 = vmatmul.mubr.bf16.gmra.mrb[0].mxu0 %v1358
        %v1452 = vpop.f32.mrb[0].mxu0
        %v1453 = vadd.f32 0.0, %v1452
        %v1454 = vpop.f32.mrb[0].mxu0
        %v1455 = vpop.f32.mrb[0].mxu0
        %v1456 = vadd.f32 0.0, %v1455
        %v1457 = vpop.f32.mrb[0].mxu0
        %1458 = vmatprep.mubr.bf16.mxu0 0
        %1459 = vmatmul.mubr.bf16.gmra.mrb[0].mxu0 %v1361
        %v1460 = vpop.f32.mrb[0].mxu0
        %v1461 = vadd.f32 0.0, %v1460
        %v1462 = vpop.f32.mrb[0].mxu0
        %v1463 = vpop.f32.mrb[0].mxu0
        %v1464 = vadd.f32 0.0, %v1463
        %v1465 = vpop.f32.mrb[0].mxu0
        %1466 = vmatprep.mubr.bf16.mxu0 0
        %1467 = vmatmul.mubr.bf16.gmra.mrb[0].mxu0 %v1364
        %v1468 = vpop.f32.mrb[0].mxu0
        %v1469 = vadd.f32 0.0, %v1468
        %v1470 = vpop.f32.mrb[0].mxu0
        %v1471 = vpop.f32.mrb[0].mxu0
        %v1472 = vadd.f32 0.0, %v1471
        %v1473 = vpop.f32.mrb[0].mxu0
        %1474 = vmatprep.mubr.bf16.mxu0 0
        %1475 = vmatmul.mubr.bf16.gmra.mrb[0].mxu0 %v1367
        %v1476 = vpop.f32.mrb[0].mxu0
        %v1477 = vadd.f32 0.0, %v1476
        %v1478 = vpop.f32.mrb[0].mxu0
        %v1479 = vpop.f32.mrb[0].mxu0
        %v1480 = vadd.f32 0.0, %v1479
        %v1481 = vpop.f32.mrb[0].mxu0
        %1482 = vmatprep.mubr.bf16.mxu0 0
        %1483 = vmatmul.mubr.bf16.gmra.mrb[0].mxu0 %v1370
        %v1484 = vpop.f32.mrb[0].mxu0
        %v1485 = vadd.f32 0.0, %v1484
        %v1486 = vpop.f32.mrb[0].mxu0
        %v1487 = vpop.f32.mrb[0].mxu0
        %v1488 = vadd.f32 0.0, %v1487
        %v1489 = vpop.f32.mrb[0].mxu0
        %1490 = vmatprep.mubr.bf16.mxu0 0
        %1491 = vmatmul.mubr.bf16.gmra.mrb[0].mxu0 %v1373
        %v1492 = vpop.f32.mrb[0].mxu0
        %v1493 = vadd.f32 0.0, %v1492
        %v1494 = vpop.f32.mrb[0].mxu0
        %v1495 = vpop.f32.mrb[0].mxu0
        %v1496 = vadd.f32 0.0, %v1495
        %v1497 = vpop.f32.mrb[0].mxu0
        %1498 = vmatprep.mubr.bf16.mxu0 0
        %1499 = vmatmul.mubr.bf16.gmra.mrb[0].mxu0 %v1376
        %v1500 = vpop.f32.mrb[0].mxu0
        %v1501 = vadd.f32 0.0, %v1500
        %v1502 = vpop.f32.mrb[0].mxu0
        %v1503 = vpop.f32.mrb[0].mxu0
        %v1504 = vadd.f32 0.0, %v1503
        %v1505 = vpop.f32.mrb[0].mxu0
        %1506 = vmatprep.mubr.bf16.mxu0 0
        %1507 = vmatmul.mubr.bf16.gmra.mrb[0].mxu0 %v1379
        %v1508 = vpop.f32.mrb[0].mxu0
        %v1509 = vadd.f32 0.0, %v1508
        %v1510 = vpop.f32.mrb[0].mxu0
        %v1511 = vpop.f32.mrb[0].mxu0
        %v1512 = vadd.f32 0.0, %v1511
        %v1513 = vpop.f32.mrb[0].mxu0
        %1514 = vmatprep.mubr.bf16.mxu0 0
        %1515 = vmatmul.mubr.bf16.gmra.mrb[0].mxu0 %v1382
        %v1516 = vpop.f32.mrb[0].mxu0
        %v1517 = vadd.f32 0.0, %v1516
        %v1518 = vpop.f32.mrb[0].mxu0
        %v1519 = vpop.f32.mrb[0].mxu0
        %v1520 = vadd.f32 0.0, %v1519
        %v1521 = vpop.f32.mrb[0].mxu0
        %1522 = vmatprep.mubr.bf16.mxu0 0
        %1523 = vmatmul.mubr.bf16.gmra.mrb[0].mxu0 %v1385
        %v1524 = vpop.f32.mrb[0].mxu0
        %v1525 = vadd.f32 0.0, %v1524
        %v1526 = vpop.f32.mrb[0].mxu0
        %v1527 = vpop.f32.mrb[0].mxu0
        %v1528 = vadd.f32 0.0, %v1527
        %v1529 = vpop.f32.mrb[0].mxu0
        %1530 = vmatprep.mubr.bf16.mxu0 0
        %1531 = vmatmul.mubr.bf16.gmra.mrb[0].mxu0 %v1388
        %v1532 = vpop.f32.mrb[0].mxu0
        %v1533 = vadd.f32 0.0, %v1532
        %v1534 = vpop.f32.mrb[0].mxu0
        %v1535 = vpop.f32.mrb[0].mxu0
        %v1536 = vadd.f32 0.0, %v1535
        %v1537 = vpop.f32.mrb[0].mxu0
        %1538 = vmatprep.mubr.bf16.mxu0 0
        %1539 = vmatmul.mubr.bf16.gmra.mrb[0].mxu0 %v1391
        %v1540 = vpop.f32.mrb[0].mxu0
        %v1541 = vadd.f32 0.0, %v1540
        %v1542 = vpop.f32.mrb[0].mxu0
        %v1543 = vpop.f32.mrb[0].mxu0
        %v1544 = vadd.f32 0.0, %v1543
        %v1545 = vpop.f32.mrb[0].mxu0
        %1546 = vmatprep.mubr.bf16.mxu0 0
        %1547 = vmatmul.mubr.bf16.gmra.mrb[0].mxu0 %v1394
        %v1548 = vpop.f32.mrb[0].mxu0
        %v1549 = vadd.f32 0.0, %v1548
        %v1550 = vpop.f32.mrb[0].mxu0
        %v1551 = vpop.f32.mrb[0].mxu0
        %v1552 = vadd.f32 0.0, %v1551
        %v1553 = vpop.f32.mrb[0].mxu0
        %1554 = vmatprep.mubr.bf16.mxu0 0
        %1555 = vmatmul.mubr.bf16.gmra.mrb[0].mxu0 %v1397
        %v1556 = vpop.f32.mrb[0].mxu0
        %v1557 = vadd.f32 0.0, %v1556
        %v1558 = vpop.f32.mrb[0].mxu0
        %v1559 = vpop.f32.mrb[0].mxu0
        %v1560 = vadd.f32 0.0, %v1559
        %v1561 = vpop.f32.mrb[0].mxu0
        %1562 = vdwg.mxu0
        %v1563 = vadd.f32 %v1205, %v1437
        %v1564 = vadd.f32 %v1206, %v1440
        %v1565 = vadd.f32 %v1207, %v1445
        %v1566 = vadd.f32 %v1208, %v1448
        %v1567 = vadd.f32 %v1209, %v1453
        %v1568 = vadd.f32 %v1210, %v1456
        %v1569 = vadd.f32 %v1211, %v1461
        %v1570 = vadd.f32 %v1212, %v1464
        %v1571 = vadd.f32 %v1213, %v1469
        %v1572 = vadd.f32 %v1214, %v1472
        %v1573 = vadd.f32 %v1215, %v1477
        %v1574 = vadd.f32 %v1216, %v1480
        %v1575 = vadd.f32 %v1217, %v1485
        %v1576 = vadd.f32 %v1218, %v1488
        %v1577 = vadd.f32 %v1219, %v1493
        %v1578 = vadd.f32 %v1220, %v1496
        %v1579 = vadd.f32 %v1221, %v1501
        %v1580 = vadd.f32 %v1222, %v1504
        %v1581 = vadd.f32 %v1223, %v1509
        %v1582 = vadd.f32 %v1224, %v1512
        %v1583 = vadd.f32 %v1225, %v1517
        %v1584 = vadd.f32 %v1226, %v1520
        %v1585 = vadd.f32 %v1227, %v1525
        %v1586 = vadd.f32 %v1228, %v1528
        %v1587 = vadd.f32 %v1229, %v1533
        %v1588 = vadd.f32 %v1230, %v1536
        %v1589 = vadd.f32 %v1231, %v1541
        %v1590 = vadd.f32 %v1232, %v1544
        %v1591 = vadd.f32 %v1233, %v1549
        %v1592 = vadd.f32 %v1234, %v1552
        %v1593 = vadd.f32 %v1235, %v1557
        %v1594 = vadd.f32 %v1236, %v1560
        %v1595 = vld [vmem:[%s257 + $0x8] sm:$0xf]
        %v1596 = vld [vmem:[%s257 + $0xc] sm:$0xf]
        %v1597 = vld [vmem:[%s257 + $0x10] sm:$0xf]
        %v1598 = vld [vmem:[%s257 + $0x14] sm:$0xf]
        %v1599 = vld [vmem:[%s257 + $0x18] sm:$0xf]
        %v1600 = vld [vmem:[%s257 + $0x1c] sm:$0xf]
        %v1601 = vld [vmem:[%s257 + $0x20] sm:$0xf]
        %v1602 = vld [vmem:[%s257 + $0x24] sm:$0xf]
        %v1603 = vld [vmem:[%s257 + $0x28] sm:$0xf]
        %v1604 = vld [vmem:[%s257 + $0x2c] sm:$0xf]
        %v1605 = vld [vmem:[%s257 + $0x30] sm:$0xf]
        %v1606 = vld [vmem:[%s257 + $0x34] sm:$0xf]
        %v1607 = vld [vmem:[%s257 + $0x38] sm:$0xf]
        %v1608 = vld [vmem:[%s257 + $0x3c] sm:$0xf]
        %v1609 = vld [vmem:[%s257 + $0x40] sm:$0xf]
        %v1610 = vld [vmem:[%s257 + $0x44] sm:$0xf]
        %v1611 = vld [vmem:[%s257 + $0x48] sm:$0xf]
        %v1612 = vld [vmem:[%s257 + $0x4c] sm:$0xf]
        %v1613 = vld [vmem:[%s257 + $0x50] sm:$0xf]
        %v1614 = vld [vmem:[%s257 + $0x54] sm:$0xf]
        %v1615 = vld [vmem:[%s257 + $0x58] sm:$0xf]
        %v1616 = vld [vmem:[%s257 + $0x5c] sm:$0xf]
        %v1617 = vld [vmem:[%s257 + $0x60] sm:$0xf]
        %v1618 = vld [vmem:[%s257 + $0x64] sm:$0xf]
        %v1619 = vld [vmem:[%s257 + $0x68] sm:$0xf]
        %v1620 = vld [vmem:[%s257 + $0x6c] sm:$0xf]
        %v1621 = vld [vmem:[%s257 + $0x70] sm:$0xf]
        %v1622 = vld [vmem:[%s257 + $0x74] sm:$0xf]
        %v1623 = vld [vmem:[%s257 + $0x78] sm:$0xf]
        %v1624 = vld [vmem:[%s257 + $0x7c] sm:$0xf]
        %v1625 = vld [vmem:[%s257 + $0x80] sm:$0xf]
        %v1626 = vld [vmem:[%s257 + $0x84] sm:$0xf]
        %s1627 = scalar_lea.vmem %s1, 8
        %v1628 = vld [vmem:[%s1627] sm:$0x3]
        %v1661 = vunpack.c.l.b16 %v1595
        %v1662 = vunpack.c.l.b16 %v1596
        %v1663 = vunpack.c.l.b16 %v1597
        %v1664 = vunpack.c.l.b16 %v1598
        %v1665 = vunpack.c.l.b16 %v1599
        %v1666 = vunpack.c.l.b16 %v1600
        %v1667 = vunpack.c.l.b16 %v1601
        %v1668 = vunpack.c.l.b16 %v1602
        %v1669 = vunpack.c.l.b16 %v1603
        %v1670 = vunpack.c.l.b16 %v1604
        %v1671 = vunpack.c.l.b16 %v1605
        %v1672 = vunpack.c.l.b16 %v1606
        %v1673 = vunpack.c.l.b16 %v1607
        %v1674 = vunpack.c.l.b16 %v1608
        %v1675 = vunpack.c.l.b16 %v1609
        %v1676 = vunpack.c.l.b16 %v1610
        %v1677 = vunpack.c.l.b16 %v1611
        %v1678 = vunpack.c.l.b16 %v1612
        %v1679 = vunpack.c.l.b16 %v1613
        %v1680 = vunpack.c.l.b16 %v1614
        %v1681 = vunpack.c.l.b16 %v1615
        %v1682 = vunpack.c.l.b16 %v1616
        %v1683 = vunpack.c.l.b16 %v1617
        %v1684 = vunpack.c.l.b16 %v1618
        %v1685 = vunpack.c.l.b16 %v1619
        %v1686 = vunpack.c.l.b16 %v1620
        %v1687 = vunpack.c.l.b16 %v1621
        %v1688 = vunpack.c.l.b16 %v1622
        %v1689 = vunpack.c.l.b16 %v1623
        %v1690 = vunpack.c.l.b16 %v1624
        %v1691 = vunpack.c.l.b16 %v1625
        %v1692 = vunpack.c.l.b16 %v1626
        %v1693 = vpack.c.b16 %v1662, %v1661
        %v1694 = vpack.c.b16 %v1664, %v1663
        %v1695 = vpack.c.b16 %v1666, %v1665
        %v1696 = vpack.c.b16 %v1668, %v1667
        %v1697 = vpack.c.b16 %v1670, %v1669
        %v1698 = vpack.c.b16 %v1672, %v1671
        %v1699 = vpack.c.b16 %v1674, %v1673
        %v1700 = vpack.c.b16 %v1676, %v1675
        %v1701 = vpack.c.b16 %v1678, %v1677
        %v1702 = vpack.c.b16 %v1680, %v1679
        %v1703 = vpack.c.b16 %v1682, %v1681
        %v1704 = vpack.c.b16 %v1684, %v1683
        %v1705 = vpack.c.b16 %v1686, %v1685
        %v1706 = vpack.c.b16 %v1688, %v1687
        %v1707 = vpack.c.b16 %v1690, %v1689
        %v1708 = vpack.c.b16 %v1692, %v1691
        %v1710 = vsel %vm372, %v1693, 0
        %v1713 = vsel %vm372, %v1694, 0
        %v1716 = vsel %vm372, %v1695, 0
        %v1719 = vsel %vm372, %v1696, 0
        %v1722 = vsel %vm372, %v1697, 0
        %v1725 = vsel %vm372, %v1698, 0
        %v1728 = vsel %vm372, %v1699, 0
        %v1731 = vsel %vm372, %v1700, 0
        %v1734 = vsel %vm372, %v1701, 0
        %v1737 = vsel %vm372, %v1702, 0
        %v1740 = vsel %vm372, %v1703, 0
        %v1743 = vsel %vm372, %v1704, 0
        %v1746 = vsel %vm372, %v1705, 0
        %v1749 = vsel %vm372, %v1706, 0
        %v1752 = vsel %vm372, %v1707, 0
        %v1755 = vsel %vm372, %v1708, 0
        %v1758 = vsel %vm421, %v1628, 0
        %1760 = vmatprep.subr.bf16.mxu0 0
        %1761 = vmatpush1.bf16.msra.mxu0 %v1758
        %1762 = vmatprep.subr.bf16.mxu0 0
        %1763 = vmatpush1.bf16.msra.mxu0 0
        %1764 = vmatprep.subr.bf16.mxu0 0
        %1765 = vmatpush1.bf16.msra.mxu0 0
        %1766 = vmatprep.subr.bf16.mxu0 0
        %1767 = vmatpush1.bf16.msra.mxu0 0
        %1768 = vmatprep.subr.bf16.mxu0 0
        %1769 = vmatpush1.bf16.msra.mxu0 0
        %1770 = vmatprep.subr.bf16.mxu0 0
        %1771 = vmatpush1.bf16.msra.mxu0 0
        %1772 = vmatprep.subr.bf16.mxu0 0
        %1773 = vmatpush1.bf16.msra.mxu0 0
        %1774 = vmatprep.subr.bf16.mxu0 0
        %1775 = vmatpush1.bf16.msra.mxu0 0
        %1776 = vmatprep.subr.bf16.mxu0 0
        %1777 = vmatpush1.bf16.msra.mxu0 0
        %1778 = vmatprep.subr.bf16.mxu0 0
        %1779 = vmatpush1.bf16.msra.mxu0 0
        %1780 = vmatprep.subr.bf16.mxu0 0
        %1781 = vmatpush1.bf16.msra.mxu0 0
        %1782 = vmatprep.subr.bf16.mxu0 0
        %1783 = vmatpush1.bf16.msra.mxu0 0
        %1784 = vmatprep.subr.bf16.mxu0 0
        %1785 = vmatpush1.bf16.msra.mxu0 0
        %1786 = vmatprep.subr.bf16.mxu0 0
        %1787 = vmatpush1.bf16.msra.mxu0 0
        %1788 = vmatprep.subr.bf16.mxu0 0
        %1789 = vmatpush1.bf16.msra.mxu0 0
        %1790 = vmatprep.subr.bf16.mxu0 0
        %1791 = vmatpush1.bf16.msra.mxu0 0
        %1792 = vmatprep.mubr.bf16.mxu0 0
        %1793 = vmatmul.mubr.bf16.gmra.mrb[0].mxu0 %v1710
        %v1794 = vpop.f32.mrb[0].mxu0
        %v1795 = vadd.f32 0.0, %v1794
        %v1796 = vpop.f32.mrb[0].mxu0
        %v1797 = vpop.f32.mrb[0].mxu0
        %v1798 = vadd.f32 0.0, %v1797
        %v1799 = vpop.f32.mrb[0].mxu0
        %1800 = vmatprep.mubr.bf16.mxu0 0
        %1801 = vmatmul.mubr.bf16.gmra.mrb[0].mxu0 %v1713
        %v1802 = vpop.f32.mrb[0].mxu0
        %v1803 = vadd.f32 0.0, %v1802
        %v1804 = vpop.f32.mrb[0].mxu0
        %v1805 = vpop.f32.mrb[0].mxu0
        %v1806 = vadd.f32 0.0, %v1805
        %v1807 = vpop.f32.mrb[0].mxu0
        %1808 = vmatprep.mubr.bf16.mxu0 0
        %1809 = vmatmul.mubr.bf16.gmra.mrb[0].mxu0 %v1716
        %v1810 = vpop.f32.mrb[0].mxu0
        %v1811 = vadd.f32 0.0, %v1810
        %v1812 = vpop.f32.mrb[0].mxu0
        %v1813 = vpop.f32.mrb[0].mxu0
        %v1814 = vadd.f32 0.0, %v1813
        %v1815 = vpop.f32.mrb[0].mxu0
        %1816 = vmatprep.mubr.bf16.mxu0 0
        %1817 = vmatmul.mubr.bf16.gmra.mrb[0].mxu0 %v1719
        %v1818 = vpop.f32.mrb[0].mxu0
        %v1819 = vadd.f32 0.0, %v1818
        %v1820 = vpop.f32.mrb[0].mxu0
        %v1821 = vpop.f32.mrb[0].mxu0
        %v1822 = vadd.f32 0.0, %v1821
        %v1823 = vpop.f32.mrb[0].mxu0
        %1824 = vmatprep.mubr.bf16.mxu0 0
        %1825 = vmatmul.mubr.bf16.gmra.mrb[0].mxu0 %v1722
        %v1826 = vpop.f32.mrb[0].mxu0
        %v1827 = vadd.f32 0.0, %v1826
        %v1828 = vpop.f32.mrb[0].mxu0
        %v1829 = vpop.f32.mrb[0].mxu0
        %v1830 = vadd.f32 0.0, %v1829
        %v1831 = vpop.f32.mrb[0].mxu0
        %1832 = vmatprep.mubr.bf16.mxu0 0
        %1833 = vmatmul.mubr.bf16.gmra.mrb[0].mxu0 %v1725
        %v1834 = vpop.f32.mrb[0].mxu0
        %v1835 = vadd.f32 0.0, %v1834
        %v1836 = vpop.f32.mrb[0].mxu0
        %v1837 = vpop.f32.mrb[0].mxu0
        %v1838 = vadd.f32 0.0, %v1837
        %v1839 = vpop.f32.mrb[0].mxu0
        %1840 = vmatprep.mubr.bf16.mxu0 0
        %1841 = vmatmul.mubr.bf16.gmra.mrb[0].mxu0 %v1728
        %v1842 = vpop.f32.mrb[0].mxu0
        %v1843 = vadd.f32 0.0, %v1842
        %v1844 = vpop.f32.mrb[0].mxu0
        %v1845 = vpop.f32.mrb[0].mxu0
        %v1846 = vadd.f32 0.0, %v1845
        %v1847 = vpop.f32.mrb[0].mxu0
        %1848 = vmatprep.mubr.bf16.mxu0 0
        %1849 = vmatmul.mubr.bf16.gmra.mrb[0].mxu0 %v1731
        %v1850 = vpop.f32.mrb[0].mxu0
        %v1851 = vadd.f32 0.0, %v1850
        %v1852 = vpop.f32.mrb[0].mxu0
        %v1853 = vpop.f32.mrb[0].mxu0
        %v1854 = vadd.f32 0.0, %v1853
        %v1855 = vpop.f32.mrb[0].mxu0
        %1856 = vmatprep.mubr.bf16.mxu0 0
        %1857 = vmatmul.mubr.bf16.gmra.mrb[0].mxu0 %v1734
        %v1858 = vpop.f32.mrb[0].mxu0
        %v1859 = vadd.f32 0.0, %v1858
        %v1860 = vpop.f32.mrb[0].mxu0
        %v1861 = vpop.f32.mrb[0].mxu0
        %v1862 = vadd.f32 0.0, %v1861
        %v1863 = vpop.f32.mrb[0].mxu0
        %1864 = vmatprep.mubr.bf16.mxu0 0
        %1865 = vmatmul.mubr.bf16.gmra.mrb[0].mxu0 %v1737
        %v1866 = vpop.f32.mrb[0].mxu0
        %v1867 = vadd.f32 0.0, %v1866
        %v1868 = vpop.f32.mrb[0].mxu0
        %v1869 = vpop.f32.mrb[0].mxu0
        %v1870 = vadd.f32 0.0, %v1869
        %v1871 = vpop.f32.mrb[0].mxu0
        %1872 = vmatprep.mubr.bf16.mxu0 0
        %1873 = vmatmul.mubr.bf16.gmra.mrb[0].mxu0 %v1740
        %v1874 = vpop.f32.mrb[0].mxu0
        %v1875 = vadd.f32 0.0, %v1874
        %v1876 = vpop.f32.mrb[0].mxu0
        %v1877 = vpop.f32.mrb[0].mxu0
        %v1878 = vadd.f32 0.0, %v1877
        %v1879 = vpop.f32.mrb[0].mxu0
        %1880 = vmatprep.mubr.bf16.mxu0 0
        %1881 = vmatmul.mubr.bf16.gmra.mrb[0].mxu0 %v1743
        %v1882 = vpop.f32.mrb[0].mxu0
        %v1883 = vadd.f32 0.0, %v1882
        %v1884 = vpop.f32.mrb[0].mxu0
        %v1885 = vpop.f32.mrb[0].mxu0
        %v1886 = vadd.f32 0.0, %v1885
        %v1887 = vpop.f32.mrb[0].mxu0
        %1888 = vmatprep.mubr.bf16.mxu0 0
        %1889 = vmatmul.mubr.bf16.gmra.mrb[0].mxu0 %v1746
        %v1890 = vpop.f32.mrb[0].mxu0
        %v1891 = vadd.f32 0.0, %v1890
        %v1892 = vpop.f32.mrb[0].mxu0
        %v1893 = vpop.f32.mrb[0].mxu0
        %v1894 = vadd.f32 0.0, %v1893
        %v1895 = vpop.f32.mrb[0].mxu0
        %1896 = vmatprep.mubr.bf16.mxu0 0
        %1897 = vmatmul.mubr.bf16.gmra.mrb[0].mxu0 %v1749
        %v1898 = vpop.f32.mrb[0].mxu0
        %v1899 = vadd.f32 0.0, %v1898
        %v1900 = vpop.f32.mrb[0].mxu0
        %v1901 = vpop.f32.mrb[0].mxu0
        %v1902 = vadd.f32 0.0, %v1901
        %v1903 = vpop.f32.mrb[0].mxu0
        %1904 = vmatprep.mubr.bf16.mxu0 0
        %1905 = vmatmul.mubr.bf16.gmra.mrb[0].mxu0 %v1752
        %v1906 = vpop.f32.mrb[0].mxu0
        %v1907 = vadd.f32 0.0, %v1906
        %v1908 = vpop.f32.mrb[0].mxu0
        %v1909 = vpop.f32.mrb[0].mxu0
        %v1910 = vadd.f32 0.0, %v1909
        %v1911 = vpop.f32.mrb[0].mxu0
        %1912 = vmatprep.mubr.bf16.mxu0 0
        %1913 = vmatmul.mubr.bf16.gmra.mrb[0].mxu0 %v1755
        %v1914 = vpop.f32.mrb[0].mxu0
        %v1915 = vadd.f32 0.0, %v1914
        %v1916 = vpop.f32.mrb[0].mxu0
        %v1917 = vpop.f32.mrb[0].mxu0
        %v1918 = vadd.f32 0.0, %v1917
        %v1919 = vpop.f32.mrb[0].mxu0
        %1920 = vdwg.mxu0
        %v1921 = vadd.f32 %v1563, %v1795
        %v1922 = vadd.f32 %v1564, %v1798
        %v1923 = vadd.f32 %v1565, %v1803
        %v1924 = vadd.f32 %v1566, %v1806
        %v1925 = vadd.f32 %v1567, %v1811
        %v1926 = vadd.f32 %v1568, %v1814
        %v1927 = vadd.f32 %v1569, %v1819
        %v1928 = vadd.f32 %v1570, %v1822
        %v1929 = vadd.f32 %v1571, %v1827
        %v1930 = vadd.f32 %v1572, %v1830
        %v1931 = vadd.f32 %v1573, %v1835
        %v1932 = vadd.f32 %v1574, %v1838
        %v1933 = vadd.f32 %v1575, %v1843
        %v1934 = vadd.f32 %v1576, %v1846
        %v1935 = vadd.f32 %v1577, %v1851
        %v1936 = vadd.f32 %v1578, %v1854
        %v1937 = vadd.f32 %v1579, %v1859
        %v1938 = vadd.f32 %v1580, %v1862
        %v1939 = vadd.f32 %v1581, %v1867
        %v1940 = vadd.f32 %v1582, %v1870
        %v1941 = vadd.f32 %v1583, %v1875
        %v1942 = vadd.f32 %v1584, %v1878
        %v1943 = vadd.f32 %v1585, %v1883
        %v1944 = vadd.f32 %v1586, %v1886
        %v1945 = vadd.f32 %v1587, %v1891
        %v1946 = vadd.f32 %v1588, %v1894
        %v1947 = vadd.f32 %v1589, %v1899
        %v1948 = vadd.f32 %v1590, %v1902
        %v1949 = vadd.f32 %v1591, %v1907
        %v1950 = vadd.f32 %v1592, %v1910
        %v1951 = vadd.f32 %v1593, %v1915
        %v1952 = vadd.f32 %v1594, %v1918
        %v1953 = vld [vmem:[%s878 + $0x8] sm:$0xf]
        %v1954 = vld [vmem:[%s878 + $0xc] sm:$0xf]
        %v1955 = vld [vmem:[%s878 + $0x10] sm:$0xf]
        %v1956 = vld [vmem:[%s878 + $0x14] sm:$0xf]
        %v1957 = vld [vmem:[%s878 + $0x18] sm:$0xf]
        %v1958 = vld [vmem:[%s878 + $0x1c] sm:$0xf]
        %v1959 = vld [vmem:[%s878 + $0x20] sm:$0xf]
        %v1960 = vld [vmem:[%s878 + $0x24] sm:$0xf]
        %v1961 = vld [vmem:[%s878 + $0x28] sm:$0xf]
        %v1962 = vld [vmem:[%s878 + $0x2c] sm:$0xf]
        %v1963 = vld [vmem:[%s878 + $0x30] sm:$0xf]
        %v1964 = vld [vmem:[%s878 + $0x34] sm:$0xf]
        %v1965 = vld [vmem:[%s878 + $0x38] sm:$0xf]
        %v1966 = vld [vmem:[%s878 + $0x3c] sm:$0xf]
        %v1967 = vld [vmem:[%s878 + $0x40] sm:$0xf]
        %v1968 = vld [vmem:[%s878 + $0x44] sm:$0xf]
        %v1969 = vld [vmem:[%s878 + $0x48] sm:$0xf]
        %v1970 = vld [vmem:[%s878 + $0x4c] sm:$0xf]
        %v1971 = vld [vmem:[%s878 + $0x50] sm:$0xf]
        %v1972 = vld [vmem:[%s878 + $0x54] sm:$0xf]
        %v1973 = vld [vmem:[%s878 + $0x58] sm:$0xf]
        %v1974 = vld [vmem:[%s878 + $0x5c] sm:$0xf]
        %v1975 = vld [vmem:[%s878 + $0x60] sm:$0xf]
        %v1976 = vld [vmem:[%s878 + $0x64] sm:$0xf]
        %v1977 = vld [vmem:[%s878 + $0x68] sm:$0xf]
        %v1978 = vld [vmem:[%s878 + $0x6c] sm:$0xf]
        %v1979 = vld [vmem:[%s878 + $0x70] sm:$0xf]
        %v1980 = vld [vmem:[%s878 + $0x74] sm:$0xf]
        %v1981 = vld [vmem:[%s878 + $0x78] sm:$0xf]
        %v1982 = vld [vmem:[%s878 + $0x7c] sm:$0xf]
        %v1983 = vld [vmem:[%s878 + $0x80] sm:$0xf]
        %v1984 = vld [vmem:[%s878 + $0x84] sm:$0xf]
        %s1985 = scalar_lea.vmem %s1, 10
        %v1986 = vld [vmem:[%s1985] sm:$0x3]
        %v2019 = vunpack.c.l.b16 %v1953
        %v2020 = vunpack.c.l.b16 %v1954
        %v2021 = vunpack.c.l.b16 %v1955
        %v2022 = vunpack.c.l.b16 %v1956
        %v2023 = vunpack.c.l.b16 %v1957
        %v2024 = vunpack.c.l.b16 %v1958
        %v2025 = vunpack.c.l.b16 %v1959
        %v2026 = vunpack.c.l.b16 %v1960
        %v2027 = vunpack.c.l.b16 %v1961
        %v2028 = vunpack.c.l.b16 %v1962
        %v2029 = vunpack.c.l.b16 %v1963
        %v2030 = vunpack.c.l.b16 %v1964
        %v2031 = vunpack.c.l.b16 %v1965
        %v2032 = vunpack.c.l.b16 %v1966
        %v2033 = vunpack.c.l.b16 %v1967
        %v2034 = vunpack.c.l.b16 %v1968
        %v2035 = vunpack.c.l.b16 %v1969
        %v2036 = vunpack.c.l.b16 %v1970
        %v2037 = vunpack.c.l.b16 %v1971
        %v2038 = vunpack.c.l.b16 %v1972
        %v2039 = vunpack.c.l.b16 %v1973
        %v2040 = vunpack.c.l.b16 %v1974
        %v2041 = vunpack.c.l.b16 %v1975
        %v2042 = vunpack.c.l.b16 %v1976
        %v2043 = vunpack.c.l.b16 %v1977
        %v2044 = vunpack.c.l.b16 %v1978
        %v2045 = vunpack.c.l.b16 %v1979
        %v2046 = vunpack.c.l.b16 %v1980
        %v2047 = vunpack.c.l.b16 %v1981
        %v2048 = vunpack.c.l.b16 %v1982
        %v2049 = vunpack.c.l.b16 %v1983
        %v2050 = vunpack.c.l.b16 %v1984
        %v2051 = vpack.c.b16 %v2020, %v2019
        %v2052 = vpack.c.b16 %v2022, %v2021
        %v2053 = vpack.c.b16 %v2024, %v2023
        %v2054 = vpack.c.b16 %v2026, %v2025
        %v2055 = vpack.c.b16 %v2028, %v2027
        %v2056 = vpack.c.b16 %v2030, %v2029
        %v2057 = vpack.c.b16 %v2032, %v2031
        %v2058 = vpack.c.b16 %v2034, %v2033
        %v2059 = vpack.c.b16 %v2036, %v2035
        %v2060 = vpack.c.b16 %v2038, %v2037
        %v2061 = vpack.c.b16 %v2040, %v2039
        %v2062 = vpack.c.b16 %v2042, %v2041
        %v2063 = vpack.c.b16 %v2044, %v2043
        %v2064 = vpack.c.b16 %v2046, %v2045
        %v2065 = vpack.c.b16 %v2048, %v2047
        %v2066 = vpack.c.b16 %v2050, %v2049
        %v2068 = vsel %vm372, %v2051, 0
        %v2071 = vsel %vm372, %v2052, 0
        %v2074 = vsel %vm372, %v2053, 0
        %v2077 = vsel %vm372, %v2054, 0
        %v2080 = vsel %vm372, %v2055, 0
        %v2083 = vsel %vm372, %v2056, 0
        %v2086 = vsel %vm372, %v2057, 0
        %v2089 = vsel %vm372, %v2058, 0
        %v2092 = vsel %vm372, %v2059, 0
        %v2095 = vsel %vm372, %v2060, 0
        %v2098 = vsel %vm372, %v2061, 0
        %v2101 = vsel %vm372, %v2062, 0
        %v2104 = vsel %vm372, %v2063, 0
        %v2107 = vsel %vm372, %v2064, 0
        %v2110 = vsel %vm372, %v2065, 0
        %v2113 = vsel %vm372, %v2066, 0
        %v2116 = vsel %vm421, %v1986, 0
        %2118 = vmatprep.subr.bf16.mxu0 0
        %2119 = vmatpush1.bf16.msra.mxu0 %v2116
        %2120 = vmatprep.subr.bf16.mxu0 0
        %2121 = vmatpush1.bf16.msra.mxu0 0
        %2122 = vmatprep.subr.bf16.mxu0 0
        %2123 = vmatpush1.bf16.msra.mxu0 0
        %2124 = vmatprep.subr.bf16.mxu0 0
        %2125 = vmatpush1.bf16.msra.mxu0 0
        %2126 = vmatprep.subr.bf16.mxu0 0
        %2127 = vmatpush1.bf16.msra.mxu0 0
        %2128 = vmatprep.subr.bf16.mxu0 0
        %2129 = vmatpush1.bf16.msra.mxu0 0
        %2130 = vmatprep.subr.bf16.mxu0 0
        %2131 = vmatpush1.bf16.msra.mxu0 0
        %2132 = vmatprep.subr.bf16.mxu0 0
        %2133 = vmatpush1.bf16.msra.mxu0 0
        %2134 = vmatprep.subr.bf16.mxu0 0
        %2135 = vmatpush1.bf16.msra.mxu0 0
        %2136 = vmatprep.subr.bf16.mxu0 0
        %2137 = vmatpush1.bf16.msra.mxu0 0
        %2138 = vmatprep.subr.bf16.mxu0 0
        %2139 = vmatpush1.bf16.msra.mxu0 0
        %2140 = vmatprep.subr.bf16.mxu0 0
        %2141 = vmatpush1.bf16.msra.mxu0 0
        %2142 = vmatprep.subr.bf16.mxu0 0
        %2143 = vmatpush1.bf16.msra.mxu0 0
        %2144 = vmatprep.subr.bf16.mxu0 0
        %2145 = vmatpush1.bf16.msra.mxu0 0
        %2146 = vmatprep.subr.bf16.mxu0 0
        %2147 = vmatpush1.bf16.msra.mxu0 0
        %2148 = vmatprep.subr.bf16.mxu0 0
        %2149 = vmatpush1.bf16.msra.mxu0 0
        %2150 = vmatprep.mubr.bf16.mxu0 0
        %2151 = vmatmul.mubr.bf16.gmra.mrb[0].mxu0 %v2068
        %v2152 = vpop.f32.mrb[0].mxu0
        %v2153 = vadd.f32 0.0, %v2152
        %v2154 = vpop.f32.mrb[0].mxu0
        %v2155 = vpop.f32.mrb[0].mxu0
        %v2156 = vadd.f32 0.0, %v2155
        %v2157 = vpop.f32.mrb[0].mxu0
        %2158 = vmatprep.mubr.bf16.mxu0 0
        %2159 = vmatmul.mubr.bf16.gmra.mrb[0].mxu0 %v2071
        %v2160 = vpop.f32.mrb[0].mxu0
        %v2161 = vadd.f32 0.0, %v2160
        %v2162 = vpop.f32.mrb[0].mxu0
        %v2163 = vpop.f32.mrb[0].mxu0
        %v2164 = vadd.f32 0.0, %v2163
        %v2165 = vpop.f32.mrb[0].mxu0
        %2166 = vmatprep.mubr.bf16.mxu0 0
        %2167 = vmatmul.mubr.bf16.gmra.mrb[0].mxu0 %v2074
        %v2168 = vpop.f32.mrb[0].mxu0
        %v2169 = vadd.f32 0.0, %v2168
        %v2170 = vpop.f32.mrb[0].mxu0
        %v2171 = vpop.f32.mrb[0].mxu0
        %v2172 = vadd.f32 0.0, %v2171
        %v2173 = vpop.f32.mrb[0].mxu0
        %2174 = vmatprep.mubr.bf16.mxu0 0
        %2175 = vmatmul.mubr.bf16.gmra.mrb[0].mxu0 %v2077
        %v2176 = vpop.f32.mrb[0].mxu0
        %v2177 = vadd.f32 0.0, %v2176
        %v2178 = vpop.f32.mrb[0].mxu0
        %v2179 = vpop.f32.mrb[0].mxu0
        %v2180 = vadd.f32 0.0, %v2179
        %v2181 = vpop.f32.mrb[0].mxu0
        %2182 = vmatprep.mubr.bf16.mxu0 0
        %2183 = vmatmul.mubr.bf16.gmra.mrb[0].mxu0 %v2080
        %v2184 = vpop.f32.mrb[0].mxu0
        %v2185 = vadd.f32 0.0, %v2184
        %v2186 = vpop.f32.mrb[0].mxu0
        %v2187 = vpop.f32.mrb[0].mxu0
        %v2188 = vadd.f32 0.0, %v2187
        %v2189 = vpop.f32.mrb[0].mxu0
        %2190 = vmatprep.mubr.bf16.mxu0 0
        %2191 = vmatmul.mubr.bf16.gmra.mrb[0].mxu0 %v2083
        %v2192 = vpop.f32.mrb[0].mxu0
        %v2193 = vadd.f32 0.0, %v2192
        %v2194 = vpop.f32.mrb[0].mxu0
        %v2195 = vpop.f32.mrb[0].mxu0
        %v2196 = vadd.f32 0.0, %v2195
        %v2197 = vpop.f32.mrb[0].mxu0
        %2198 = vmatprep.mubr.bf16.mxu0 0
        %2199 = vmatmul.mubr.bf16.gmra.mrb[0].mxu0 %v2086
        %v2200 = vpop.f32.mrb[0].mxu0
        %v2201 = vadd.f32 0.0, %v2200
        %v2202 = vpop.f32.mrb[0].mxu0
        %v2203 = vpop.f32.mrb[0].mxu0
        %v2204 = vadd.f32 0.0, %v2203
        %v2205 = vpop.f32.mrb[0].mxu0
        %2206 = vmatprep.mubr.bf16.mxu0 0
        %2207 = vmatmul.mubr.bf16.gmra.mrb[0].mxu0 %v2089
        %v2208 = vpop.f32.mrb[0].mxu0
        %v2209 = vadd.f32 0.0, %v2208
        %v2210 = vpop.f32.mrb[0].mxu0
        %v2211 = vpop.f32.mrb[0].mxu0
        %v2212 = vadd.f32 0.0, %v2211
        %v2213 = vpop.f32.mrb[0].mxu0
        %2214 = vmatprep.mubr.bf16.mxu0 0
        %2215 = vmatmul.mubr.bf16.gmra.mrb[0].mxu0 %v2092
        %v2216 = vpop.f32.mrb[0].mxu0
        %v2217 = vadd.f32 0.0, %v2216
        %v2218 = vpop.f32.mrb[0].mxu0
        %v2219 = vpop.f32.mrb[0].mxu0
        %v2220 = vadd.f32 0.0, %v2219
        %v2221 = vpop.f32.mrb[0].mxu0
        %2222 = vmatprep.mubr.bf16.mxu0 0
        %2223 = vmatmul.mubr.bf16.gmra.mrb[0].mxu0 %v2095
        %v2224 = vpop.f32.mrb[0].mxu0
        %v2225 = vadd.f32 0.0, %v2224
        %v2226 = vpop.f32.mrb[0].mxu0
        %v2227 = vpop.f32.mrb[0].mxu0
        %v2228 = vadd.f32 0.0, %v2227
        %v2229 = vpop.f32.mrb[0].mxu0
        %2230 = vmatprep.mubr.bf16.mxu0 0
        %2231 = vmatmul.mubr.bf16.gmra.mrb[0].mxu0 %v2098
        %v2232 = vpop.f32.mrb[0].mxu0
        %v2233 = vadd.f32 0.0, %v2232
        %v2234 = vpop.f32.mrb[0].mxu0
        %v2235 = vpop.f32.mrb[0].mxu0
        %v2236 = vadd.f32 0.0, %v2235
        %v2237 = vpop.f32.mrb[0].mxu0
        %2238 = vmatprep.mubr.bf16.mxu0 0
        %2239 = vmatmul.mubr.bf16.gmra.mrb[0].mxu0 %v2101
        %v2240 = vpop.f32.mrb[0].mxu0
        %v2241 = vadd.f32 0.0, %v2240
        %v2242 = vpop.f32.mrb[0].mxu0
        %v2243 = vpop.f32.mrb[0].mxu0
        %v2244 = vadd.f32 0.0, %v2243
        %v2245 = vpop.f32.mrb[0].mxu0
        %2246 = vmatprep.mubr.bf16.mxu0 0
        %2247 = vmatmul.mubr.bf16.gmra.mrb[0].mxu0 %v2104
        %v2248 = vpop.f32.mrb[0].mxu0
        %v2249 = vadd.f32 0.0, %v2248
        %v2250 = vpop.f32.mrb[0].mxu0
        %v2251 = vpop.f32.mrb[0].mxu0
        %v2252 = vadd.f32 0.0, %v2251
        %v2253 = vpop.f32.mrb[0].mxu0
        %2254 = vmatprep.mubr.bf16.mxu0 0
        %2255 = vmatmul.mubr.bf16.gmra.mrb[0].mxu0 %v2107
        %v2256 = vpop.f32.mrb[0].mxu0
        %v2257 = vadd.f32 0.0, %v2256
        %v2258 = vpop.f32.mrb[0].mxu0
        %v2259 = vpop.f32.mrb[0].mxu0
        %v2260 = vadd.f32 0.0, %v2259
        %v2261 = vpop.f32.mrb[0].mxu0
        %2262 = vmatprep.mubr.bf16.mxu0 0
        %2263 = vmatmul.mubr.bf16.gmra.mrb[0].mxu0 %v2110
        %v2264 = vpop.f32.mrb[0].mxu0
        %v2265 = vadd.f32 0.0, %v2264
        %v2266 = vpop.f32.mrb[0].mxu0
        %v2267 = vpop.f32.mrb[0].mxu0
        %v2268 = vadd.f32 0.0, %v2267
        %v2269 = vpop.f32.mrb[0].mxu0
        %2270 = vmatprep.mubr.bf16.mxu0 0
        %2271 = vmatmul.mubr.bf16.gmra.mrb[0].mxu0 %v2113
        %v2272 = vpop.f32.mrb[0].mxu0
        %v2273 = vadd.f32 0.0, %v2272
        %v2274 = vpop.f32.mrb[0].mxu0
        %v2275 = vpop.f32.mrb[0].mxu0
        %v2276 = vadd.f32 0.0, %v2275
        %v2277 = vpop.f32.mrb[0].mxu0
        %2278 = vdwg.mxu0
        %v2279 = vadd.f32 %v1921, %v2153
        %v2280 = vadd.f32 %v1922, %v2156
        %v2281 = vadd.f32 %v1923, %v2161
        %v2282 = vadd.f32 %v1924, %v2164
        %v2283 = vadd.f32 %v1925, %v2169
        %v2284 = vadd.f32 %v1926, %v2172
        %v2285 = vadd.f32 %v1927, %v2177
        %v2286 = vadd.f32 %v1928, %v2180
        %v2287 = vadd.f32 %v1929, %v2185
        %v2288 = vadd.f32 %v1930, %v2188
        %v2289 = vadd.f32 %v1931, %v2193
        %v2290 = vadd.f32 %v1932, %v2196
        %v2291 = vadd.f32 %v1933, %v2201
        %v2292 = vadd.f32 %v1934, %v2204
        %v2293 = vadd.f32 %v1935, %v2209
        %v2294 = vadd.f32 %v1936, %v2212
        %v2295 = vadd.f32 %v1937, %v2217
        %v2296 = vadd.f32 %v1938, %v2220
        %v2297 = vadd.f32 %v1939, %v2225
        %v2298 = vadd.f32 %v1940, %v2228
        %v2299 = vadd.f32 %v1941, %v2233
        %v2300 = vadd.f32 %v1942, %v2236
        %v2301 = vadd.f32 %v1943, %v2241
        %v2302 = vadd.f32 %v1944, %v2244
        %v2303 = vadd.f32 %v1945, %v2249
        %v2304 = vadd.f32 %v1946, %v2252
        %v2305 = vadd.f32 %v1947, %v2257
        %v2306 = vadd.f32 %v1948, %v2260
        %v2307 = vadd.f32 %v1949, %v2265
        %v2308 = vadd.f32 %v1950, %v2268
        %v2309 = vadd.f32 %v1951, %v2273
        %v2310 = vadd.f32 %v1952, %v2276
        %v2311 = vld [vmem:[%s222 + $0x10] sm:$0xf]
        %v2312 = vld [vmem:[%s222 + $0x14] sm:$0xf]
        %v2313 = vld [vmem:[%s222 + $0x18] sm:$0xf]
        %v2314 = vld [vmem:[%s222 + $0x1c] sm:$0xf]
        %v2315 = vld [vmem:[%s222 + $0x20] sm:$0xf]
        %v2316 = vld [vmem:[%s222 + $0x24] sm:$0xf]
        %v2317 = vld [vmem:[%s222 + $0x28] sm:$0xf]
        %v2318 = vld [vmem:[%s222 + $0x2c] sm:$0xf]
        %v2319 = vld [vmem:[%s222 + $0x30] sm:$0xf]
        %v2320 = vld [vmem:[%s222 + $0x34] sm:$0xf]
        %v2321 = vld [vmem:[%s222 + $0x38] sm:$0xf]
        %v2322 = vld [vmem:[%s222 + $0x3c] sm:$0xf]
        %v2323 = vld [vmem:[%s222 + $0x40] sm:$0xf]
        %v2324 = vld [vmem:[%s222 + $0x44] sm:$0xf]
        %v2325 = vld [vmem:[%s222 + $0x48] sm:$0xf]
        %v2326 = vld [vmem:[%s222 + $0x4c] sm:$0xf]
        %v2327 = vld [vmem:[%s222 + $0x50] sm:$0xf]
        %v2328 = vld [vmem:[%s222 + $0x54] sm:$0xf]
        %v2329 = vld [vmem:[%s222 + $0x58] sm:$0xf]
        %v2330 = vld [vmem:[%s222 + $0x5c] sm:$0xf]
        %v2331 = vld [vmem:[%s222 + $0x60] sm:$0xf]
        %v2332 = vld [vmem:[%s222 + $0x64] sm:$0xf]
        %v2333 = vld [vmem:[%s222 + $0x68] sm:$0xf]
        %v2334 = vld [vmem:[%s222 + $0x6c] sm:$0xf]
        %v2335 = vld [vmem:[%s222 + $0x70] sm:$0xf]
        %v2336 = vld [vmem:[%s222 + $0x74] sm:$0xf]
        %v2337 = vld [vmem:[%s222 + $0x78] sm:$0xf]
        %v2338 = vld [vmem:[%s222 + $0x7c] sm:$0xf]
        %v2339 = vld [vmem:[%s222 + $0x80] sm:$0xf]
        %v2340 = vld [vmem:[%s222 + $0x84] sm:$0xf]
        %v2341 = vld [vmem:[%s222 + $0x88] sm:$0xf]
        %v2342 = vld [vmem:[%s222 + $0x8c] sm:$0xf]
        %s2343 = scalar_lea.vmem %s1, 12
        %v2344 = vld [vmem:[%s2343] sm:$0x3]
        %v2377 = vunpack.c.l.b16 %v2311
        %v2378 = vunpack.c.l.b16 %v2312
        %v2379 = vunpack.c.l.b16 %v2313
        %v2380 = vunpack.c.l.b16 %v2314
        %v2381 = vunpack.c.l.b16 %v2315
        %v2382 = vunpack.c.l.b16 %v2316
        %v2383 = vunpack.c.l.b16 %v2317
        %v2384 = vunpack.c.l.b16 %v2318
        %v2385 = vunpack.c.l.b16 %v2319
        %v2386 = vunpack.c.l.b16 %v2320
        %v2387 = vunpack.c.l.b16 %v2321
        %v2388 = vunpack.c.l.b16 %v2322
        %v2389 = vunpack.c.l.b16 %v2323
        %v2390 = vunpack.c.l.b16 %v2324
        %v2391 = vunpack.c.l.b16 %v2325
        %v2392 = vunpack.c.l.b16 %v2326
        %v2393 = vunpack.c.l.b16 %v2327
        %v2394 = vunpack.c.l.b16 %v2328
        %v2395 = vunpack.c.l.b16 %v2329
        %v2396 = vunpack.c.l.b16 %v2330
        %v2397 = vunpack.c.l.b16 %v2331
        %v2398 = vunpack.c.l.b16 %v2332
        %v2399 = vunpack.c.l.b16 %v2333
        %v2400 = vunpack.c.l.b16 %v2334
        %v2401 = vunpack.c.l.b16 %v2335
        %v2402 = vunpack.c.l.b16 %v2336
        %v2403 = vunpack.c.l.b16 %v2337
        %v2404 = vunpack.c.l.b16 %v2338
        %v2405 = vunpack.c.l.b16 %v2339
        %v2406 = vunpack.c.l.b16 %v2340
        %v2407 = vunpack.c.l.b16 %v2341
        %v2408 = vunpack.c.l.b16 %v2342
        %v2409 = vpack.c.b16 %v2378, %v2377
        %v2410 = vpack.c.b16 %v2380, %v2379
        %v2411 = vpack.c.b16 %v2382, %v2381
        %v2412 = vpack.c.b16 %v2384, %v2383
        %v2413 = vpack.c.b16 %v2386, %v2385
        %v2414 = vpack.c.b16 %v2388, %v2387
        %v2415 = vpack.c.b16 %v2390, %v2389
        %v2416 = vpack.c.b16 %v2392, %v2391
        %v2417 = vpack.c.b16 %v2394, %v2393
        %v2418 = vpack.c.b16 %v2396, %v2395
        %v2419 = vpack.c.b16 %v2398, %v2397
        %v2420 = vpack.c.b16 %v2400, %v2399
        %v2421 = vpack.c.b16 %v2402, %v2401
        %v2422 = vpack.c.b16 %v2404, %v2403
        %v2423 = vpack.c.b16 %v2406, %v2405
        %v2424 = vpack.c.b16 %v2408, %v2407
        %v2426 = vsel %vm372, %v2409, 0
        %v2429 = vsel %vm372, %v2410, 0
        %v2432 = vsel %vm372, %v2411, 0
        %v2435 = vsel %vm372, %v2412, 0
        %v2438 = vsel %vm372, %v2413, 0
        %v2441 = vsel %vm372, %v2414, 0
        %v2444 = vsel %vm372, %v2415, 0
        %v2447 = vsel %vm372, %v2416, 0
        %v2450 = vsel %vm372, %v2417, 0
        %v2453 = vsel %vm372, %v2418, 0
        %v2456 = vsel %vm372, %v2419, 0
        %v2459 = vsel %vm372, %v2420, 0
        %v2462 = vsel %vm372, %v2421, 0
        %v2465 = vsel %vm372, %v2422, 0
        %v2468 = vsel %vm372, %v2423, 0
        %v2471 = vsel %vm372, %v2424, 0
        %v2474 = vsel %vm421, %v2344, 0
        %2476 = vmatprep.subr.bf16.mxu0 0
        %2477 = vmatpush1.bf16.msra.mxu0 %v2474
        %2478 = vmatprep.subr.bf16.mxu0 0
        %2479 = vmatpush1.bf16.msra.mxu0 0
        %2480 = vmatprep.subr.bf16.mxu0 0
        %2481 = vmatpush1.bf16.msra.mxu0 0
        %2482 = vmatprep.subr.bf16.mxu0 0
        %2483 = vmatpush1.bf16.msra.mxu0 0
        %2484 = vmatprep.subr.bf16.mxu0 0
        %2485 = vmatpush1.bf16.msra.mxu0 0
        %2486 = vmatprep.subr.bf16.mxu0 0
        %2487 = vmatpush1.bf16.msra.mxu0 0
        %2488 = vmatprep.subr.bf16.mxu0 0
        %2489 = vmatpush1.bf16.msra.mxu0 0
        %2490 = vmatprep.subr.bf16.mxu0 0
        %2491 = vmatpush1.bf16.msra.mxu0 0
        %2492 = vmatprep.subr.bf16.mxu0 0
        %2493 = vmatpush1.bf16.msra.mxu0 0
        %2494 = vmatprep.subr.bf16.mxu0 0
        %2495 = vmatpush1.bf16.msra.mxu0 0
        %2496 = vmatprep.subr.bf16.mxu0 0
        %2497 = vmatpush1.bf16.msra.mxu0 0
        %2498 = vmatprep.subr.bf16.mxu0 0
        %2499 = vmatpush1.bf16.msra.mxu0 0
        %2500 = vmatprep.subr.bf16.mxu0 0
        %2501 = vmatpush1.bf16.msra.mxu0 0
        %2502 = vmatprep.subr.bf16.mxu0 0
        %2503 = vmatpush1.bf16.msra.mxu0 0
        %2504 = vmatprep.subr.bf16.mxu0 0
        %2505 = vmatpush1.bf16.msra.mxu0 0
        %2506 = vmatprep.subr.bf16.mxu0 0
        %2507 = vmatpush1.bf16.msra.mxu0 0
        %2508 = vmatprep.mubr.bf16.mxu0 0
        %2509 = vmatmul.mubr.bf16.gmra.mrb[0].mxu0 %v2426
        %v2510 = vpop.f32.mrb[0].mxu0
        %v2511 = vadd.f32 0.0, %v2510
        %v2512 = vpop.f32.mrb[0].mxu0
        %v2513 = vpop.f32.mrb[0].mxu0
        %v2514 = vadd.f32 0.0, %v2513
        %v2515 = vpop.f32.mrb[0].mxu0
        %2516 = vmatprep.mubr.bf16.mxu0 0
        %2517 = vmatmul.mubr.bf16.gmra.mrb[0].mxu0 %v2429
        %v2518 = vpop.f32.mrb[0].mxu0
        %v2519 = vadd.f32 0.0, %v2518
        %v2520 = vpop.f32.mrb[0].mxu0
        %v2521 = vpop.f32.mrb[0].mxu0
        %v2522 = vadd.f32 0.0, %v2521
        %v2523 = vpop.f32.mrb[0].mxu0
        %2524 = vmatprep.mubr.bf16.mxu0 0
        %2525 = vmatmul.mubr.bf16.gmra.mrb[0].mxu0 %v2432
        %v2526 = vpop.f32.mrb[0].mxu0
        %v2527 = vadd.f32 0.0, %v2526
        %v2528 = vpop.f32.mrb[0].mxu0
        %v2529 = vpop.f32.mrb[0].mxu0
        %v2530 = vadd.f32 0.0, %v2529
        %v2531 = vpop.f32.mrb[0].mxu0
        %2532 = vmatprep.mubr.bf16.mxu0 0
        %2533 = vmatmul.mubr.bf16.gmra.mrb[0].mxu0 %v2435
        %v2534 = vpop.f32.mrb[0].mxu0
        %v2535 = vadd.f32 0.0, %v2534
        %v2536 = vpop.f32.mrb[0].mxu0
        %v2537 = vpop.f32.mrb[0].mxu0
        %v2538 = vadd.f32 0.0, %v2537
        %v2539 = vpop.f32.mrb[0].mxu0
        %2540 = vmatprep.mubr.bf16.mxu0 0
        %2541 = vmatmul.mubr.bf16.gmra.mrb[0].mxu0 %v2438
        %v2542 = vpop.f32.mrb[0].mxu0
        %v2543 = vadd.f32 0.0, %v2542
        %v2544 = vpop.f32.mrb[0].mxu0
        %v2545 = vpop.f32.mrb[0].mxu0
        %v2546 = vadd.f32 0.0, %v2545
        %v2547 = vpop.f32.mrb[0].mxu0
        %2548 = vmatprep.mubr.bf16.mxu0 0
        %2549 = vmatmul.mubr.bf16.gmra.mrb[0].mxu0 %v2441
        %v2550 = vpop.f32.mrb[0].mxu0
        %v2551 = vadd.f32 0.0, %v2550
        %v2552 = vpop.f32.mrb[0].mxu0
        %v2553 = vpop.f32.mrb[0].mxu0
        %v2554 = vadd.f32 0.0, %v2553
        %v2555 = vpop.f32.mrb[0].mxu0
        %2556 = vmatprep.mubr.bf16.mxu0 0
        %2557 = vmatmul.mubr.bf16.gmra.mrb[0].mxu0 %v2444
        %v2558 = vpop.f32.mrb[0].mxu0
        %v2559 = vadd.f32 0.0, %v2558
        %v2560 = vpop.f32.mrb[0].mxu0
        %v2561 = vpop.f32.mrb[0].mxu0
        %v2562 = vadd.f32 0.0, %v2561
        %v2563 = vpop.f32.mrb[0].mxu0
        %2564 = vmatprep.mubr.bf16.mxu0 0
        %2565 = vmatmul.mubr.bf16.gmra.mrb[0].mxu0 %v2447
        %v2566 = vpop.f32.mrb[0].mxu0
        %v2567 = vadd.f32 0.0, %v2566
        %v2568 = vpop.f32.mrb[0].mxu0
        %v2569 = vpop.f32.mrb[0].mxu0
        %v2570 = vadd.f32 0.0, %v2569
        %v2571 = vpop.f32.mrb[0].mxu0
        %2572 = vmatprep.mubr.bf16.mxu0 0
        %2573 = vmatmul.mubr.bf16.gmra.mrb[0].mxu0 %v2450
        %v2574 = vpop.f32.mrb[0].mxu0
        %v2575 = vadd.f32 0.0, %v2574
        %v2576 = vpop.f32.mrb[0].mxu0
        %v2577 = vpop.f32.mrb[0].mxu0
        %v2578 = vadd.f32 0.0, %v2577
        %v2579 = vpop.f32.mrb[0].mxu0
        %2580 = vmatprep.mubr.bf16.mxu0 0
        %2581 = vmatmul.mubr.bf16.gmra.mrb[0].mxu0 %v2453
        %v2582 = vpop.f32.mrb[0].mxu0
        %v2583 = vadd.f32 0.0, %v2582
        %v2584 = vpop.f32.mrb[0].mxu0
        %v2585 = vpop.f32.mrb[0].mxu0
        %v2586 = vadd.f32 0.0, %v2585
        %v2587 = vpop.f32.mrb[0].mxu0
        %2588 = vmatprep.mubr.bf16.mxu0 0
        %2589 = vmatmul.mubr.bf16.gmra.mrb[0].mxu0 %v2456
        %v2590 = vpop.f32.mrb[0].mxu0
        %v2591 = vadd.f32 0.0, %v2590
        %v2592 = vpop.f32.mrb[0].mxu0
        %v2593 = vpop.f32.mrb[0].mxu0
        %v2594 = vadd.f32 0.0, %v2593
        %v2595 = vpop.f32.mrb[0].mxu0
        %2596 = vmatprep.mubr.bf16.mxu0 0
        %2597 = vmatmul.mubr.bf16.gmra.mrb[0].mxu0 %v2459
        %v2598 = vpop.f32.mrb[0].mxu0
        %v2599 = vadd.f32 0.0, %v2598
        %v2600 = vpop.f32.mrb[0].mxu0
        %v2601 = vpop.f32.mrb[0].mxu0
        %v2602 = vadd.f32 0.0, %v2601
        %v2603 = vpop.f32.mrb[0].mxu0
        %2604 = vmatprep.mubr.bf16.mxu0 0
        %2605 = vmatmul.mubr.bf16.gmra.mrb[0].mxu0 %v2462
        %v2606 = vpop.f32.mrb[0].mxu0
        %v2607 = vadd.f32 0.0, %v2606
        %v2608 = vpop.f32.mrb[0].mxu0
        %v2609 = vpop.f32.mrb[0].mxu0
        %v2610 = vadd.f32 0.0, %v2609
        %v2611 = vpop.f32.mrb[0].mxu0
        %2612 = vmatprep.mubr.bf16.mxu0 0
        %2613 = vmatmul.mubr.bf16.gmra.mrb[0].mxu0 %v2465
        %v2614 = vpop.f32.mrb[0].mxu0
        %v2615 = vadd.f32 0.0, %v2614
        %v2616 = vpop.f32.mrb[0].mxu0
        %v2617 = vpop.f32.mrb[0].mxu0
        %v2618 = vadd.f32 0.0, %v2617
        %v2619 = vpop.f32.mrb[0].mxu0
        %2620 = vmatprep.mubr.bf16.mxu0 0
        %2621 = vmatmul.mubr.bf16.gmra.mrb[0].mxu0 %v2468
        %v2622 = vpop.f32.mrb[0].mxu0
        %v2623 = vadd.f32 0.0, %v2622
        %v2624 = vpop.f32.mrb[0].mxu0
        %v2625 = vpop.f32.mrb[0].mxu0
        %v2626 = vadd.f32 0.0, %v2625
        %v2627 = vpop.f32.mrb[0].mxu0
        %2628 = vmatprep.mubr.bf16.mxu0 0
        %2629 = vmatmul.mubr.bf16.gmra.mrb[0].mxu0 %v2471
        %v2630 = vpop.f32.mrb[0].mxu0
        %v2631 = vadd.f32 0.0, %v2630
        %v2632 = vpop.f32.mrb[0].mxu0
        %v2633 = vpop.f32.mrb[0].mxu0
        %v2634 = vadd.f32 0.0, %v2633
        %v2635 = vpop.f32.mrb[0].mxu0
        %2636 = vdwg.mxu0
        %v2637 = vadd.f32 %v2279, %v2511
        %v2638 = vadd.f32 %v2280, %v2514
        %v2639 = vadd.f32 %v2281, %v2519
        %v2640 = vadd.f32 %v2282, %v2522
        %v2641 = vadd.f32 %v2283, %v2527
        %v2642 = vadd.f32 %v2284, %v2530
        %v2643 = vadd.f32 %v2285, %v2535
        %v2644 = vadd.f32 %v2286, %v2538
        %v2645 = vadd.f32 %v2287, %v2543
        %v2646 = vadd.f32 %v2288, %v2546
        %v2647 = vadd.f32 %v2289, %v2551
        %v2648 = vadd.f32 %v2290, %v2554
        %v2649 = vadd.f32 %v2291, %v2559
        %v2650 = vadd.f32 %v2292, %v2562
        %v2651 = vadd.f32 %v2293, %v2567
        %v2652 = vadd.f32 %v2294, %v2570
        %v2653 = vadd.f32 %v2295, %v2575
        %v2654 = vadd.f32 %v2296, %v2578
        %v2655 = vadd.f32 %v2297, %v2583
        %v2656 = vadd.f32 %v2298, %v2586
        %v2657 = vadd.f32 %v2299, %v2591
        %v2658 = vadd.f32 %v2300, %v2594
        %v2659 = vadd.f32 %v2301, %v2599
        %v2660 = vadd.f32 %v2302, %v2602
        %v2661 = vadd.f32 %v2303, %v2607
        %v2662 = vadd.f32 %v2304, %v2610
        %v2663 = vadd.f32 %v2305, %v2615
        %v2664 = vadd.f32 %v2306, %v2618
        %v2665 = vadd.f32 %v2307, %v2623
        %v2666 = vadd.f32 %v2308, %v2626
        %v2667 = vadd.f32 %v2309, %v2631
        %v2668 = vadd.f32 %v2310, %v2634
        %v2669 = vld [vmem:[%s257 + $0x10] sm:$0xf]
        %v2670 = vld [vmem:[%s257 + $0x14] sm:$0xf]
        %v2671 = vld [vmem:[%s257 + $0x18] sm:$0xf]
        %v2672 = vld [vmem:[%s257 + $0x1c] sm:$0xf]
        %v2673 = vld [vmem:[%s257 + $0x20] sm:$0xf]
        %v2674 = vld [vmem:[%s257 + $0x24] sm:$0xf]
        %v2675 = vld [vmem:[%s257 + $0x28] sm:$0xf]
        %v2676 = vld [vmem:[%s257 + $0x2c] sm:$0xf]
        %v2677 = vld [vmem:[%s257 + $0x30] sm:$0xf]
        %v2678 = vld [vmem:[%s257 + $0x34] sm:$0xf]
        %v2679 = vld [vmem:[%s257 + $0x38] sm:$0xf]
        %v2680 = vld [vmem:[%s257 + $0x3c] sm:$0xf]
        %v2681 = vld [vmem:[%s257 + $0x40] sm:$0xf]
        %v2682 = vld [vmem:[%s257 + $0x44] sm:$0xf]
        %v2683 = vld [vmem:[%s257 + $0x48] sm:$0xf]
        %v2684 = vld [vmem:[%s257 + $0x4c] sm:$0xf]
        %v2685 = vld [vmem:[%s257 + $0x50] sm:$0xf]
        %v2686 = vld [vmem:[%s257 + $0x54] sm:$0xf]
        %v2687 = vld [vmem:[%s257 + $0x58] sm:$0xf]
        %v2688 = vld [vmem:[%s257 + $0x5c] sm:$0xf]
        %v2689 = vld [vmem:[%s257 + $0x60] sm:$0xf]
        %v2690 = vld [vmem:[%s257 + $0x64] sm:$0xf]
        %v2691 = vld [vmem:[%s257 + $0x68] sm:$0xf]
        %v2692 = vld [vmem:[%s257 + $0x6c] sm:$0xf]
        %v2693 = vld [vmem:[%s257 + $0x70] sm:$0xf]
        %v2694 = vld [vmem:[%s257 + $0x74] sm:$0xf]
        %v2695 = vld [vmem:[%s257 + $0x78] sm:$0xf]
        %v2696 = vld [vmem:[%s257 + $0x7c] sm:$0xf]
        %v2697 = vld [vmem:[%s257 + $0x80] sm:$0xf]
        %v2698 = vld [vmem:[%s257 + $0x84] sm:$0xf]
        %v2699 = vld [vmem:[%s257 + $0x88] sm:$0xf]
        %v2700 = vld [vmem:[%s257 + $0x8c] sm:$0xf]
        %s2701 = scalar_lea.vmem %s1, 14
        %v2702 = vld [vmem:[%s2701] sm:$0x3]
        %v2735 = vunpack.c.l.b16 %v2669
        %v2736 = vunpack.c.l.b16 %v2670
        %v2737 = vunpack.c.l.b16 %v2671
        %v2738 = vunpack.c.l.b16 %v2672
        %v2739 = vunpack.c.l.b16 %v2673
        %v2740 = vunpack.c.l.b16 %v2674
        %v2741 = vunpack.c.l.b16 %v2675
        %v2742 = vunpack.c.l.b16 %v2676
        %v2743 = vunpack.c.l.b16 %v2677
        %v2744 = vunpack.c.l.b16 %v2678
        %v2745 = vunpack.c.l.b16 %v2679
        %v2746 = vunpack.c.l.b16 %v2680
        %v2747 = vunpack.c.l.b16 %v2681
        %v2748 = vunpack.c.l.b16 %v2682
        %v2749 = vunpack.c.l.b16 %v2683
        %v2750 = vunpack.c.l.b16 %v2684
        %v2751 = vunpack.c.l.b16 %v2685
        %v2752 = vunpack.c.l.b16 %v2686
        %v2753 = vunpack.c.l.b16 %v2687
        %v2754 = vunpack.c.l.b16 %v2688
        %v2755 = vunpack.c.l.b16 %v2689
        %v2756 = vunpack.c.l.b16 %v2690
        %v2757 = vunpack.c.l.b16 %v2691
        %v2758 = vunpack.c.l.b16 %v2692
        %v2759 = vunpack.c.l.b16 %v2693
        %v2760 = vunpack.c.l.b16 %v2694
        %v2761 = vunpack.c.l.b16 %v2695
        %v2762 = vunpack.c.l.b16 %v2696
        %v2763 = vunpack.c.l.b16 %v2697
        %v2764 = vunpack.c.l.b16 %v2698
        %v2765 = vunpack.c.l.b16 %v2699
        %v2766 = vunpack.c.l.b16 %v2700
        %v2767 = vpack.c.b16 %v2736, %v2735
        %v2768 = vpack.c.b16 %v2738, %v2737
        %v2769 = vpack.c.b16 %v2740, %v2739
        %v2770 = vpack.c.b16 %v2742, %v2741
        %v2771 = vpack.c.b16 %v2744, %v2743
        %v2772 = vpack.c.b16 %v2746, %v2745
        %v2773 = vpack.c.b16 %v2748, %v2747
        %v2774 = vpack.c.b16 %v2750, %v2749
        %v2775 = vpack.c.b16 %v2752, %v2751
        %v2776 = vpack.c.b16 %v2754, %v2753
        %v2777 = vpack.c.b16 %v2756, %v2755
        %v2778 = vpack.c.b16 %v2758, %v2757
        %v2779 = vpack.c.b16 %v2760, %v2759
        %v2780 = vpack.c.b16 %v2762, %v2761
        %v2781 = vpack.c.b16 %v2764, %v2763
        %v2782 = vpack.c.b16 %v2766, %v2765
        %v2784 = vsel %vm372, %v2767, 0
        %v2787 = vsel %vm372, %v2768, 0
        %v2790 = vsel %vm372, %v2769, 0
        %v2793 = vsel %vm372, %v2770, 0
        %v2796 = vsel %vm372, %v2771, 0
        %v2799 = vsel %vm372, %v2772, 0
        %v2802 = vsel %vm372, %v2773, 0
        %v2805 = vsel %vm372, %v2774, 0
        %v2808 = vsel %vm372, %v2775, 0
        %v2811 = vsel %vm372, %v2776, 0
        %v2814 = vsel %vm372, %v2777, 0
        %v2817 = vsel %vm372, %v2778, 0
        %v2820 = vsel %vm372, %v2779, 0
        %v2823 = vsel %vm372, %v2780, 0
        %v2826 = vsel %vm372, %v2781, 0
        %v2829 = vsel %vm372, %v2782, 0
        %v2832 = vsel %vm421, %v2702, 0
        %2834 = vmatprep.subr.bf16.mxu0 0
        %2835 = vmatpush1.bf16.msra.mxu0 %v2832
        %2836 = vmatprep.subr.bf16.mxu0 0
        %2837 = vmatpush1.bf16.msra.mxu0 0
        %2838 = vmatprep.subr.bf16.mxu0 0
        %2839 = vmatpush1.bf16.msra.mxu0 0
        %2840 = vmatprep.subr.bf16.mxu0 0
        %2841 = vmatpush1.bf16.msra.mxu0 0
        %2842 = vmatprep.subr.bf16.mxu0 0
        %2843 = vmatpush1.bf16.msra.mxu0 0
        %2844 = vmatprep.subr.bf16.mxu0 0
        %2845 = vmatpush1.bf16.msra.mxu0 0
        %2846 = vmatprep.subr.bf16.mxu0 0
        %2847 = vmatpush1.bf16.msra.mxu0 0
        %2848 = vmatprep.subr.bf16.mxu0 0
        %2849 = vmatpush1.bf16.msra.mxu0 0
        %2850 = vmatprep.subr.bf16.mxu0 0
        %2851 = vmatpush1.bf16.msra.mxu0 0
        %2852 = vmatprep.subr.bf16.mxu0 0
        %2853 = vmatpush1.bf16.msra.mxu0 0
        %2854 = vmatprep.subr.bf16.mxu0 0
        %2855 = vmatpush1.bf16.msra.mxu0 0
        %2856 = vmatprep.subr.bf16.mxu0 0
        %2857 = vmatpush1.bf16.msra.mxu0 0
        %2858 = vmatprep.subr.bf16.mxu0 0
        %2859 = vmatpush1.bf16.msra.mxu0 0
        %2860 = vmatprep.subr.bf16.mxu0 0
        %2861 = vmatpush1.bf16.msra.mxu0 0
        %2862 = vmatprep.subr.bf16.mxu0 0
        %2863 = vmatpush1.bf16.msra.mxu0 0
        %2864 = vmatprep.subr.bf16.mxu0 0
        %2865 = vmatpush1.bf16.msra.mxu0 0
        %2866 = vmatprep.mubr.bf16.mxu0 0
        %2867 = vmatmul.mubr.bf16.gmra.mrb[0].mxu0 %v2784
        %v2868 = vpop.f32.mrb[0].mxu0
        %v2869 = vadd.f32 0.0, %v2868
        %v2870 = vpop.f32.mrb[0].mxu0
        %v2871 = vpop.f32.mrb[0].mxu0
        %v2872 = vadd.f32 0.0, %v2871
        %v2873 = vpop.f32.mrb[0].mxu0
        %2874 = vmatprep.mubr.bf16.mxu0 0
        %2875 = vmatmul.mubr.bf16.gmra.mrb[0].mxu0 %v2787
        %v2876 = vpop.f32.mrb[0].mxu0
        %v2877 = vadd.f32 0.0, %v2876
        %v2878 = vpop.f32.mrb[0].mxu0
        %v2879 = vpop.f32.mrb[0].mxu0
        %v2880 = vadd.f32 0.0, %v2879
        %v2881 = vpop.f32.mrb[0].mxu0
        %2882 = vmatprep.mubr.bf16.mxu0 0
        %2883 = vmatmul.mubr.bf16.gmra.mrb[0].mxu0 %v2790
        %v2884 = vpop.f32.mrb[0].mxu0
        %v2885 = vadd.f32 0.0, %v2884
        %v2886 = vpop.f32.mrb[0].mxu0
        %v2887 = vpop.f32.mrb[0].mxu0
        %v2888 = vadd.f32 0.0, %v2887
        %v2889 = vpop.f32.mrb[0].mxu0
        %2890 = vmatprep.mubr.bf16.mxu0 0
        %2891 = vmatmul.mubr.bf16.gmra.mrb[0].mxu0 %v2793
        %v2892 = vpop.f32.mrb[0].mxu0
        %v2893 = vadd.f32 0.0, %v2892
        %v2894 = vpop.f32.mrb[0].mxu0
        %v2895 = vpop.f32.mrb[0].mxu0
        %v2896 = vadd.f32 0.0, %v2895
        %v2897 = vpop.f32.mrb[0].mxu0
        %2898 = vmatprep.mubr.bf16.mxu0 0
        %2899 = vmatmul.mubr.bf16.gmra.mrb[0].mxu0 %v2796
        %v2900 = vpop.f32.mrb[0].mxu0
        %v2901 = vadd.f32 0.0, %v2900
        %v2902 = vpop.f32.mrb[0].mxu0
        %v2903 = vpop.f32.mrb[0].mxu0
        %v2904 = vadd.f32 0.0, %v2903
        %v2905 = vpop.f32.mrb[0].mxu0
        %2906 = vmatprep.mubr.bf16.mxu0 0
        %2907 = vmatmul.mubr.bf16.gmra.mrb[0].mxu0 %v2799
        %v2908 = vpop.f32.mrb[0].mxu0
        %v2909 = vadd.f32 0.0, %v2908
        %v2910 = vpop.f32.mrb[0].mxu0
        %v2911 = vpop.f32.mrb[0].mxu0
        %v2912 = vadd.f32 0.0, %v2911
        %v2913 = vpop.f32.mrb[0].mxu0
        %2914 = vmatprep.mubr.bf16.mxu0 0
        %2915 = vmatmul.mubr.bf16.gmra.mrb[0].mxu0 %v2802
        %v2916 = vpop.f32.mrb[0].mxu0
        %v2917 = vadd.f32 0.0, %v2916
        %v2918 = vpop.f32.mrb[0].mxu0
        %v2919 = vpop.f32.mrb[0].mxu0
        %v2920 = vadd.f32 0.0, %v2919
        %v2921 = vpop.f32.mrb[0].mxu0
        %2922 = vmatprep.mubr.bf16.mxu0 0
        %2923 = vmatmul.mubr.bf16.gmra.mrb[0].mxu0 %v2805
        %v2924 = vpop.f32.mrb[0].mxu0
        %v2925 = vadd.f32 0.0, %v2924
        %v2926 = vpop.f32.mrb[0].mxu0
        %v2927 = vpop.f32.mrb[0].mxu0
        %v2928 = vadd.f32 0.0, %v2927
        %v2929 = vpop.f32.mrb[0].mxu0
        %2930 = vmatprep.mubr.bf16.mxu0 0
        %2931 = vmatmul.mubr.bf16.gmra.mrb[0].mxu0 %v2808
        %v2932 = vpop.f32.mrb[0].mxu0
        %v2933 = vadd.f32 0.0, %v2932
        %v2934 = vpop.f32.mrb[0].mxu0
        %v2935 = vpop.f32.mrb[0].mxu0
        %v2936 = vadd.f32 0.0, %v2935
        %v2937 = vpop.f32.mrb[0].mxu0
        %2938 = vmatprep.mubr.bf16.mxu0 0
        %2939 = vmatmul.mubr.bf16.gmra.mrb[0].mxu0 %v2811
        %v2940 = vpop.f32.mrb[0].mxu0
        %v2941 = vadd.f32 0.0, %v2940
        %v2942 = vpop.f32.mrb[0].mxu0
        %v2943 = vpop.f32.mrb[0].mxu0
        %v2944 = vadd.f32 0.0, %v2943
        %v2945 = vpop.f32.mrb[0].mxu0
        %2946 = vmatprep.mubr.bf16.mxu0 0
        %2947 = vmatmul.mubr.bf16.gmra.mrb[0].mxu0 %v2814
        %v2948 = vpop.f32.mrb[0].mxu0
        %v2949 = vadd.f32 0.0, %v2948
        %v2950 = vpop.f32.mrb[0].mxu0
        %v2951 = vpop.f32.mrb[0].mxu0
        %v2952 = vadd.f32 0.0, %v2951
        %v2953 = vpop.f32.mrb[0].mxu0
        %2954 = vmatprep.mubr.bf16.mxu0 0
        %2955 = vmatmul.mubr.bf16.gmra.mrb[0].mxu0 %v2817
        %v2956 = vpop.f32.mrb[0].mxu0
        %v2957 = vadd.f32 0.0, %v2956
        %v2958 = vpop.f32.mrb[0].mxu0
        %v2959 = vpop.f32.mrb[0].mxu0
        %v2960 = vadd.f32 0.0, %v2959
        %v2961 = vpop.f32.mrb[0].mxu0
        %2962 = vmatprep.mubr.bf16.mxu0 0
        %2963 = vmatmul.mubr.bf16.gmra.mrb[0].mxu0 %v2820
        %v2964 = vpop.f32.mrb[0].mxu0
        %v2965 = vadd.f32 0.0, %v2964
        %v2966 = vpop.f32.mrb[0].mxu0
        %v2967 = vpop.f32.mrb[0].mxu0
        %v2968 = vadd.f32 0.0, %v2967
        %v2969 = vpop.f32.mrb[0].mxu0
        %2970 = vmatprep.mubr.bf16.mxu0 0
        %2971 = vmatmul.mubr.bf16.gmra.mrb[0].mxu0 %v2823
        %v2972 = vpop.f32.mrb[0].mxu0
        %v2973 = vadd.f32 0.0, %v2972
        %v2974 = vpop.f32.mrb[0].mxu0
        %v2975 = vpop.f32.mrb[0].mxu0
        %v2976 = vadd.f32 0.0, %v2975
        %v2977 = vpop.f32.mrb[0].mxu0
        %2978 = vmatprep.mubr.bf16.mxu0 0
        %2979 = vmatmul.mubr.bf16.gmra.mrb[0].mxu0 %v2826
        %v2980 = vpop.f32.mrb[0].mxu0
        %v2981 = vadd.f32 0.0, %v2980
        %v2982 = vpop.f32.mrb[0].mxu0
        %v2983 = vpop.f32.mrb[0].mxu0
        %v2984 = vadd.f32 0.0, %v2983
        %v2985 = vpop.f32.mrb[0].mxu0
        %2986 = vmatprep.mubr.bf16.mxu0 0
        %2987 = vmatmul.mubr.bf16.gmra.mrb[0].mxu0 %v2829
        %v2988 = vpop.f32.mrb[0].mxu0
        %v2989 = vadd.f32 0.0, %v2988
        %v2990 = vpop.f32.mrb[0].mxu0
        %v2991 = vpop.f32.mrb[0].mxu0
        %v2992 = vadd.f32 0.0, %v2991
        %v2993 = vpop.f32.mrb[0].mxu0
        %2994 = vdwg.mxu0
        %v2995 = vadd.f32 %v2637, %v2869
        %v2996 = vadd.f32 %v2638, %v2872
        %v2997 = vadd.f32 %v2639, %v2877
        %v2998 = vadd.f32 %v2640, %v2880
        %v2999 = vadd.f32 %v2641, %v2885
        %v3000 = vadd.f32 %v2642, %v2888
        %v3001 = vadd.f32 %v2643, %v2893
        %v3002 = vadd.f32 %v2644, %v2896
        %v3003 = vadd.f32 %v2645, %v2901
        %v3004 = vadd.f32 %v2646, %v2904
        %v3005 = vadd.f32 %v2647, %v2909
        %v3006 = vadd.f32 %v2648, %v2912
        %v3007 = vadd.f32 %v2649, %v2917
        %v3008 = vadd.f32 %v2650, %v2920
        %v3009 = vadd.f32 %v2651, %v2925
        %v3010 = vadd.f32 %v2652, %v2928
        %v3011 = vadd.f32 %v2653, %v2933
        %v3012 = vadd.f32 %v2654, %v2936
        %v3013 = vadd.f32 %v2655, %v2941
        %v3014 = vadd.f32 %v2656, %v2944
        %v3015 = vadd.f32 %v2657, %v2949
        %v3016 = vadd.f32 %v2658, %v2952
        %v3017 = vadd.f32 %v2659, %v2957
        %v3018 = vadd.f32 %v2660, %v2960
        %v3019 = vadd.f32 %v2661, %v2965
        %v3020 = vadd.f32 %v2662, %v2968
        %v3021 = vadd.f32 %v2663, %v2973
        %v3022 = vadd.f32 %v2664, %v2976
        %v3023 = vadd.f32 %v2665, %v2981
        %v3024 = vadd.f32 %v2666, %v2984
        %v3025 = vadd.f32 %v2667, %v2989
        %v3026 = vadd.f32 %v2668, %v2992
        %v3027 = vld [vmem:[%s878 + $0x10] sm:$0xf]
        %v3028 = vld [vmem:[%s878 + $0x14] sm:$0xf]
        %v3029 = vld [vmem:[%s878 + $0x18] sm:$0xf]
        %v3030 = vld [vmem:[%s878 + $0x1c] sm:$0xf]
        %v3031 = vld [vmem:[%s878 + $0x20] sm:$0xf]
        %v3032 = vld [vmem:[%s878 + $0x24] sm:$0xf]
        %v3033 = vld [vmem:[%s878 + $0x28] sm:$0xf]
        %v3034 = vld [vmem:[%s878 + $0x2c] sm:$0xf]
        %v3035 = vld [vmem:[%s878 + $0x30] sm:$0xf]
        %v3036 = vld [vmem:[%s878 + $0x34] sm:$0xf]
        %v3037 = vld [vmem:[%s878 + $0x38] sm:$0xf]
        %v3038 = vld [vmem:[%s878 + $0x3c] sm:$0xf]
        %v3039 = vld [vmem:[%s878 + $0x40] sm:$0xf]
        %v3040 = vld [vmem:[%s878 + $0x44] sm:$0xf]
        %v3041 = vld [vmem:[%s878 + $0x48] sm:$0xf]
        %v3042 = vld [vmem:[%s878 + $0x4c] sm:$0xf]
        %v3043 = vld [vmem:[%s878 + $0x50] sm:$0xf]
        %v3044 = vld [vmem:[%s878 + $0x54] sm:$0xf]
        %v3045 = vld [vmem:[%s878 + $0x58] sm:$0xf]
        %v3046 = vld [vmem:[%s878 + $0x5c] sm:$0xf]
        %v3047 = vld [vmem:[%s878 + $0x60] sm:$0xf]
        %v3048 = vld [vmem:[%s878 + $0x64] sm:$0xf]
        %v3049 = vld [vmem:[%s878 + $0x68] sm:$0xf]
        %v3050 = vld [vmem:[%s878 + $0x6c] sm:$0xf]
        %v3051 = vld [vmem:[%s878 + $0x70] sm:$0xf]
        %v3052 = vld [vmem:[%s878 + $0x74] sm:$0xf]
        %v3053 = vld [vmem:[%s878 + $0x78] sm:$0xf]
        %v3054 = vld [vmem:[%s878 + $0x7c] sm:$0xf]
        %v3055 = vld [vmem:[%s878 + $0x80] sm:$0xf]
        %v3056 = vld [vmem:[%s878 + $0x84] sm:$0xf]
        %v3057 = vld [vmem:[%s878 + $0x88] sm:$0xf]
        %v3058 = vld [vmem:[%s878 + $0x8c] sm:$0xf]
        %s3059 = scalar_lea.vmem %s1, 16
        %v3060 = vld [vmem:[%s3059] sm:$0x3]
        %v3093 = vunpack.c.l.b16 %v3027
        %v3094 = vunpack.c.l.b16 %v3028
        %v3095 = vunpack.c.l.b16 %v3029
        %v3096 = vunpack.c.l.b16 %v3030
        %v3097 = vunpack.c.l.b16 %v3031
        %v3098 = vunpack.c.l.b16 %v3032
        %v3099 = vunpack.c.l.b16 %v3033
        %v3100 = vunpack.c.l.b16 %v3034
        %v3101 = vunpack.c.l.b16 %v3035
        %v3102 = vunpack.c.l.b16 %v3036
        %v3103 = vunpack.c.l.b16 %v3037
        %v3104 = vunpack.c.l.b16 %v3038
        %v3105 = vunpack.c.l.b16 %v3039
        %v3106 = vunpack.c.l.b16 %v3040
        %v3107 = vunpack.c.l.b16 %v3041
        %v3108 = vunpack.c.l.b16 %v3042
        %v3109 = vunpack.c.l.b16 %v3043
        %v3110 = vunpack.c.l.b16 %v3044
        %v3111 = vunpack.c.l.b16 %v3045
        %v3112 = vunpack.c.l.b16 %v3046
        %v3113 = vunpack.c.l.b16 %v3047
        %v3114 = vunpack.c.l.b16 %v3048
        %v3115 = vunpack.c.l.b16 %v3049
        %v3116 = vunpack.c.l.b16 %v3050
        %v3117 = vunpack.c.l.b16 %v3051
        %v3118 = vunpack.c.l.b16 %v3052
        %v3119 = vunpack.c.l.b16 %v3053
        %v3120 = vunpack.c.l.b16 %v3054
        %v3121 = vunpack.c.l.b16 %v3055
        %v3122 = vunpack.c.l.b16 %v3056
        %v3123 = vunpack.c.l.b16 %v3057
        %v3124 = vunpack.c.l.b16 %v3058
        %v3125 = vpack.c.b16 %v3094, %v3093
        %v3126 = vpack.c.b16 %v3096, %v3095
        %v3127 = vpack.c.b16 %v3098, %v3097
        %v3128 = vpack.c.b16 %v3100, %v3099
        %v3129 = vpack.c.b16 %v3102, %v3101
        %v3130 = vpack.c.b16 %v3104, %v3103
        %v3131 = vpack.c.b16 %v3106, %v3105
        %v3132 = vpack.c.b16 %v3108, %v3107
        %v3133 = vpack.c.b16 %v3110, %v3109
        %v3134 = vpack.c.b16 %v3112, %v3111
        %v3135 = vpack.c.b16 %v3114, %v3113
        %v3136 = vpack.c.b16 %v3116, %v3115
        %v3137 = vpack.c.b16 %v3118, %v3117
        %v3138 = vpack.c.b16 %v3120, %v3119
        %v3139 = vpack.c.b16 %v3122, %v3121
        %v3140 = vpack.c.b16 %v3124, %v3123
        %v3142 = vsel %vm372, %v3125, 0
        %v3145 = vsel %vm372, %v3126, 0
        %v3148 = vsel %vm372, %v3127, 0
        %v3151 = vsel %vm372, %v3128, 0
        %v3154 = vsel %vm372, %v3129, 0
        %v3157 = vsel %vm372, %v3130, 0
        %v3160 = vsel %vm372, %v3131, 0
        %v3163 = vsel %vm372, %v3132, 0
        %v3166 = vsel %vm372, %v3133, 0
        %v3169 = vsel %vm372, %v3134, 0
        %v3172 = vsel %vm372, %v3135, 0
        %v3175 = vsel %vm372, %v3136, 0
        %v3178 = vsel %vm372, %v3137, 0
        %v3181 = vsel %vm372, %v3138, 0
        %v3184 = vsel %vm372, %v3139, 0
        %v3187 = vsel %vm372, %v3140, 0
        %v3190 = vsel %vm421, %v3060, 0
        %3192 = vmatprep.subr.bf16.mxu0 0
        %3193 = vmatpush1.bf16.msra.mxu0 %v3190
        %3194 = vmatprep.subr.bf16.mxu0 0
        %3195 = vmatpush1.bf16.msra.mxu0 0
        %3196 = vmatprep.subr.bf16.mxu0 0
        %3197 = vmatpush1.bf16.msra.mxu0 0
        %3198 = vmatprep.subr.bf16.mxu0 0
        %3199 = vmatpush1.bf16.msra.mxu0 0
        %3200 = vmatprep.subr.bf16.mxu0 0
        %3201 = vmatpush1.bf16.msra.mxu0 0
        %3202 = vmatprep.subr.bf16.mxu0 0
        %3203 = vmatpush1.bf16.msra.mxu0 0
        %3204 = vmatprep.subr.bf16.mxu0 0
        %3205 = vmatpush1.bf16.msra.mxu0 0
        %3206 = vmatprep.subr.bf16.mxu0 0
        %3207 = vmatpush1.bf16.msra.mxu0 0
        %3208 = vmatprep.subr.bf16.mxu0 0
        %3209 = vmatpush1.bf16.msra.mxu0 0
        %3210 = vmatprep.subr.bf16.mxu0 0
        %3211 = vmatpush1.bf16.msra.mxu0 0
        %3212 = vmatprep.subr.bf16.mxu0 0
        %3213 = vmatpush1.bf16.msra.mxu0 0
        %3214 = vmatprep.subr.bf16.mxu0 0
        %3215 = vmatpush1.bf16.msra.mxu0 0
        %3216 = vmatprep.subr.bf16.mxu0 0
        %3217 = vmatpush1.bf16.msra.mxu0 0
        %3218 = vmatprep.subr.bf16.mxu0 0
        %3219 = vmatpush1.bf16.msra.mxu0 0
        %3220 = vmatprep.subr.bf16.mxu0 0
        %3221 = vmatpush1.bf16.msra.mxu0 0
        %3222 = vmatprep.subr.bf16.mxu0 0
        %3223 = vmatpush1.bf16.msra.mxu0 0
        %3224 = vmatprep.mubr.bf16.mxu0 0
        %3225 = vmatmul.mubr.bf16.gmra.mrb[0].mxu0 %v3142
        %v3226 = vpop.f32.mrb[0].mxu0
        %v3227 = vadd.f32 0.0, %v3226
        %v3228 = vpop.f32.mrb[0].mxu0
        %v3229 = vpop.f32.mrb[0].mxu0
        %v3230 = vadd.f32 0.0, %v3229
        %v3231 = vpop.f32.mrb[0].mxu0
        %3232 = vmatprep.mubr.bf16.mxu0 0
        %3233 = vmatmul.mubr.bf16.gmra.mrb[0].mxu0 %v3145
        %v3234 = vpop.f32.mrb[0].mxu0
        %v3235 = vadd.f32 0.0, %v3234
        %v3236 = vpop.f32.mrb[0].mxu0
        %v3237 = vpop.f32.mrb[0].mxu0
        %v3238 = vadd.f32 0.0, %v3237
        %v3239 = vpop.f32.mrb[0].mxu0
        %3240 = vmatprep.mubr.bf16.mxu0 0
        %3241 = vmatmul.mubr.bf16.gmra.mrb[0].mxu0 %v3148
        %v3242 = vpop.f32.mrb[0].mxu0
        %v3243 = vadd.f32 0.0, %v3242
        %v3244 = vpop.f32.mrb[0].mxu0
        %v3245 = vpop.f32.mrb[0].mxu0
        %v3246 = vadd.f32 0.0, %v3245
        %v3247 = vpop.f32.mrb[0].mxu0
        %3248 = vmatprep.mubr.bf16.mxu0 0
        %3249 = vmatmul.mubr.bf16.gmra.mrb[0].mxu0 %v3151
        %v3250 = vpop.f32.mrb[0].mxu0
        %v3251 = vadd.f32 0.0, %v3250
        %v3252 = vpop.f32.mrb[0].mxu0
        %v3253 = vpop.f32.mrb[0].mxu0
        %v3254 = vadd.f32 0.0, %v3253
        %v3255 = vpop.f32.mrb[0].mxu0
        %3256 = vmatprep.mubr.bf16.mxu0 0
        %3257 = vmatmul.mubr.bf16.gmra.mrb[0].mxu0 %v3154
        %v3258 = vpop.f32.mrb[0].mxu0
        %v3259 = vadd.f32 0.0, %v3258
        %v3260 = vpop.f32.mrb[0].mxu0
        %v3261 = vpop.f32.mrb[0].mxu0
        %v3262 = vadd.f32 0.0, %v3261
        %v3263 = vpop.f32.mrb[0].mxu0
        %3264 = vmatprep.mubr.bf16.mxu0 0
        %3265 = vmatmul.mubr.bf16.gmra.mrb[0].mxu0 %v3157
        %v3266 = vpop.f32.mrb[0].mxu0
        %v3267 = vadd.f32 0.0, %v3266
        %v3268 = vpop.f32.mrb[0].mxu0
        %v3269 = vpop.f32.mrb[0].mxu0
        %v3270 = vadd.f32 0.0, %v3269
        %v3271 = vpop.f32.mrb[0].mxu0
        %3272 = vmatprep.mubr.bf16.mxu0 0
        %3273 = vmatmul.mubr.bf16.gmra.mrb[0].mxu0 %v3160
        %v3274 = vpop.f32.mrb[0].mxu0
        %v3275 = vadd.f32 0.0, %v3274
        %v3276 = vpop.f32.mrb[0].mxu0
        %v3277 = vpop.f32.mrb[0].mxu0
        %v3278 = vadd.f32 0.0, %v3277
        %v3279 = vpop.f32.mrb[0].mxu0
        %3280 = vmatprep.mubr.bf16.mxu0 0
        %3281 = vmatmul.mubr.bf16.gmra.mrb[0].mxu0 %v3163
        %v3282 = vpop.f32.mrb[0].mxu0
        %v3283 = vadd.f32 0.0, %v3282
        %v3284 = vpop.f32.mrb[0].mxu0
        %v3285 = vpop.f32.mrb[0].mxu0
        %v3286 = vadd.f32 0.0, %v3285
        %v3287 = vpop.f32.mrb[0].mxu0
        %3288 = vmatprep.mubr.bf16.mxu0 0
        %3289 = vmatmul.mubr.bf16.gmra.mrb[0].mxu0 %v3166
        %v3290 = vpop.f32.mrb[0].mxu0
        %v3291 = vadd.f32 0.0, %v3290
        %v3292 = vpop.f32.mrb[0].mxu0
        %v3293 = vpop.f32.mrb[0].mxu0
        %v3294 = vadd.f32 0.0, %v3293
        %v3295 = vpop.f32.mrb[0].mxu0
        %3296 = vmatprep.mubr.bf16.mxu0 0
        %3297 = vmatmul.mubr.bf16.gmra.mrb[0].mxu0 %v3169
        %v3298 = vpop.f32.mrb[0].mxu0
        %v3299 = vadd.f32 0.0, %v3298
        %v3300 = vpop.f32.mrb[0].mxu0
        %v3301 = vpop.f32.mrb[0].mxu0
        %v3302 = vadd.f32 0.0, %v3301
        %v3303 = vpop.f32.mrb[0].mxu0
        %3304 = vmatprep.mubr.bf16.mxu0 0
        %3305 = vmatmul.mubr.bf16.gmra.mrb[0].mxu0 %v3172
        %v3306 = vpop.f32.mrb[0].mxu0
        %v3307 = vadd.f32 0.0, %v3306
        %v3308 = vpop.f32.mrb[0].mxu0
        %v3309 = vpop.f32.mrb[0].mxu0
        %v3310 = vadd.f32 0.0, %v3309
        %v3311 = vpop.f32.mrb[0].mxu0
        %3312 = vmatprep.mubr.bf16.mxu0 0
        %3313 = vmatmul.mubr.bf16.gmra.mrb[0].mxu0 %v3175
        %v3314 = vpop.f32.mrb[0].mxu0
        %v3315 = vadd.f32 0.0, %v3314
        %v3316 = vpop.f32.mrb[0].mxu0
        %v3317 = vpop.f32.mrb[0].mxu0
        %v3318 = vadd.f32 0.0, %v3317
        %v3319 = vpop.f32.mrb[0].mxu0
        %3320 = vmatprep.mubr.bf16.mxu0 0
        %3321 = vmatmul.mubr.bf16.gmra.mrb[0].mxu0 %v3178
        %v3322 = vpop.f32.mrb[0].mxu0
        %v3323 = vadd.f32 0.0, %v3322
        %v3324 = vpop.f32.mrb[0].mxu0
        %v3325 = vpop.f32.mrb[0].mxu0
        %v3326 = vadd.f32 0.0, %v3325
        %v3327 = vpop.f32.mrb[0].mxu0
        %3328 = vmatprep.mubr.bf16.mxu0 0
        %3329 = vmatmul.mubr.bf16.gmra.mrb[0].mxu0 %v3181
        %v3330 = vpop.f32.mrb[0].mxu0
        %v3331 = vadd.f32 0.0, %v3330
        %v3332 = vpop.f32.mrb[0].mxu0
        %v3333 = vpop.f32.mrb[0].mxu0
        %v3334 = vadd.f32 0.0, %v3333
        %v3335 = vpop.f32.mrb[0].mxu0
        %3336 = vmatprep.mubr.bf16.mxu0 0
        %3337 = vmatmul.mubr.bf16.gmra.mrb[0].mxu0 %v3184
        %v3338 = vpop.f32.mrb[0].mxu0
        %v3339 = vadd.f32 0.0, %v3338
        %v3340 = vpop.f32.mrb[0].mxu0
        %v3341 = vpop.f32.mrb[0].mxu0
        %v3342 = vadd.f32 0.0, %v3341
        %v3343 = vpop.f32.mrb[0].mxu0
        %3344 = vmatprep.mubr.bf16.mxu0 0
        %3345 = vmatmul.mubr.bf16.gmra.mrb[0].mxu0 %v3187
        %v3346 = vpop.f32.mrb[0].mxu0
        %v3347 = vadd.f32 0.0, %v3346
        %v3348 = vpop.f32.mrb[0].mxu0
        %v3349 = vpop.f32.mrb[0].mxu0
        %v3350 = vadd.f32 0.0, %v3349
        %v3351 = vpop.f32.mrb[0].mxu0
        %3352 = vdwg.mxu0
        %v3353 = vadd.f32 %v2995, %v3227
        %v3354 = vadd.f32 %v2996, %v3230
        %v3355 = vadd.f32 %v2997, %v3235
        %v3356 = vadd.f32 %v2998, %v3238
        %v3357 = vadd.f32 %v2999, %v3243
        %v3358 = vadd.f32 %v3000, %v3246
        %v3359 = vadd.f32 %v3001, %v3251
        %v3360 = vadd.f32 %v3002, %v3254
        %v3361 = vadd.f32 %v3003, %v3259
        %v3362 = vadd.f32 %v3004, %v3262
        %v3363 = vadd.f32 %v3005, %v3267
        %v3364 = vadd.f32 %v3006, %v3270
        %v3365 = vadd.f32 %v3007, %v3275
        %v3366 = vadd.f32 %v3008, %v3278
        %v3367 = vadd.f32 %v3009, %v3283
        %v3368 = vadd.f32 %v3010, %v3286
        %v3369 = vadd.f32 %v3011, %v3291
        %v3370 = vadd.f32 %v3012, %v3294
        %v3371 = vadd.f32 %v3013, %v3299
        %v3372 = vadd.f32 %v3014, %v3302
        %v3373 = vadd.f32 %v3015, %v3307
        %v3374 = vadd.f32 %v3016, %v3310
        %v3375 = vadd.f32 %v3017, %v3315
        %v3376 = vadd.f32 %v3018, %v3318
        %v3377 = vadd.f32 %v3019, %v3323
        %v3378 = vadd.f32 %v3020, %v3326
        %v3379 = vadd.f32 %v3021, %v3331
        %v3380 = vadd.f32 %v3022, %v3334
        %v3381 = vadd.f32 %v3023, %v3339
        %v3382 = vadd.f32 %v3024, %v3342
        %v3383 = vadd.f32 %v3025, %v3347
        %v3384 = vadd.f32 %v3026, %v3350
        %v3385 = vld [vmem:[%s2] sm:$0x1]
        %v3387 = vlaneseq
        %v3388 = vshrl.u32 %v3387, 7
        %v3389 = vsub.s32 0, %v3388
        %v3390 = vrot.slane %v3385, %v3389
        %v3392 = vadd.f32 %v3353, %v3390
        %v3393 = vadd.f32 %v3354, %v3390
        %v3394 = vadd.f32 %v3355, %v3390
        %v3395 = vadd.f32 %v3356, %v3390
        %v3396 = vadd.f32 %v3357, %v3390
        %v3397 = vadd.f32 %v3358, %v3390
        %v3398 = vadd.f32 %v3359, %v3390
        %v3399 = vadd.f32 %v3360, %v3390
        %v3400 = vadd.f32 %v3361, %v3390
        %v3401 = vadd.f32 %v3362, %v3390
        %v3402 = vadd.f32 %v3363, %v3390
        %v3403 = vadd.f32 %v3364, %v3390
        %v3404 = vadd.f32 %v3365, %v3390
        %v3405 = vadd.f32 %v3366, %v3390
        %v3406 = vadd.f32 %v3367, %v3390
        %v3407 = vadd.f32 %v3368, %v3390
        %v3408 = vadd.f32 %v3369, %v3390
        %v3409 = vadd.f32 %v3370, %v3390
        %v3410 = vadd.f32 %v3371, %v3390
        %v3411 = vadd.f32 %v3372, %v3390
        %v3412 = vadd.f32 %v3373, %v3390
        %v3413 = vadd.f32 %v3374, %v3390
        %v3414 = vadd.f32 %v3375, %v3390
        %v3415 = vadd.f32 %v3376, %v3390
        %v3416 = vadd.f32 %v3377, %v3390
        %v3417 = vadd.f32 %v3378, %v3390
        %v3418 = vadd.f32 %v3379, %v3390
        %v3419 = vadd.f32 %v3380, %v3390
        %v3420 = vadd.f32 %v3381, %v3390
        %v3421 = vadd.f32 %v3382, %v3390
        %v3422 = vadd.f32 %v3383, %v3390
        %v3423 = vadd.f32 %v3384, %v3390
        %v3424 = vmax.f32 %v3392, 0.0
        %v3425 = vmax.f32 %v3393, 0.0
        %v3426 = vmax.f32 %v3394, 0.0
        %v3427 = vmax.f32 %v3395, 0.0
        %v3428 = vmax.f32 %v3396, 0.0
        %v3429 = vmax.f32 %v3397, 0.0
        %v3430 = vmax.f32 %v3398, 0.0
        %v3431 = vmax.f32 %v3399, 0.0
        %v3432 = vmax.f32 %v3400, 0.0
        %v3433 = vmax.f32 %v3401, 0.0
        %v3434 = vmax.f32 %v3402, 0.0
        %v3435 = vmax.f32 %v3403, 0.0
        %v3436 = vmax.f32 %v3404, 0.0
        %v3437 = vmax.f32 %v3405, 0.0
        %v3438 = vmax.f32 %v3406, 0.0
        %v3439 = vmax.f32 %v3407, 0.0
        %v3440 = vmax.f32 %v3408, 0.0
        %v3441 = vmax.f32 %v3409, 0.0
        %v3442 = vmax.f32 %v3410, 0.0
        %v3443 = vmax.f32 %v3411, 0.0
        %v3444 = vmax.f32 %v3412, 0.0
        %v3445 = vmax.f32 %v3413, 0.0
        %v3446 = vmax.f32 %v3414, 0.0
        %v3447 = vmax.f32 %v3415, 0.0
        %v3448 = vmax.f32 %v3416, 0.0
        %v3449 = vmax.f32 %v3417, 0.0
        %v3450 = vmax.f32 %v3418, 0.0
        %v3451 = vmax.f32 %v3419, 0.0
        %v3452 = vmax.f32 %v3420, 0.0
        %v3453 = vmax.f32 %v3421, 0.0
        %v3454 = vmax.f32 %v3422, 0.0
        %v3455 = vmax.f32 %v3423, 0.0
        %v3456 = vpack.c.bf16 %v3425, %v3424
        %v3457 = vpack.c.bf16 %v3427, %v3426
        %v3458 = vpack.c.bf16 %v3429, %v3428
        %v3459 = vpack.c.bf16 %v3431, %v3430
        %v3460 = vpack.c.bf16 %v3433, %v3432
        %v3461 = vpack.c.bf16 %v3435, %v3434
        %v3462 = vpack.c.bf16 %v3437, %v3436
        %v3463 = vpack.c.bf16 %v3439, %v3438
        %v3464 = vpack.c.bf16 %v3441, %v3440
        %v3465 = vpack.c.bf16 %v3443, %v3442
        %v3466 = vpack.c.bf16 %v3445, %v3444
        %v3467 = vpack.c.bf16 %v3447, %v3446
        %v3468 = vpack.c.bf16 %v3449, %v3448
        %v3469 = vpack.c.bf16 %v3451, %v3450
        %v3470 = vpack.c.bf16 %v3453, %v3452
        %v3471 = vpack.c.bf16 %v3455, %v3454
        %v3472 = vld [vmem:[%s3] sm:$0xf]
        %v3473 = vld [vmem:[%s3 + $0x4] sm:$0xf]
        %v3474 = vld [vmem:[%s3 + $0x8] sm:$0xf]
        %v3475 = vld [vmem:[%s3 + $0xc] sm:$0xf]
        %v3476 = vld [vmem:[%s4] sm:$0x1]
        %v3478 = vlaneseq
        %v3479 = vshrl.u32 %v3478, 7
        %v3480 = vsub.s32 0, %v3479
        %v3481 = vrot.slane %v3476, %v3480
        %v3487 = vunpack.c.l.b16 %v3472
        %v3488 = vunpack.c.l.b16 %v3473
        %v3489 = vunpack.c.l.b16 %v3474
        %v3490 = vunpack.c.l.b16 %v3475
        %v3491 = vpack.c.b16 %v3488, %v3487
        %v3492 = vpack.c.b16 %v3490, %v3489
        %vm3495 = vcmask 261120
        %v3497 = vsel %vm3495, %v3456, 0
        %v3500 = vsel %vm3495, %v3457, 0
        %v3503 = vsel %vm3495, %v3458, 0
        %v3506 = vsel %vm3495, %v3459, 0
        %v3509 = vsel %vm3495, %v3460, 0
        %v3512 = vsel %vm3495, %v3461, 0
        %v3515 = vsel %vm3495, %v3462, 0
        %v3518 = vsel %vm3495, %v3463, 0
        %v3521 = vsel %vm3495, %v3464, 0
        %v3524 = vsel %vm3495, %v3465, 0
        %v3527 = vsel %vm3495, %v3466, 0
        %v3530 = vsel %vm3495, %v3467, 0
        %v3533 = vsel %vm3495, %v3468, 0
        %v3536 = vsel %vm3495, %v3469, 0
        %v3539 = vsel %vm3495, %v3470, 0
        %v3542 = vsel %vm3495, %v3471, 0
        %3544 = vmatprep.subr.bf16.mxu0 0
        %3545 = vmatpush1.bf16.msra.mxu0 %v3491
        %3546 = vmatprep.subr.bf16.mxu0 0
        %3547 = vmatpush1.bf16.msra.mxu0 %v3492
        %3548 = vmatprep.subr.bf16.mxu0 0
        %3549 = vmatpush1.bf16.msra.mxu0 0
        %3550 = vmatprep.subr.bf16.mxu0 0
        %3551 = vmatpush1.bf16.msra.mxu0 0
        %3552 = vmatprep.subr.bf16.mxu0 0
        %3553 = vmatpush1.bf16.msra.mxu0 0
        %3554 = vmatprep.subr.bf16.mxu0 0
        %3555 = vmatpush1.bf16.msra.mxu0 0
        %3556 = vmatprep.subr.bf16.mxu0 0
        %3557 = vmatpush1.bf16.msra.mxu0 0
        %3558 = vmatprep.subr.bf16.mxu0 0
        %3559 = vmatpush1.bf16.msra.mxu0 0
        %3560 = vmatprep.subr.bf16.mxu0 0
        %3561 = vmatpush1.bf16.msra.mxu0 0
        %3562 = vmatprep.subr.bf16.mxu0 0
        %3563 = vmatpush1.bf16.msra.mxu0 0
        %3564 = vmatprep.subr.bf16.mxu0 0
        %3565 = vmatpush1.bf16.msra.mxu0 0
        %3566 = vmatprep.subr.bf16.mxu0 0
        %3567 = vmatpush1.bf16.msra.mxu0 0
        %3568 = vmatprep.subr.bf16.mxu0 0
        %3569 = vmatpush1.bf16.msra.mxu0 0
        %3570 = vmatprep.subr.bf16.mxu0 0
        %3571 = vmatpush1.bf16.msra.mxu0 0
        %3572 = vmatprep.subr.bf16.mxu0 0
        %3573 = vmatpush1.bf16.msra.mxu0 0
        %3574 = vmatprep.subr.bf16.mxu0 0
        %3575 = vmatpush1.bf16.msra.mxu0 0
        %3576 = vmatprep.mubr.bf16.mxu0 0
        %3577 = vmatmul.mubr.bf16.gmra.mrb[0].mxu0 %v3497
        %v3578 = vpop.f32.mrb[0].mxu0
        %v3579 = vadd.f32 %v3481, %v3578
        %v3580 = vpop.f32.mrb[0].mxu0
        %v3581 = vpop.f32.mrb[0].mxu0
        %v3582 = vadd.f32 %v3481, %v3581
        %v3583 = vpop.f32.mrb[0].mxu0
        %3584 = vmatprep.mubr.bf16.mxu0 0
        %3585 = vmatmul.mubr.bf16.gmra.mrb[0].mxu0 %v3500
        %v3586 = vpop.f32.mrb[0].mxu0
        %v3587 = vadd.f32 %v3481, %v3586
        %v3588 = vpop.f32.mrb[0].mxu0
        %v3589 = vpop.f32.mrb[0].mxu0
        %v3590 = vadd.f32 %v3481, %v3589
        %v3591 = vpop.f32.mrb[0].mxu0
        %3592 = vmatprep.mubr.bf16.mxu0 0
        %3593 = vmatmul.mubr.bf16.gmra.mrb[0].mxu0 %v3503
        %v3594 = vpop.f32.mrb[0].mxu0
        %v3595 = vadd.f32 %v3481, %v3594
        %v3596 = vpop.f32.mrb[0].mxu0
        %v3597 = vpop.f32.mrb[0].mxu0
        %v3598 = vadd.f32 %v3481, %v3597
        %v3599 = vpop.f32.mrb[0].mxu0
        %3600 = vmatprep.mubr.bf16.mxu0 0
        %3601 = vmatmul.mubr.bf16.gmra.mrb[0].mxu0 %v3506
        %v3602 = vpop.f32.mrb[0].mxu0
        %v3603 = vadd.f32 %v3481, %v3602
        %v3604 = vpop.f32.mrb[0].mxu0
        %v3605 = vpop.f32.mrb[0].mxu0
        %v3606 = vadd.f32 %v3481, %v3605
        %v3607 = vpop.f32.mrb[0].mxu0
        %3608 = vmatprep.mubr.bf16.mxu0 0
        %3609 = vmatmul.mubr.bf16.gmra.mrb[0].mxu0 %v3509
        %v3610 = vpop.f32.mrb[0].mxu0
        %v3611 = vadd.f32 %v3481, %v3610
        %v3612 = vpop.f32.mrb[0].mxu0
        %v3613 = vpop.f32.mrb[0].mxu0
        %v3614 = vadd.f32 %v3481, %v3613
        %v3615 = vpop.f32.mrb[0].mxu0
        %3616 = vmatprep.mubr.bf16.mxu0 0
        %3617 = vmatmul.mubr.bf16.gmra.mrb[0].mxu0 %v3512
        %v3618 = vpop.f32.mrb[0].mxu0
        %v3619 = vadd.f32 %v3481, %v3618
        %v3620 = vpop.f32.mrb[0].mxu0
        %v3621 = vpop.f32.mrb[0].mxu0
        %v3622 = vadd.f32 %v3481, %v3621
        %v3623 = vpop.f32.mrb[0].mxu0
        %3624 = vmatprep.mubr.bf16.mxu0 0
        %3625 = vmatmul.mubr.bf16.gmra.mrb[0].mxu0 %v3515
        %v3626 = vpop.f32.mrb[0].mxu0
        %v3627 = vadd.f32 %v3481, %v3626
        %v3628 = vpop.f32.mrb[0].mxu0
        %v3629 = vpop.f32.mrb[0].mxu0
        %v3630 = vadd.f32 %v3481, %v3629
        %v3631 = vpop.f32.mrb[0].mxu0
        %3632 = vmatprep.mubr.bf16.mxu0 0
        %3633 = vmatmul.mubr.bf16.gmra.mrb[0].mxu0 %v3518
        %v3634 = vpop.f32.mrb[0].mxu0
        %v3635 = vadd.f32 %v3481, %v3634
        %v3636 = vpop.f32.mrb[0].mxu0
        %v3637 = vpop.f32.mrb[0].mxu0
        %v3638 = vadd.f32 %v3481, %v3637
        %v3639 = vpop.f32.mrb[0].mxu0
        %3640 = vmatprep.mubr.bf16.mxu0 0
        %3641 = vmatmul.mubr.bf16.gmra.mrb[0].mxu0 %v3521
        %v3642 = vpop.f32.mrb[0].mxu0
        %v3643 = vadd.f32 %v3481, %v3642
        %v3644 = vpop.f32.mrb[0].mxu0
        %v3645 = vpop.f32.mrb[0].mxu0
        %v3646 = vadd.f32 %v3481, %v3645
        %v3647 = vpop.f32.mrb[0].mxu0
        %3648 = vmatprep.mubr.bf16.mxu0 0
        %3649 = vmatmul.mubr.bf16.gmra.mrb[0].mxu0 %v3524
        %v3650 = vpop.f32.mrb[0].mxu0
        %v3651 = vadd.f32 %v3481, %v3650
        %v3652 = vpop.f32.mrb[0].mxu0
        %v3653 = vpop.f32.mrb[0].mxu0
        %v3654 = vadd.f32 %v3481, %v3653
        %v3655 = vpop.f32.mrb[0].mxu0
        %3656 = vmatprep.mubr.bf16.mxu0 0
        %3657 = vmatmul.mubr.bf16.gmra.mrb[0].mxu0 %v3527
        %v3658 = vpop.f32.mrb[0].mxu0
        %v3659 = vadd.f32 %v3481, %v3658
        %v3660 = vpop.f32.mrb[0].mxu0
        %v3661 = vpop.f32.mrb[0].mxu0
        %v3662 = vadd.f32 %v3481, %v3661
        %v3663 = vpop.f32.mrb[0].mxu0
        %3664 = vmatprep.mubr.bf16.mxu0 0
        %3665 = vmatmul.mubr.bf16.gmra.mrb[0].mxu0 %v3530
        %v3666 = vpop.f32.mrb[0].mxu0
        %v3667 = vadd.f32 %v3481, %v3666
        %v3668 = vpop.f32.mrb[0].mxu0
        %v3669 = vpop.f32.mrb[0].mxu0
        %v3670 = vadd.f32 %v3481, %v3669
        %v3671 = vpop.f32.mrb[0].mxu0
        %3672 = vmatprep.mubr.bf16.mxu0 0
        %3673 = vmatmul.mubr.bf16.gmra.mrb[0].mxu0 %v3533
        %v3674 = vpop.f32.mrb[0].mxu0
        %v3675 = vadd.f32 %v3481, %v3674
        %v3676 = vpop.f32.mrb[0].mxu0
        %v3677 = vpop.f32.mrb[0].mxu0
        %v3678 = vadd.f32 %v3481, %v3677
        %v3679 = vpop.f32.mrb[0].mxu0
        %3680 = vmatprep.mubr.bf16.mxu0 0
        %3681 = vmatmul.mubr.bf16.gmra.mrb[0].mxu0 %v3536
        %v3682 = vpop.f32.mrb[0].mxu0
        %v3683 = vadd.f32 %v3481, %v3682
        %v3684 = vpop.f32.mrb[0].mxu0
        %v3685 = vpop.f32.mrb[0].mxu0
        %v3686 = vadd.f32 %v3481, %v3685
        %v3687 = vpop.f32.mrb[0].mxu0
        %3688 = vmatprep.mubr.bf16.mxu0 0
        %3689 = vmatmul.mubr.bf16.gmra.mrb[0].mxu0 %v3539
        %v3690 = vpop.f32.mrb[0].mxu0
        %v3691 = vadd.f32 %v3481, %v3690
        %v3692 = vpop.f32.mrb[0].mxu0
        %v3693 = vpop.f32.mrb[0].mxu0
        %v3694 = vadd.f32 %v3481, %v3693
        %v3695 = vpop.f32.mrb[0].mxu0
        %3696 = vmatprep.mubr.bf16.mxu0 0
        %3697 = vmatmul.mubr.bf16.gmra.mrb[0].mxu0 %v3542
        %v3698 = vpop.f32.mrb[0].mxu0
        %v3699 = vadd.f32 %v3481, %v3698
        %v3700 = vpop.f32.mrb[0].mxu0
        %v3701 = vpop.f32.mrb[0].mxu0
        %v3702 = vadd.f32 %v3481, %v3701
        %v3703 = vpop.f32.mrb[0].mxu0
        %3704 = vdwg.mxu0
        %v3705 = vpack.c.bf16 %v3582, %v3579
        %v3706 = vpack.c.bf16 %v3590, %v3587
        %v3707 = vpack.c.bf16 %v3598, %v3595
        %v3708 = vpack.c.bf16 %v3606, %v3603
        %v3709 = vpack.c.bf16 %v3614, %v3611
        %v3710 = vpack.c.bf16 %v3622, %v3619
        %v3711 = vpack.c.bf16 %v3630, %v3627
        %v3712 = vpack.c.bf16 %v3638, %v3635
        %v3713 = vpack.c.bf16 %v3646, %v3643
        %v3714 = vpack.c.bf16 %v3654, %v3651
        %v3715 = vpack.c.bf16 %v3662, %v3659
        %v3716 = vpack.c.bf16 %v3670, %v3667
        %v3717 = vpack.c.bf16 %v3678, %v3675
        %v3718 = vpack.c.bf16 %v3686, %v3683
        %v3719 = vpack.c.bf16 %v3694, %v3691
        %v3720 = vpack.c.bf16 %v3702, %v3699
        %v3737 = vunpack.c.l.b16 %v3705
        %v3738 = vunpack.c.h.b16 %v3705
        %v3739 = vunpack.c.l.b16 %v3706
        %v3740 = vunpack.c.h.b16 %v3706
        %v3741 = vunpack.c.l.b16 %v3707
        %v3742 = vunpack.c.h.b16 %v3707
        %v3743 = vunpack.c.l.b16 %v3708
        %v3744 = vunpack.c.h.b16 %v3708
        %v3745 = vunpack.c.l.b16 %v3709
        %v3746 = vunpack.c.h.b16 %v3709
        %v3747 = vunpack.c.l.b16 %v3710
        %v3748 = vunpack.c.h.b16 %v3710
        %v3749 = vunpack.c.l.b16 %v3711
        %v3750 = vunpack.c.h.b16 %v3711
        %v3751 = vunpack.c.l.b16 %v3712
        %v3752 = vunpack.c.h.b16 %v3712
        %v3753 = vunpack.c.l.b16 %v3713
        %v3754 = vunpack.c.h.b16 %v3713
        %v3755 = vunpack.c.l.b16 %v3714
        %v3756 = vunpack.c.h.b16 %v3714
        %v3757 = vunpack.c.l.b16 %v3715
        %v3758 = vunpack.c.h.b16 %v3715
        %v3759 = vunpack.c.l.b16 %v3716
        %v3760 = vunpack.c.h.b16 %v3716
        %v3761 = vunpack.c.l.b16 %v3717
        %v3762 = vunpack.c.h.b16 %v3717
        %v3763 = vunpack.c.l.b16 %v3718
        %v3764 = vunpack.c.h.b16 %v3718
        %v3765 = vunpack.c.l.b16 %v3719
        %v3766 = vunpack.c.h.b16 %v3719
        %v3767 = vunpack.c.l.b16 %v3720
        %v3768 = vunpack.c.h.b16 %v3720
        %v3769 = vpack.c.b16 %v3737, %v3737
        %v3770 = vpack.c.b16 %v3738, %v3738
        %v3771 = vpack.c.b16 %v3739, %v3739
        %v3772 = vpack.c.b16 %v3740, %v3740
        %v3773 = vpack.c.b16 %v3741, %v3741
        %v3774 = vpack.c.b16 %v3742, %v3742
        %v3775 = vpack.c.b16 %v3743, %v3743
        %v3776 = vpack.c.b16 %v3744, %v3744
        %v3777 = vpack.c.b16 %v3745, %v3745
        %v3778 = vpack.c.b16 %v3746, %v3746
        %v3779 = vpack.c.b16 %v3747, %v3747
        %v3780 = vpack.c.b16 %v3748, %v3748
        %v3781 = vpack.c.b16 %v3749, %v3749
        %v3782 = vpack.c.b16 %v3750, %v3750
        %v3783 = vpack.c.b16 %v3751, %v3751
        %v3784 = vpack.c.b16 %v3752, %v3752
        %v3785 = vpack.c.b16 %v3753, %v3753
        %v3786 = vpack.c.b16 %v3754, %v3754
        %v3787 = vpack.c.b16 %v3755, %v3755
        %v3788 = vpack.c.b16 %v3756, %v3756
        %v3789 = vpack.c.b16 %v3757, %v3757
        %v3790 = vpack.c.b16 %v3758, %v3758
        %v3791 = vpack.c.b16 %v3759, %v3759
        %v3792 = vpack.c.b16 %v3760, %v3760
        %v3793 = vpack.c.b16 %v3761, %v3761
        %v3794 = vpack.c.b16 %v3762, %v3762
        %v3795 = vpack.c.b16 %v3763, %v3763
        %v3796 = vpack.c.b16 %v3764, %v3764
        %v3797 = vpack.c.b16 %v3765, %v3765
        %v3798 = vpack.c.b16 %v3766, %v3766
        %v3799 = vpack.c.b16 %v3767, %v3767
        %v3800 = vpack.c.b16 %v3768, %v3768
        %3833 = vst [vmem:[%s217] sm:$0xf] %v3769
        %3834 = vst [vmem:[%s217 + $0x4] sm:$0xf] %v3770
        %3835 = vst [vmem:[%s217 + $0x8] sm:$0xf] %v3771
        %3836 = vst [vmem:[%s217 + $0xc] sm:$0xf] %v3772
        %3837 = vst [vmem:[%s217 + $0x10] sm:$0xf] %v3773
        %3838 = vst [vmem:[%s217 + $0x14] sm:$0xf] %v3774
        %3839 = vst [vmem:[%s217 + $0x18] sm:$0xf] %v3775
        %3840 = vst [vmem:[%s217 + $0x1c] sm:$0xf] %v3776
        %3841 = vst [vmem:[%s217 + $0x20] sm:$0xf] %v3777
        %3842 = vst [vmem:[%s217 + $0x24] sm:$0xf] %v3778
        %3843 = vst [vmem:[%s217 + $0x28] sm:$0xf] %v3779
        %3844 = vst [vmem:[%s217 + $0x2c] sm:$0xf] %v3780
        %3845 = vst [vmem:[%s217 + $0x30] sm:$0xf] %v3781
        %3846 = vst [vmem:[%s217 + $0x34] sm:$0xf] %v3782
        %3847 = vst [vmem:[%s217 + $0x38] sm:$0xf] %v3783
        %3848 = vst [vmem:[%s217 + $0x3c] sm:$0xf] %v3784
        %3849 = vst [vmem:[%s217 + $0x40] sm:$0xf] %v3785
        %3850 = vst [vmem:[%s217 + $0x44] sm:$0xf] %v3786
        %3851 = vst [vmem:[%s217 + $0x48] sm:$0xf] %v3787
        %3852 = vst [vmem:[%s217 + $0x4c] sm:$0xf] %v3788
        %3853 = vst [vmem:[%s217 + $0x50] sm:$0xf] %v3789
        %3854 = vst [vmem:[%s217 + $0x54] sm:$0xf] %v3790
        %3855 = vst [vmem:[%s217 + $0x58] sm:$0xf] %v3791
        %3856 = vst [vmem:[%s217 + $0x5c] sm:$0xf] %v3792
        %3857 = vst [vmem:[%s217 + $0x60] sm:$0xf] %v3793
        %3858 = vst [vmem:[%s217 + $0x64] sm:$0xf] %v3794
        %3859 = vst [vmem:[%s217 + $0x68] sm:$0xf] %v3795
        %3860 = vst [vmem:[%s217 + $0x6c] sm:$0xf] %v3796
        %3861 = vst [vmem:[%s217 + $0x70] sm:$0xf] %v3797
        %3862 = vst [vmem:[%s217 + $0x74] sm:$0xf] %v3798
        %3863 = vst [vmem:[%s217 + $0x78] sm:$0xf] %v3799
        %3864 = vst [vmem:[%s217 + $0x7c] sm:$0xf] %v3800
        %s3865 = sand.u32 %s137, 1
        %s3866 = scalar_lea.sflag [#allocation3], %s3865
        %s3867 = sand.u32 %s137, 1
        %s3868 = smul.addr %s3867, 128
        %s3869 = scalar_lea.vmem [#allocation2], %s3868
        // Predicated region
        $region41: #{tpu_custom_call.1} parent=39 // pred_check
          %p3870 = pneg %p147
        $region42: #{tpu_custom_call.1} parent=39 // pred_check_branch
          %3872 = sbr.rel (%p3870) target = $region44
        $region43: #{tpu_custom_call.1} parent=39 // pred_region
          %s3874 = ssub.s32 2048, 2048
          %3875 = vsyncadd %s3866, %s3874
          %s3876 = smul.addr %s19, 32
          %s3877 = smul.addr %s3876, 64
          %s3878 = scalar_lea.hbm %s5, %s3877
          %s3879 = sshll.u32 %s3869, 4
          %s3880 = int_to_ptr.vmem [resolvable:$true] %s3879
          %3885 = dma.vmem_to_hbm [thread:$0]  %s3880, 2048, %s3878, %s3866, 64, 64, 4
        $region44: #{tpu_custom_call.1} parent=39 // pred_fallthru
          _
      $region40: #{tpu_custom_call.1} parent=5 // pred_fallthru
        _
      %p3886 = scmp.le.s32.totalorder 2, %s14
      // Predicated region
      $region45: #{tpu_custom_call.1} parent=5 // pred_check
        %p3887 = pneg %p3886
      $region46: #{tpu_custom_call.1} parent=5 // pred_check_branch
        %3889 = sbr.rel (%p3887) target = $region48
      $region47: #{tpu_custom_call.1} parent=5 // pred_region
        %s3890 = ssub.s32 %s14, 2
        // Predicated region
        $region49: #{tpu_custom_call.1} parent=47 // pred_check
          %p3891 = pneg %p153
        $region50: #{tpu_custom_call.1} parent=47 // pred_check_branch
          %3893 = sbr.rel (%p3891) target = $region52
        $region51: #{tpu_custom_call.1} parent=47 // pred_region
          %s3894 = sand.u32 %s138, 1
          %s3895 = scalar_lea.sflag [#allocation3], %s3894
          %s3896 = sand.u32 %s138, 1
          %s3897 = smul.addr %s3896, 128
          %s3898 = scalar_lea.vmem [#allocation2], %s3897
          %3899 = dma.done %s3895, 2048
        $region52: #{tpu_custom_call.1} parent=47 // pred_fallthru
          _
      $region48: #{tpu_custom_call.1} parent=5 // pred_fallthru
        _
    $region6: #{tpu_custom_call.1} parent=1 // loop_footer
      %s18 = sadd.s32 1, %s14
    $region7: #{tpu_custom_call.1} parent=1 // loop_footer_branch
      %13 = sbr.rel target = $region3
    $region8: #{tpu_custom_call.1} parent=1 // loop_exit
      _
    %3900 = vsyncpa [#allocation3], 1
    %s3901 = scalar_lea.sflag [#allocation3], 1
    %3902 = vsyncpa %s3901, 1

</llo_original>
